<compile_context>
chip_gen: v5e
topology: v5e:2x2
jax: 0.10.0
libtpu: 0.0.40
codegen_flags: <defaults>
</compile_context>

<pallas_src>
import functools
import math

import jax
import jax.numpy as jnp
from jax.experimental import pallas as pl
from jax.experimental.pallas import tpu as pltpu


def _round_up(x: int, m: int) -> int:
    return (x + m - 1) // m * m


def _tds_block_kernel(xa_ref, xb_ref, w_ref, b_ref, g_ref, beta_ref, o_ref,
                      win_ref, *, n_pad, kernel_width, block_rows, sub_rows,
                      halo_rows, c_true, eps):
    c_pad = o_ref.shape[-1]
    n_sub = block_rows // sub_rows

    bias = b_ref[...]        # (1, C_pad) f32
    gamma = g_ref[...]       # (1, C_pad) f32
    beta = beta_ref[...]     # (1, C_pad) f32
    lane = jax.lax.broadcasted_iota(jnp.int32, (sub_rows, c_pad), 1)
    feat_mask = lane < c_true
    inv_c = 1.0 / c_true

    # Only the last sub-chunk straddles the tile/halo boundary; stage just that
    # (sub_rows + halo_rows)-row window into VMEM scratch.  All other chunks
    # slice the input tile directly (no full-tile VMEM->VMEM copy).
    win_ref[:sub_rows, :] = xa_ref[block_rows - sub_rows:, :]
    win_ref[sub_rows:, :] = xb_ref[...]

    def process(src_ref, base, out_row):
        # --- temporal conv: K shifted matmuls, bf16 MXU, f32 accumulate ---
        x0 = src_ref[base:base + sub_rows, :]
        acc = jnp.dot(x0, w_ref[0], preferred_element_type=jnp.float32)
        x_last = x0
        for k in range(1, kernel_width):                 # small static unroll
            xk = src_ref[base + k * n_pad: base + k * n_pad + sub_rows, :]
            acc = acc + jnp.dot(xk, w_ref[k], preferred_element_type=jnp.float32)
            x_last = xk                                   # k == K-1 tap
        acc = jnp.maximum(acc + bias, 0.0)                # conv bias + ReLU
        # Residual (= inputs[-T_out:]) is exactly the k = K-1 tap's rows.
        acc = acc + x_last.astype(jnp.float32)
        # --- LayerNorm over the true feature width (padded lanes masked) ---
        acc = jnp.where(feat_mask, acc, 0.0)
        mean = jnp.sum(acc, axis=-1, keepdims=True) * inv_c
        cen = jnp.where(feat_mask, acc - mean, 0.0)
        var = jnp.sum(cen * cen, axis=-1, keepdims=True) * inv_c
        y = cen * jax.lax.rsqrt(var + eps) * gamma + beta
        o_ref[out_row:out_row + sub_rows, :] = y.astype(o_ref.dtype)

    for s in range(n_sub - 1):
        process(xa_ref, s * sub_rows, s * sub_rows)
    process(win_ref, 0, (n_sub - 1) * sub_rows)           # straddling chunk


def tds_conv2d_block(inputs, conv_w, conv_b, ln_gamma, ln_beta, *,
                     channels, width, eps=1e-5, block_rows=1024, out_dtype=None):
    """inputs: (T_in, N, C) with C = channels*width. Returns (T_out, N, C)."""
    T_in, N, C = inputs.shape
    assert C == channels * width
    K = conv_w.shape[-1]
    assert K >= 2, "kernel_width >= 2 expected (K == 1 is a pointwise conv)"
    T_out = T_in - K + 1
    assert T_out >= 1
    out_dtype = inputs.dtype if out_dtype is None else out_dtype

    # --- TPU-friendly padding / tiling parameters -----------------------------
    C_pad = _round_up(C, 128)            # lane-dense features
    N_pad = _round_up(N, 16)             # sublane-aligned tap offsets (bf16)
    halo_rows = (K - 1) * N_pad          # extra input rows each output tile needs
    sub_rows = max(128, halo_rows)       # in-kernel compute chunk (bounds vregs)
    align = math.lcm(sub_rows, halo_rows)

    rows_out = T_out * N_pad
    br = _round_up(block_rows, align)
    if rows_out <= align:
        br = align
    elif rows_out <= br:
        # Small problem: aim for >= 2 grid steps so both v7x TCs get work.
        br = max(align, _round_up(pl.cdiv(rows_out, 2), align))
    assert br % sub_rows == 0 and br % halo_rows == 0 and halo_rows <= sub_rows

    num_blocks = pl.cdiv(rows_out, br)
    rows_out_pad = num_blocks * br
    rows_in = rows_out_pad + halo_rows   # keeps the last block's halo in bounds

    # Single pad + cast (one HBM materialization), then a free reshape.
    # Row r = t * N_pad + n (time-major), features on the lane dim.
    x_flat = jnp.pad(
        inputs.astype(jnp.bfloat16),
        ((0, rows_in // N_pad - T_in), (0, N_pad - N), (0, C_pad - C)),
    ).reshape(rows_in, C_pad)

    # Dense (C_pad, C_pad) matrix per conv tap: kron(W_k^T, I_width), zero-padded.
    #   out[co*W + w] = sum_ci Wk[co, ci] * in[ci*W + w]
    eye_w = jnp.eye(width, dtype=jnp.float32)
    w_dense = jnp.stack(
        [jnp.kron(conv_w[:, :, k].astype(jnp.float32).T, eye_w) for k in range(K)],
        axis=0)                                             # (K, C, C) f32
    w_mat = jnp.zeros((K, C_pad, C_pad), jnp.bfloat16)
    w_mat = w_mat.at[:, :C, :C].set(w_dense.astype(jnp.bfloat16))

    def pad_vec(v):
        out = jnp.zeros((1, C_pad), jnp.float32)
        return out.at[0, :C].set(v.astype(jnp.float32))

    b_full = pad_vec(jnp.repeat(conv_b, width))   # conv bias broadcast over width
    gamma = pad_vec(ln_gamma)
    beta = pad_vec(ln_beta)

    kernel = functools.partial(
        _tds_block_kernel, n_pad=N_pad, kernel_width=K, block_rows=br,
        sub_rows=sub_rows, halo_rows=halo_rows, c_true=C, eps=eps)

    out_flat = pl.pallas_call(
        kernel,
        out_shape=jax.ShapeDtypeStruct((rows_out_pad, C_pad), out_dtype),
        grid_spec=pltpu.PrefetchScalarGridSpec(
            num_scalar_prefetch=0,
            grid=(num_blocks,),
            in_specs=[
                # This tile's rows.
                pl.BlockSpec((br, C_pad), lambda i: (i, 0)),
                # Just the (K-1)*N_pad halo rows right after the tile.
                pl.BlockSpec((halo_rows, C_pad),
                             lambda i: ((i + 1) * (br // halo_rows), 0)),
                pl.BlockSpec((K, C_pad, C_pad), lambda i: (0, 0, 0)),  # conv weights
                pl.BlockSpec((1, C_pad), lambda i: (0, 0)),            # conv bias
                pl.BlockSpec((1, C_pad), lambda i: (0, 0)),            # LN gamma
                pl.BlockSpec((1, C_pad), lambda i: (0, 0)),            # LN beta
            ],
            out_specs=pl.BlockSpec((br, C_pad), lambda i: (i, 0)),
            scratch_shapes=[
                pltpu.VMEM((sub_rows + halo_rows, C_pad), jnp.bfloat16)],
        ),
        compiler_params=pltpu.CompilerParams(
            dimension_semantics=("parallel",)),
    )(x_flat, x_flat, w_mat, b_full, gamma, beta)

    return out_flat[:rows_out].reshape(T_out, N_pad, C_pad)[:, :N, :C]


def reference(inputs, conv_w, conv_b, gamma, beta, *, channels, width, eps=1e-5):
    """Pure-JAX (f32) mirror of the PyTorch forward, for validation."""
    T_in, N, C = inputs.shape
    K = conv_w.shape[-1]
    T_out = T_in - K + 1
    xr = jnp.moveaxis(inputs, 0, -1).reshape(N, channels, width, T_in)
    out = jnp.zeros((N, channels, width, T_out), jnp.float32)
    for k in range(K):
        out = out + jnp.einsum('oc,ncwt->nowt', conv_w[:, :, k],
                               xr[:, :, :, k:k + T_out])
    out = out + conv_b[None, :, None, None]
    out = jnp.maximum(out, 0.0)
    out = jnp.moveaxis(out.reshape(N, C, T_out), -1, 0)
    out = out + inputs[-T_out:]
    mean = jnp.mean(out, axis=-1, keepdims=True)
    var = jnp.mean(jnp.square(out - mean), axis=-1, keepdims=True)
    return (out - mean) * jax.lax.rsqrt(var + eps) * gamma + beta


if __name__ == "__main__":
    channels, width, kernel_width = 4, 8, 5
    C = channels * width              # 32 features
    T_in, N = 36, 2                   # T_out = 32 -> 512 padded rows -> grid=(2,)

    key = jax.random.PRNGKey(0)
    k_x, k_w, k_b, k_g, k_beta = jax.random.split(key, 5)

    inputs = jax.random.normal(k_x, (T_in, N, C), dtype=jnp.float32)
    # Conv2d(channels, channels, kernel_size=(1, kernel_width)) weights:
    conv_w = 0.1 * jax.random.normal(k_w, (channels, channels, kernel_width),
                                     dtype=jnp.float32)
    conv_b = 0.1 * jax.random.normal(k_b, (channels,), dtype=jnp.float32)
    # LayerNorm(channels * width) affine params:
    ln_gamma = 1.0 + 0.1 * jax.random.normal(k_g, (C,), dtype=jnp.float32)
    ln_beta = 0.1 * jax.random.normal(k_beta, (C,), dtype=jnp.float32)

    out = tds_conv2d_block(inputs, conv_w, conv_b, ln_gamma, ln_beta,
                           channels=channels, width=width)
    out = jax.block_until_ready(out)

    ref = reference(inputs, conv_w, conv_b, ln_gamma, ln_beta,
                    channels=channels, width=width)
    assert out.shape == (T_in - kernel_width + 1, N, C)
    err = jnp.max(jnp.abs(out - ref))
    # bf16 MXU inputs (incl. the residual path) -> loosened tolerance vs f32 ref.
    assert jnp.allclose(out, ref, atol=3e-2, rtol=3e-2), f"max abs err {err}"
    print("KERNEL_OK")
</pallas_src>

<mosaic_0001>
module attributes {stable_mosaic.version = 11 : i64} {
  func.func @_tds_block_kernel(%arg0: i32, %arg1: memref<256x128xbf16, #tpu.memory_space<vmem>>, %arg2: memref<64x128xbf16, #tpu.memory_space<vmem>>, %arg3: memref<5x128x128xbf16, #tpu.memory_space<vmem>>, %arg4: memref<1x128xf32, #tpu.memory_space<vmem>>, %arg5: memref<1x128xf32, #tpu.memory_space<vmem>>, %arg6: memref<1x128xf32, #tpu.memory_space<vmem>>, %arg7: memref<256x128xf32, #tpu.memory_space<vmem>>, %arg8: memref<192x128xbf16, #tpu.memory_space<vmem>>) attributes {dimension_semantics = [#tpu.dimension_semantics<parallel>], iteration_bounds = array<i64: 2>, scalar_prefetch = 0 : i64, scratch_operands = 1 : i64, tpu.core_type = #tpu.core_type<tc>, window_params = [{transform_indices = @transform_0, window_bounds = array<i64: 256, 128>}, {transform_indices = @transform_1, window_bounds = array<i64: 64, 128>}, {pipeline_mode = #tpu.pipeline_mode<synchronous>, transform_indices = @transform_2, window_bounds = array<i64: 5, 128, 128>}, {pipeline_mode = #tpu.pipeline_mode<synchronous>, transform_indices = @transform_3, window_bounds = array<i64: 1, 128>}, {pipeline_mode = #tpu.pipeline_mode<synchronous>, transform_indices = @transform_4, window_bounds = array<i64: 1, 128>}, {pipeline_mode = #tpu.pipeline_mode<synchronous>, transform_indices = @transform_5, window_bounds = array<i64: 1, 128>}, {transform_indices = @transform_6, window_bounds = array<i64: 256, 128>}]} {
    %c0 = arith.constant 0 : index
    %c0_0 = arith.constant 0 : index
    %0 = vector.load %arg4[%c0, %c0_0] : memref<1x128xf32, #tpu.memory_space<vmem>>, vector<1x128xf32>
    %c0_1 = arith.constant 0 : index
    %c0_2 = arith.constant 0 : index
    %1 = vector.load %arg5[%c0_1, %c0_2] : memref<1x128xf32, #tpu.memory_space<vmem>>, vector<1x128xf32>
    %c0_3 = arith.constant 0 : index
    %c0_4 = arith.constant 0 : index
    %2 = vector.load %arg6[%c0_3, %c0_4] : memref<1x128xf32, #tpu.memory_space<vmem>>, vector<1x128xf32>
    %3 = tpu.iota {dimensions = array<i32: 1>} : vector<128x128xi32>
    %c32_i32 = arith.constant 32 : i32
    %4 = vector.broadcast %c32_i32 : i32 to vector<128x128xi32>
    %5 = arith.cmpi slt, %3, %4 : vector<128x128xi32>
    %c128 = arith.constant 128 : index
    %c0_5 = arith.constant 0 : index
    %6 = vector.load %arg1[%c128, %c0_5] : memref<256x128xbf16, #tpu.memory_space<vmem>>, vector<128x128xbf16>
    %c0_6 = arith.constant 0 : index
    %c0_7 = arith.constant 0 : index
    %7 = vector.load %arg8[%c0_6, %c0_7] : memref<192x128xbf16, #tpu.memory_space<vmem>>, vector<128x128xbf16>
    tpu.vector_store %arg8[%c0_6, %c0_7], %6 {strides = array<i32>} : memref<192x128xbf16, #tpu.memory_space<vmem>>, vector<128x128xbf16>,
    %c0_8 = arith.constant 0 : index
    %c0_9 = arith.constant 0 : index
    %8 = vector.load %arg2[%c0_8, %c0_9] : memref<64x128xbf16, #tpu.memory_space<vmem>>, vector<64x128xbf16>
    %c128_10 = arith.constant 128 : index
    %c0_11 = arith.constant 0 : index
    %9 = vector.load %arg8[%c128_10, %c0_11] : memref<192x128xbf16, #tpu.memory_space<vmem>>, vector<64x128xbf16>
    tpu.vector_store %arg8[%c128_10, %c0_11], %8 {strides = array<i32>} : memref<192x128xbf16, #tpu.memory_space<vmem>>, vector<64x128xbf16>,
    %c0_12 = arith.constant 0 : index
    %c0_13 = arith.constant 0 : index
    %10 = vector.load %arg1[%c0_12, %c0_13] : memref<256x128xbf16, #tpu.memory_space<vmem>>, vector<128x128xbf16>
    %c0_14 = arith.constant 0 : index
    %c0_15 = arith.constant 0 : index
    %c0_16 = arith.constant 0 : index
    %11 = vector.load %arg3[%c0_14, %c0_15, %c0_16] : memref<5x128x128xbf16, #tpu.memory_space<vmem>>, vector<1x128x128xbf16>
    %12 = vector.shape_cast %11 : vector<1x128x128xbf16> to vector<128x128xbf16>
    %cst = arith.constant dense<0.000000e+00> : vector<128x128xf32>
    %13 = tpu.matmul %10, %12, %cst {dimension_numbers = #tpu.dot_dimension_numbers<[1], [0], [0], [1], [0, 0, 1, 1], [], []>} : vector<128x128xbf16>, vector<128x128xbf16>, vector<128x128xf32> -> vector<128x128xf32>
    %c16 = arith.constant 16 : index
    %c0_17 = arith.constant 0 : index
    %14 = vector.load %arg1[%c16, %c0_17] : memref<256x128xbf16, #tpu.memory_space<vmem>>, vector<128x128xbf16>
    %c1 = arith.constant 1 : index
    %c0_18 = arith.constant 0 : index
    %c0_19 = arith.constant 0 : index
    %15 = vector.load %arg3[%c1, %c0_18, %c0_19] : memref<5x128x128xbf16, #tpu.memory_space<vmem>>, vector<1x128x128xbf16>
    %16 = vector.shape_cast %15 : vector<1x128x128xbf16> to vector<128x128xbf16>
    %cst_20 = arith.constant dense<0.000000e+00> : vector<128x128xf32>
    %17 = tpu.matmul %14, %16, %cst_20 {dimension_numbers = #tpu.dot_dimension_numbers<[1], [0], [0], [1], [0, 0, 1, 1], [], []>} : vector<128x128xbf16>, vector<128x128xbf16>, vector<128x128xf32> -> vector<128x128xf32>
    %18 = arith.addf %13, %17 : vector<128x128xf32>
    %c32 = arith.constant 32 : index
    %c0_21 = arith.constant 0 : index
    %19 = vector.load %arg1[%c32, %c0_21] : memref<256x128xbf16, #tpu.memory_space<vmem>>, vector<128x128xbf16>
    %c2 = arith.constant 2 : index
    %c0_22 = arith.constant 0 : index
    %c0_23 = arith.constant 0 : index
    %20 = vector.load %arg3[%c2, %c0_22, %c0_23] : memref<5x128x128xbf16, #tpu.memory_space<vmem>>, vector<1x128x128xbf16>
    %21 = vector.shape_cast %20 : vector<1x128x128xbf16> to vector<128x128xbf16>
    %cst_24 = arith.constant dense<0.000000e+00> : vector<128x128xf32>
    %22 = tpu.matmul %19, %21, %cst_24 {dimension_numbers = #tpu.dot_dimension_numbers<[1], [0], [0], [1], [0, 0, 1, 1], [], []>} : vector<128x128xbf16>, vector<128x128xbf16>, vector<128x128xf32> -> vector<128x128xf32>
    %23 = arith.addf %18, %22 : vector<128x128xf32>
    %c48 = arith.constant 48 : index
    %c0_25 = arith.constant 0 : index
    %24 = vector.load %arg1[%c48, %c0_25] : memref<256x128xbf16, #tpu.memory_space<vmem>>, vector<128x128xbf16>
    %c3 = arith.constant 3 : index
    %c0_26 = arith.constant 0 : index
    %c0_27 = arith.constant 0 : index
    %25 = vector.load %arg3[%c3, %c0_26, %c0_27] : memref<5x128x128xbf16, #tpu.memory_space<vmem>>, vector<1x128x128xbf16>
    %26 = vector.shape_cast %25 : vector<1x128x128xbf16> to vector<128x128xbf16>
    %cst_28 = arith.constant dense<0.000000e+00> : vector<128x128xf32>
    %27 = tpu.matmul %24, %26, %cst_28 {dimension_numbers = #tpu.dot_dimension_numbers<[1], [0], [0], [1], [0, 0, 1, 1], [], []>} : vector<128x128xbf16>, vector<128x128xbf16>, vector<128x128xf32> -> vector<128x128xf32>
    %28 = arith.addf %23, %27 : vector<128x128xf32>
    %c64 = arith.constant 64 : index
    %c0_29 = arith.constant 0 : index
    %29 = vector.load %arg1[%c64, %c0_29] : memref<256x128xbf16, #tpu.memory_space<vmem>>, vector<128x128xbf16>
    %c4 = arith.constant 4 : index
    %c0_30 = arith.constant 0 : index
    %c0_31 = arith.constant 0 : index
    %30 = vector.load %arg3[%c4, %c0_30, %c0_31] : memref<5x128x128xbf16, #tpu.memory_space<vmem>>, vector<1x128x128xbf16>
    %31 = vector.shape_cast %30 : vector<1x128x128xbf16> to vector<128x128xbf16>
    %cst_32 = arith.constant dense<0.000000e+00> : vector<128x128xf32>
    %32 = tpu.matmul %29, %31, %cst_32 {dimension_numbers = #tpu.dot_dimension_numbers<[1], [0], [0], [1], [0, 0, 1, 1], [], []>} : vector<128x128xbf16>, vector<128x128xbf16>, vector<128x128xf32> -> vector<128x128xf32>
    %33 = arith.addf %28, %32 : vector<128x128xf32>
    %34 = vector.broadcast %0 : vector<1x128xf32> to vector<128x128xf32>
    %35 = arith.addf %33, %34 : vector<128x128xf32>
    %cst_33 = arith.constant 0.000000e+00 : f32
    %36 = vector.broadcast %cst_33 : f32 to vector<128x128xf32>
    %37 = arith.maximumf %35, %36 : vector<128x128xf32>
    %38 = arith.extf %29 : vector<128x128xbf16> to vector<128x128xf32>
    %39 = arith.addf %37, %38 : vector<128x128xf32>
    %cst_34 = arith.constant 0.000000e+00 : f32
    %40 = vector.broadcast %cst_34 : f32 to vector<128x128xf32>
    %41 = arith.select %5, %39, %40 : vector<128x128xi1>, vector<128x128xf32>
    %cst_35 = arith.constant dense<0.000000e+00> : vector<128xf32>
    %42 = vector.multi_reduction <add>, %41, %cst_35 [1] : vector<128x128xf32> to vector<128xf32>
    %43 = vector.shape_cast %42 : vector<128xf32> to vector<128x1xf32>
    %cst_36 = arith.constant 3.125000e-02 : f32
    %44 = vector.broadcast %cst_36 : f32 to vector<128x1xf32>
    %45 = arith.mulf %43, %44 : vector<128x1xf32>
    %46 = vector.broadcast %45 : vector<128x1xf32> to vector<128x128xf32>
    %47 = arith.subf %41, %46 : vector<128x128xf32>
    %cst_37 = arith.constant 0.000000e+00 : f32
    %48 = vector.broadcast %cst_37 : f32 to vector<128x128xf32>
    %49 = arith.select %5, %47, %48 : vector<128x128xi1>, vector<128x128xf32>
    %50 = arith.mulf %49, %49 : vector<128x128xf32>
    %cst_38 = arith.constant dense<0.000000e+00> : vector<128xf32>
    %51 = vector.multi_reduction <add>, %50, %cst_38 [1] : vector<128x128xf32> to vector<128xf32>
    %52 = vector.shape_cast %51 : vector<128xf32> to vector<128x1xf32>
    %cst_39 = arith.constant 3.125000e-02 : f32
    %53 = vector.broadcast %cst_39 : f32 to vector<128x1xf32>
    %54 = arith.mulf %52, %53 : vector<128x1xf32>
    %cst_40 = arith.constant 9.99999974E-6 : f32
    %55 = vector.broadcast %cst_40 : f32 to vector<128x1xf32>
    %56 = arith.addf %54, %55 : vector<128x1xf32>
    %57 = math.rsqrt %56 : vector<128x1xf32>
    %58 = vector.broadcast %57 : vector<128x1xf32> to vector<128x128xf32>
    %59 = arith.mulf %49, %58 : vector<128x128xf32>
    %60 = vector.broadcast %1 : vector<1x128xf32> to vector<128x128xf32>
    %61 = arith.mulf %59, %60 : vector<128x128xf32>
    %62 = vector.broadcast %2 : vector<1x128xf32> to vector<128x128xf32>
    %63 = arith.addf %61, %62 : vector<128x128xf32>
    %c0_41 = arith.constant 0 : index
    %c0_42 = arith.constant 0 : index
    %64 = vector.load %arg7[%c0_41, %c0_42] : memref<256x128xf32, #tpu.memory_space<vmem>>, vector<128x128xf32>
    tpu.vector_store %arg7[%c0_41, %c0_42], %63 {strides = array<i32>} : memref<256x128xf32, #tpu.memory_space<vmem>>, vector<128x128xf32>,
    %c0_43 = arith.constant 0 : index
    %c0_44 = arith.constant 0 : index
    %65 = vector.load %arg8[%c0_43, %c0_44] : memref<192x128xbf16, #tpu.memory_space<vmem>>, vector<128x128xbf16>
    %c0_45 = arith.constant 0 : index
    %c0_46 = arith.constant 0 : index
    %c0_47 = arith.constant 0 : index
    %66 = vector.load %arg3[%c0_45, %c0_46, %c0_47] : memref<5x128x128xbf16, #tpu.memory_space<vmem>>, vector<1x128x128xbf16>
    %67 = vector.shape_cast %66 : vector<1x128x128xbf16> to vector<128x128xbf16>
    %cst_48 = arith.constant dense<0.000000e+00> : vector<128x128xf32>
    %68 = tpu.matmul %65, %67, %cst_48 {dimension_numbers = #tpu.dot_dimension_numbers<[1], [0], [0], [1], [0, 0, 1, 1], [], []>} : vector<128x128xbf16>, vector<128x128xbf16>, vector<128x128xf32> -> vector<128x128xf32>
    %c16_49 = arith.constant 16 : index
    %c0_50 = arith.constant 0 : index
    %69 = vector.load %arg8[%c16_49, %c0_50] : memref<192x128xbf16, #tpu.memory_space<vmem>>, vector<128x128xbf16>
    %c1_51 = arith.constant 1 : index
    %c0_52 = arith.constant 0 : index
    %c0_53 = arith.constant 0 : index
    %70 = vector.load %arg3[%c1_51, %c0_52, %c0_53] : memref<5x128x128xbf16, #tpu.memory_space<vmem>>, vector<1x128x128xbf16>
    %71 = vector.shape_cast %70 : vector<1x128x128xbf16> to vector<128x128xbf16>
    %cst_54 = arith.constant dense<0.000000e+00> : vector<128x128xf32>
    %72 = tpu.matmul %69, %71, %cst_54 {dimension_numbers = #tpu.dot_dimension_numbers<[1], [0], [0], [1], [0, 0, 1, 1], [], []>} : vector<128x128xbf16>, vector<128x128xbf16>, vector<128x128xf32> -> vector<128x128xf32>
    %73 = arith.addf %68, %72 : vector<128x128xf32>
    %c32_55 = arith.constant 32 : index
    %c0_56 = arith.constant 0 : index
    %74 = vector.load %arg8[%c32_55, %c0_56] : memref<192x128xbf16, #tpu.memory_space<vmem>>, vector<128x128xbf16>
    %c2_57 = arith.constant 2 : index
    %c0_58 = arith.constant 0 : index
    %c0_59 = arith.constant 0 : index
    %75 = vector.load %arg3[%c2_57, %c0_58, %c0_59] : memref<5x128x128xbf16, #tpu.memory_space<vmem>>, vector<1x128x128xbf16>
    %76 = vector.shape_cast %75 : vector<1x128x128xbf16> to vector<128x128xbf16>
    %cst_60 = arith.constant dense<0.000000e+00> : vector<128x128xf32>
    %77 = tpu.matmul %74, %76, %cst_60 {dimension_numbers = #tpu.dot_dimension_numbers<[1], [0], [0], [1], [0, 0, 1, 1], [], []>} : vector<128x128xbf16>, vector<128x128xbf16>, vector<128x128xf32> -> vector<128x128xf32>
    %78 = arith.addf %73, %77 : vector<128x128xf32>
    %c48_61 = arith.constant 48 : index
    %c0_62 = arith.constant 0 : index
    %79 = vector.load %arg8[%c48_61, %c0_62] : memref<192x128xbf16, #tpu.memory_space<vmem>>, vector<128x128xbf16>
    %c3_63 = arith.constant 3 : index
    %c0_64 = arith.constant 0 : index
    %c0_65 = arith.constant 0 : index
    %80 = vector.load %arg3[%c3_63, %c0_64, %c0_65] : memref<5x128x128xbf16, #tpu.memory_space<vmem>>, vector<1x128x128xbf16>
    %81 = vector.shape_cast %80 : vector<1x128x128xbf16> to vector<128x128xbf16>
    %cst_66 = arith.constant dense<0.000000e+00> : vector<128x128xf32>
    %82 = tpu.matmul %79, %81, %cst_66 {dimension_numbers = #tpu.dot_dimension_numbers<[1], [0], [0], [1], [0, 0, 1, 1], [], []>} : vector<128x128xbf16>, vector<128x128xbf16>, vector<128x128xf32> -> vector<128x128xf32>
    %83 = arith.addf %78, %82 : vector<128x128xf32>
    %c64_67 = arith.constant 64 : index
    %c0_68 = arith.constant 0 : index
    %84 = vector.load %arg8[%c64_67, %c0_68] : memref<192x128xbf16, #tpu.memory_space<vmem>>, vector<128x128xbf16>
    %c4_69 = arith.constant 4 : index
    %c0_70 = arith.constant 0 : index
    %c0_71 = arith.constant 0 : index
    %85 = vector.load %arg3[%c4_69, %c0_70, %c0_71] : memref<5x128x128xbf16, #tpu.memory_space<vmem>>, vector<1x128x128xbf16>
    %86 = vector.shape_cast %85 : vector<1x128x128xbf16> to vector<128x128xbf16>
    %cst_72 = arith.constant dense<0.000000e+00> : vector<128x128xf32>
    %87 = tpu.matmul %84, %86, %cst_72 {dimension_numbers = #tpu.dot_dimension_numbers<[1], [0], [0], [1], [0, 0, 1, 1], [], []>} : vector<128x128xbf16>, vector<128x128xbf16>, vector<128x128xf32> -> vector<128x128xf32>
    %88 = arith.addf %83, %87 : vector<128x128xf32>
    %89 = vector.broadcast %0 : vector<1x128xf32> to vector<128x128xf32>
    %90 = arith.addf %88, %89 : vector<128x128xf32>
    %cst_73 = arith.constant 0.000000e+00 : f32
    %91 = vector.broadcast %cst_73 : f32 to vector<128x128xf32>
    %92 = arith.maximumf %90, %91 : vector<128x128xf32>
    %93 = arith.extf %84 : vector<128x128xbf16> to vector<128x128xf32>
    %94 = arith.addf %92, %93 : vector<128x128xf32>
    %cst_74 = arith.constant 0.000000e+00 : f32
    %95 = vector.broadcast %cst_74 : f32 to vector<128x128xf32>
    %96 = arith.select %5, %94, %95 : vector<128x128xi1>, vector<128x128xf32>
    %cst_75 = arith.constant dense<0.000000e+00> : vector<128xf32>
    %97 = vector.multi_reduction <add>, %96, %cst_75 [1] : vector<128x128xf32> to vector<128xf32>
    %98 = vector.shape_cast %97 : vector<128xf32> to vector<128x1xf32>
    %cst_76 = arith.constant 3.125000e-02 : f32
    %99 = vector.broadcast %cst_76 : f32 to vector<128x1xf32>
    %100 = arith.mulf %98, %99 : vector<128x1xf32>
    %101 = vector.broadcast %100 : vector<128x1xf32> to vector<128x128xf32>
    %102 = arith.subf %96, %101 : vector<128x128xf32>
    %cst_77 = arith.constant 0.000000e+00 : f32
    %103 = vector.broadcast %cst_77 : f32 to vector<128x128xf32>
    %104 = arith.select %5, %102, %103 : vector<128x128xi1>, vector<128x128xf32>
    %105 = arith.mulf %104, %104 : vector<128x128xf32>
    %cst_78 = arith.constant dense<0.000000e+00> : vector<128xf32>
    %106 = vector.multi_reduction <add>, %105, %cst_78 [1] : vector<128x128xf32> to vector<128xf32>
    %107 = vector.shape_cast %106 : vector<128xf32> to vector<128x1xf32>
    %cst_79 = arith.constant 3.125000e-02 : f32
    %108 = vector.broadcast %cst_79 : f32 to vector<128x1xf32>
    %109 = arith.mulf %107, %108 : vector<128x1xf32>
    %cst_80 = arith.constant 9.99999974E-6 : f32
    %110 = vector.broadcast %cst_80 : f32 to vector<128x1xf32>
    %111 = arith.addf %109, %110 : vector<128x1xf32>
    %112 = math.rsqrt %111 : vector<128x1xf32>
    %113 = vector.broadcast %112 : vector<128x1xf32> to vector<128x128xf32>
    %114 = arith.mulf %104, %113 : vector<128x128xf32>
    %115 = vector.broadcast %1 : vector<1x128xf32> to vector<128x128xf32>
    %116 = arith.mulf %114, %115 : vector<128x128xf32>
    %117 = vector.broadcast %2 : vector<1x128xf32> to vector<128x128xf32>
    %118 = arith.addf %116, %117 : vector<128x128xf32>
    %c128_81 = arith.constant 128 : index
    %c0_82 = arith.constant 0 : index
    %119 = vector.load %arg7[%c128_81, %c0_82] : memref<256x128xf32, #tpu.memory_space<vmem>>, vector<128x128xf32>
    tpu.vector_store %arg7[%c128_81, %c0_82], %118 {strides = array<i32>} : memref<256x128xf32, #tpu.memory_space<vmem>>, vector<128x128xf32>,
    return
  }
  func.func @transform_0(%arg0: i32) -> (i32, i32) {
    %c0_i32 = arith.constant 0 : i32
    %c0_i32_0 = arith.constant 0 : i32
    return %arg0, %c0_i32 : i32, i32
  }
  func.func @transform_1(%arg0: i32) -> (i32, i32) {
    %c1_i32 = arith.constant 1 : i32
    %0 = arith.addi %arg0, %c1_i32 : i32
    %c4_i32 = arith.constant 4 : i32
    %1 = arith.muli %0, %c4_i32 : i32
    %c0_i32 = arith.constant 0 : i32
    %c0_i32_0 = arith.constant 0 : i32
    return %1, %c0_i32 : i32, i32
  }
  func.func @transform_2(%arg0: i32) -> (i32, i32, i32) {
    %c0_i32 = arith.constant 0 : i32
    %c0_i32_0 = arith.constant 0 : i32
    %c0_i32_1 = arith.constant 0 : i32
    %c0_i32_2 = arith.constant 0 : i32
    return %c0_i32, %c0_i32_0, %c0_i32_1 : i32, i32, i32
  }
  func.func @transform_3(%arg0: i32) -> (i32, i32) {
    %c0_i32 = arith.constant 0 : i32
    %c0_i32_0 = arith.constant 0 : i32
    %c0_i32_1 = arith.constant 0 : i32
    return %c0_i32, %c0_i32_0 : i32, i32
  }
  func.func @transform_4(%arg0: i32) -> (i32, i32) {
    %c0_i32 = arith.constant 0 : i32
    %c0_i32_0 = arith.constant 0 : i32
    %c0_i32_1 = arith.constant 0 : i32
    return %c0_i32, %c0_i32_0 : i32, i32
  }
  func.func @transform_5(%arg0: i32) -> (i32, i32) {
    %c0_i32 = arith.constant 0 : i32
    %c0_i32_0 = arith.constant 0 : i32
    %c0_i32_1 = arith.constant 0 : i32
    return %c0_i32, %c0_i32_0 : i32, i32
  }
  func.func @transform_6(%arg0: i32) -> (i32, i32) {
    %c0_i32 = arith.constant 0 : i32
    %c0_i32_0 = arith.constant 0 : i32
    return %arg0, %c0_i32 : i32, i32
  }
}

</mosaic_0001>

<llo_original>
// kernel: tpu_custom_call.1
$region0: #{tpu_custom_call.1}
  #allocation0 [shape = 'u32[]', space=smem, size = 0x4, offset = 0x4, fixed_abs, tag = 'smem constant byte address 0x4 - core index']
  #allocation1 [shape = 'u32[72,128]{1,0:T(1,128)}', space=vmem, size = 0x9000, scoped, tag = 'internal scratch']
  #allocation2 [shape = 'bf16[192,128]{1,0:T(8,128)(2,1)}', space=vmem, size = 0xc000, scoped, tag = 'scratch operand']
  %s0 = inlined_call_operand.hbm [shape: bf16[576,128], index: 0, kind: input, shape index: {}]
  %s1 = inlined_call_operand.hbm [shape: bf16[576,128], index: 1, kind: input, shape index: {}]
  %s2 = inlined_call_operand.hbm [shape: bf16[5,128,128], index: 2, kind: input, shape index: {}]
  %s3 = inlined_call_operand.vmem [shape: f32[1,128], index: 3, kind: input, shape index: {}]
  %s4 = inlined_call_operand.vmem [shape: f32[1,128], index: 4, kind: input, shape index: {}]
  %s5 = inlined_call_operand.vmem [shape: f32[1,128], index: 5, kind: input, shape index: {}]
  %s6 = inlined_call_operand.hbm [shape: f32[512,128], index: 6, kind: output, shape index: {}]
  %s7 = sld [smem:[#allocation0]]
  $region69: #{tpu_custom_call.1} parent=0
    _
  %s9 = ssub.s32 1, %s7
  %s10 = scalar_select 0, %s9, %s7
  $region1: #{tpu_custom_call.1} parent=0
    #allocation3 [shape = 'u8[131072]{0}', space=vmem, size = 0x20000, scoped, tag = 'input window, operand 0']
    #allocation4 [shape = 's32[2]{0}', space=sflag, size = 0x8, scoped, tag = 'scoped memory for tpu_custom_call.1']
    #allocation5 [shape = 's32[2]{0}', space=sflag, size = 0x8, scoped, tag = 'scoped memory for tpu_custom_call.1']
    #allocation6 [shape = 'u8[32768]{0}', space=vmem, size = 0x8000, scoped, tag = 'input window, operand 1']
    #allocation7 [shape = 's32[2]{0}', space=sflag, size = 0x8, scoped, tag = 'scoped memory for tpu_custom_call.1']
    #allocation8 [shape = 'u8[163840]{0}', space=vmem, size = 0x28000, scoped, tag = 'input window, operand 2, single buffered']
    #allocation9 [shape = 'u8[262144]{0}', space=vmem, size = 0x40000, scoped, tag = 'output window, operand 0']
    %11 = vsyncpa [#allocation4], 0
    %s12 = scalar_lea.sflag [#allocation4], 1
    %13 = vsyncpa %s12, 0
    %14 = vsyncpa [#allocation7], 0
    %s15 = scalar_lea.sflag [#allocation7], 1
    %16 = vsyncpa %s15, 0
    %17 = vsyncpa [#allocation5], 0
    %s18 = scalar_lea.sflag [#allocation5], 1
    %19 = vsyncpa %s18, 0
    loop: start=0, step=1, limit=4
    $region2: #{tpu_custom_call.1} parent=1 // loop_pre_header
      _
    $region3: #{tpu_custom_call.1} parent=1 // loop_header
      %s21 = sphi 0, %s25
      %p22 = scmp.ge.s32.totalorder %s21, 4
      %s31 = sphi 0, %s33
      %s34 = sphi 0, %s31
      %s35 = sphi 0, %s34
      %s51 = sphi 0, %s35
      %s61 = sphi 0, %s63
      %s64 = sphi 0, %s61
      %s65 = sphi 0, %s64
      %s81 = sphi 0, %s65
      %s85 = sphi 0, %s85
      %s87 = sphi 0, %s85
      %s88 = sphi 0, %s87
      %s102 = sphi 0, %s88
      %s106 = sphi 0, %s106
      %s108 = sphi 0, %s106
      %s109 = sphi 0, %s108
      %s123 = sphi 0, %s109
      %s127 = sphi 0, %s127
      %s129 = sphi 0, %s127
      %s130 = sphi 0, %s129
      %s144 = sphi 0, %s130
      %s148 = sphi 0, %s148
      %s150 = sphi 0, %s148
      %s151 = sphi 0, %s150
      %s165 = sphi 0, %s151
      %s171 = sphi 0, %s173
      %s174 = sphi 0, %s171
      %s175 = sphi 0, %s174
      %s191 = sphi 0, %s175
    $region4: #{tpu_custom_call.1} parent=1 // loop_header_branch
      %24 = sbr.rel (%p22) target = $region8
    $region5: #{tpu_custom_call.1} parent=1 // loop_body
      %s26 = ssub.s32 %s21, 1
      %s27 = ssub.s32 %s21, 2
      %s28 = sadd.s32 %s21, 1
      %s29 = ssub.s32 %s21, %s28
      %p30 = scmp.eq.s32.totalorder %s29, 0
      %s32 = sadd.s32 %s31, 1
      %s33 = scalar_select %p30, %s31, %s32
      %p36 = pneg %p30
      %p37 = scmp.eq.s32.totalorder %s21, 1
      %p38 = por %p36, %p37
      %p39 = scmp.ne.s32.totalorder %s31, %s34
      %p40 = scmp.eq.s32.totalorder %s21, 0
      %p41 = por %p39, %p40
      %p42 = scmp.ne.s32.totalorder %s31, %s34
      %p43 = scmp.eq.s32.totalorder %s26, 1
      %p44 = por %p42, %p43
      %p45 = scmp.ne.s32.totalorder %s34, %s35
      %p46 = scmp.eq.s32.totalorder %s26, 0
      %p47 = por %p45, %p46
      %p48 = scmp.ne.s32.totalorder %s34, %s35
      %p49 = scmp.eq.s32.totalorder %s27, 1
      %p50 = por %p48, %p49
      %p52 = scmp.ne.s32.totalorder %s35, %s51
      %p53 = scmp.eq.s32.totalorder %s27, 0
      %p54 = por %p52, %p53
      %s55 = sadd.s32 %s21, 1
      %s56 = smul.u32 %s55, 4
      %s57 = sadd.s32 %s28, 1
      %s58 = smul.u32 %s57, 4
      %s59 = ssub.s32 %s56, %s58
      %p60 = scmp.eq.s32.totalorder %s59, 0
      %s62 = sadd.s32 %s61, 1
      %s63 = scalar_select %p60, %s61, %s62
      %p66 = pneg %p60
      %p67 = scmp.eq.s32.totalorder %s21, 1
      %p68 = por %p66, %p67
      %p69 = scmp.ne.s32.totalorder %s61, %s64
      %p70 = scmp.eq.s32.totalorder %s21, 0
      %p71 = por %p69, %p70
      %p72 = scmp.ne.s32.totalorder %s61, %s64
      %p73 = scmp.eq.s32.totalorder %s26, 1
      %p74 = por %p72, %p73
      %p75 = scmp.ne.s32.totalorder %s64, %s65
      %p76 = scmp.eq.s32.totalorder %s26, 0
      %p77 = por %p75, %p76
      %p78 = scmp.ne.s32.totalorder %s64, %s65
      %p79 = scmp.eq.s32.totalorder %s27, 1
      %p80 = por %p78, %p79
      %p82 = scmp.ne.s32.totalorder %s65, %s81
      %p83 = scmp.eq.s32.totalorder %s27, 0
      %p84 = por %p82, %p83
      %s86 = sadd.s32 %s85, 1
      %p89 = scmp.eq.s32.totalorder %s21, 1
      %p90 = scmp.ne.s32.totalorder %s85, %s87
      %p91 = scmp.eq.s32.totalorder %s21, 0
      %p92 = por %p90, %p91
      %p93 = scmp.ne.s32.totalorder %s85, %s87
      %p94 = scmp.eq.s32.totalorder %s26, 1
      %p95 = por %p93, %p94
      %p96 = scmp.ne.s32.totalorder %s87, %s88
      %p97 = scmp.eq.s32.totalorder %s26, 0
      %p98 = por %p96, %p97
      %p99 = scmp.ne.s32.totalorder %s87, %s88
      %p100 = scmp.eq.s32.totalorder %s27, 1
      %p101 = por %p99, %p100
      %p103 = scmp.ne.s32.totalorder %s88, %s102
      %p104 = scmp.eq.s32.totalorder %s27, 0
      %p105 = por %p103, %p104
      %s107 = sadd.s32 %s106, 1
      %p110 = scmp.eq.s32.totalorder %s21, 1
      %p111 = scmp.ne.s32.totalorder %s106, %s108
      %p112 = scmp.eq.s32.totalorder %s21, 0
      %p113 = por %p111, %p112
      %p114 = scmp.ne.s32.totalorder %s106, %s108
      %p115 = scmp.eq.s32.totalorder %s26, 1
      %p116 = por %p114, %p115
      %p117 = scmp.ne.s32.totalorder %s108, %s109
      %p118 = scmp.eq.s32.totalorder %s26, 0
      %p119 = por %p117, %p118
      %p120 = scmp.ne.s32.totalorder %s108, %s109
      %p121 = scmp.eq.s32.totalorder %s27, 1
      %p122 = por %p120, %p121
      %p124 = scmp.ne.s32.totalorder %s109, %s123
      %p125 = scmp.eq.s32.totalorder %s27, 0
      %p126 = por %p124, %p125
      %s128 = sadd.s32 %s127, 1
      %p131 = scmp.eq.s32.totalorder %s21, 1
      %p132 = scmp.ne.s32.totalorder %s127, %s129
      %p133 = scmp.eq.s32.totalorder %s21, 0
      %p134 = por %p132, %p133
      %p135 = scmp.ne.s32.totalorder %s127, %s129
      %p136 = scmp.eq.s32.totalorder %s26, 1
      %p137 = por %p135, %p136
      %p138 = scmp.ne.s32.totalorder %s129, %s130
      %p139 = scmp.eq.s32.totalorder %s26, 0
      %p140 = por %p138, %p139
      %p141 = scmp.ne.s32.totalorder %s129, %s130
      %p142 = scmp.eq.s32.totalorder %s27, 1
      %p143 = por %p141, %p142
      %p145 = scmp.ne.s32.totalorder %s130, %s144
      %p146 = scmp.eq.s32.totalorder %s27, 0
      %p147 = por %p145, %p146
      %s149 = sadd.s32 %s148, 1
      %p152 = scmp.eq.s32.totalorder %s21, 1
      %p153 = scmp.ne.s32.totalorder %s148, %s150
      %p154 = scmp.eq.s32.totalorder %s21, 0
      %p155 = por %p153, %p154
      %p156 = scmp.ne.s32.totalorder %s148, %s150
      %p157 = scmp.eq.s32.totalorder %s26, 1
      %p158 = por %p156, %p157
      %p159 = scmp.ne.s32.totalorder %s150, %s151
      %p160 = scmp.eq.s32.totalorder %s26, 0
      %p161 = por %p159, %p160
      %p162 = scmp.ne.s32.totalorder %s150, %s151
      %p163 = scmp.eq.s32.totalorder %s27, 1
      %p164 = por %p162, %p163
      %p166 = scmp.ne.s32.totalorder %s151, %s165
      %p167 = scmp.eq.s32.totalorder %s27, 0
      %p168 = por %p166, %p167
      %s169 = ssub.s32 %s21, %s28
      %p170 = scmp.eq.s32.totalorder %s169, 0
      %s172 = sadd.s32 %s171, 1
      %s173 = scalar_select %p170, %s171, %s172
      %p176 = pneg %p170
      %p177 = scmp.eq.s32.totalorder %s21, 1
      %p178 = por %p176, %p177
      %p179 = scmp.ne.s32.totalorder %s171, %s174
      %p180 = scmp.eq.s32.totalorder %s21, 0
      %p181 = por %p179, %p180
      %p182 = scmp.ne.s32.totalorder %s171, %s174
      %p183 = scmp.eq.s32.totalorder %s26, 1
      %p184 = por %p182, %p183
      %p185 = scmp.ne.s32.totalorder %s174, %s175
      %p186 = scmp.eq.s32.totalorder %s26, 0
      %p187 = por %p185, %p186
      %p188 = scmp.ne.s32.totalorder %s174, %s175
      %p189 = scmp.eq.s32.totalorder %s27, 1
      %p190 = por %p188, %p189
      %p192 = scmp.ne.s32.totalorder %s175, %s191
      %p193 = scmp.eq.s32.totalorder %s27, 0
      %p194 = por %p192, %p193
      %p195 = scmp.le.s32.totalorder 1, %s21
      %p196 = scmp.lt.s32.totalorder %s21, 3
      %p197 = pnand %p195, %p196
      %p198 = pneg %p197
      // Predicated region
      $region9: #{tpu_custom_call.1} parent=5 // pred_check
        _
      $region10: #{tpu_custom_call.1} parent=5 // pred_check_branch
        %200 = sbr.rel (%p197) target = $region12
      $region11: #{tpu_custom_call.1} parent=5 // pred_region
        %s201 = ssub.s32 %s21, 1
        // Predicated region
        $region13: #{tpu_custom_call.1} parent=11 // pred_check
          %p202 = pneg %p98
        $region14: #{tpu_custom_call.1} parent=11 // pred_check_branch
          %204 = sbr.rel (%p202) target = $region16
        $region15: #{tpu_custom_call.1} parent=11 // pred_region
          %206 = vsyncadd [#allocation7], 0
          %s207 = sshll.u32 %s2, 4
          %s208 = int_to_ptr.hbm [resolvable:$true] %s207
          %s209 = sshll.u32 [#allocation8], 4
          %s210 = int_to_ptr.vmem [resolvable:$true] %s209
          %215 = dma.hbm_to_vmem [thread:$0]  %s208, 5120, %s210, [#allocation7], 64, 64, 4
        $region16: #{tpu_custom_call.1} parent=11 // pred_fallthru
          _
        // Predicated region
        $region17: #{tpu_custom_call.1} parent=11 // pred_check
          %p216 = pneg %p119
        $region18: #{tpu_custom_call.1} parent=11 // pred_check_branch
          %218 = sbr.rel (%p216) target = $region20
        $region19: #{tpu_custom_call.1} parent=11 // pred_region
          _
        $region20: #{tpu_custom_call.1} parent=11 // pred_fallthru
          _
        // Predicated region
        $region21: #{tpu_custom_call.1} parent=11 // pred_check
          %p219 = pneg %p140
        $region22: #{tpu_custom_call.1} parent=11 // pred_check_branch
          %221 = sbr.rel (%p219) target = $region24
        $region23: #{tpu_custom_call.1} parent=11 // pred_region
          _
        $region24: #{tpu_custom_call.1} parent=11 // pred_fallthru
          _
        // Predicated region
        $region25: #{tpu_custom_call.1} parent=11 // pred_check
          %p222 = pneg %p161
        $region26: #{tpu_custom_call.1} parent=11 // pred_check_branch
          %224 = sbr.rel (%p222) target = $region28
        $region27: #{tpu_custom_call.1} parent=11 // pred_region
          _
        $region28: #{tpu_custom_call.1} parent=11 // pred_fallthru
          _
      $region12: #{tpu_custom_call.1} parent=5 // pred_fallthru
        _
      %p225 = scmp.lt.s32.totalorder %s21, 2
      // Predicated region
      $region29: #{tpu_custom_call.1} parent=5 // pred_check
        %p226 = pneg %p225
      $region30: #{tpu_custom_call.1} parent=5 // pred_check_branch
        %228 = sbr.rel (%p226) target = $region32
      $region31: #{tpu_custom_call.1} parent=5 // pred_region
        // Predicated region
        $region33: #{tpu_custom_call.1} parent=31 // pred_check
          %p229 = pneg %p41
        $region34: #{tpu_custom_call.1} parent=31 // pred_check_branch
          %231 = sbr.rel (%p229) target = $region36
        $region35: #{tpu_custom_call.1} parent=31 // pred_region
          %s232 = sand.u32 %s31, 1
          %s233 = scalar_lea.sflag [#allocation4], %s232
          %s234 = sand.u32 %s31, 1
          %s235 = smul.addr %s234, 128
          %s236 = scalar_lea.vmem [#allocation3], %s235
          %s237 = smul.u32 32, %s21
          %s238 = ssub.s32 72, %s237
          %p239 = scmp.lt.s32.totalorder %s238, 32
          %s240 = scalar_select %p239, %s238, 32
          %s241 = smul.u32 4, %s240
          %s242 = ssub.s32 128, %s241
          %s243 = sshll.u32 %s242, 4
          %244 = vsyncadd %s233, %s243
          %p245 = scmp.ne.s32.totalorder 0, %s241
          %s246 = smul.addr %s237, 4
          %s247 = scalar_lea.hbm %s0, %s246
          %s248 = smul.u32 4, %s240
          %s249 = sshll.u32 %s247, 4
          %s250 = int_to_ptr.hbm [resolvable:$true] %s249
          %s251 = sshll.u32 %s236, 4
          %s252 = int_to_ptr.vmem [resolvable:$true] %s251
          %s253 = sshll.u32 %s248, 4
          %257 = dma.hbm_to_vmem [thread:$0]  (%p245), %s250, %s253, %s252, %s233, 64, 64, 4
        $region36: #{tpu_custom_call.1} parent=31 // pred_fallthru
          _
        // Predicated region
        $region37: #{tpu_custom_call.1} parent=31 // pred_check
          %p258 = pneg %p71
        $region38: #{tpu_custom_call.1} parent=31 // pred_check_branch
          %260 = sbr.rel (%p258) target = $region40
        $region39: #{tpu_custom_call.1} parent=31 // pred_region
          %s261 = sand.u32 %s21, 1
          %s262 = scalar_lea.sflag [#allocation7], %s261
          %s263 = sand.u32 %s61, 1
          %s264 = smul.addr %s263, 32
          %s265 = scalar_lea.vmem [#allocation6], %s264
          %s266 = sadd.s32 %s21, 1
          %s267 = smul.u32 %s266, 4
          %s268 = smul.u32 8, %s267
          %270 = vsyncadd %s262, 0
          %s271 = smul.addr %s268, 4
          %s272 = scalar_lea.hbm %s1, %s271
          %s273 = sshll.u32 %s272, 4
          %s274 = int_to_ptr.hbm [resolvable:$true] %s273
          %s275 = sshll.u32 %s265, 4
          %s276 = int_to_ptr.vmem [resolvable:$true] %s275
          %281 = dma.hbm_to_vmem [thread:$0]  %s274, 512, %s276, %s262, 64, 64, 4
        $region40: #{tpu_custom_call.1} parent=31 // pred_fallthru
          _
      $region32: #{tpu_custom_call.1} parent=5 // pred_fallthru
        _
      %p282 = scmp.le.s32.totalorder 1, %s21
      %p283 = scmp.lt.s32.totalorder %s21, 3
      %p284 = pnand %p282, %p283
      %p285 = pneg %p284
      // Predicated region
      $region41: #{tpu_custom_call.1} parent=5 // pred_check
        _
      $region42: #{tpu_custom_call.1} parent=5 // pred_check_branch
        %287 = sbr.rel (%p284) target = $region44
      $region43: #{tpu_custom_call.1} parent=5 // pred_region
        %s288 = ssub.s32 %s21, 1
        %s289 = sand.u32 %s34, 1
        %s290 = scalar_lea.sflag [#allocation4], %s289
        %s291 = sand.u32 %s34, 1
        %s292 = smul.addr %s291, 128
        %s293 = scalar_lea.vmem [#allocation3], %s292
        // Predicated region
        $region45: #{tpu_custom_call.1} parent=43 // pred_check
          %p294 = pneg %p47
        $region46: #{tpu_custom_call.1} parent=43 // pred_check_branch
          %296 = sbr.rel (%p294) target = $region48
        $region47: #{tpu_custom_call.1} parent=43 // pred_region
          %298 = dma.done %s290, 2048
        $region48: #{tpu_custom_call.1} parent=43 // pred_fallthru
          _
        %s299 = sand.u32 %s26, 1
        %s300 = scalar_lea.sflag [#allocation7], %s299
        %s301 = sand.u32 %s64, 1
        %s302 = smul.addr %s301, 32
        %s303 = scalar_lea.vmem [#allocation6], %s302
        // Predicated region
        $region49: #{tpu_custom_call.1} parent=43 // pred_check
          %p304 = pneg %p77
        $region50: #{tpu_custom_call.1} parent=43 // pred_check_branch
          %306 = sbr.rel (%p304) target = $region52
        $region51: #{tpu_custom_call.1} parent=43 // pred_region
          %308 = dma.done %s300, 512
        $region52: #{tpu_custom_call.1} parent=43 // pred_fallthru
          _
        // Predicated region
        $region53: #{tpu_custom_call.1} parent=43 // pred_check
          %p309 = pneg %p98
        $region54: #{tpu_custom_call.1} parent=43 // pred_check_branch
          %311 = sbr.rel (%p309) target = $region56
        $region55: #{tpu_custom_call.1} parent=43 // pred_region
          %313 = dma.done [#allocation7], 5120
        $region56: #{tpu_custom_call.1} parent=43 // pred_fallthru
          _
        %s314 = sand.u32 %s34, 1
        %s315 = scalar_lea.sflag [#allocation4], %s314
        %s316 = sand.u32 %s34, 1
        %s317 = smul.addr %s316, 128
        %s318 = scalar_lea.vmem [#allocation3], %s317
        %p319 = pneg %p47
        %p320 = pneg %p44
        %s321 = sand.u32 %s26, 1
        %s322 = scalar_lea.sflag [#allocation7], %s321
        %s323 = sand.u32 %s64, 1
        %s324 = smul.addr %s323, 32
        %s325 = scalar_lea.vmem [#allocation6], %s324
        %p326 = pneg %p77
        %p327 = pneg %p74
        %p328 = pneg %p98
        %p329 = pneg %p95
        %p330 = pneg %p119
        %p331 = pneg %p116
        %p332 = pneg %p140
        %p333 = pneg %p137
        %p334 = pneg %p161
        %p335 = pneg %p158
        %p336 = pneg %p187
        %p337 = pneg %p184
        %s338 = sand.u32 %s174, 1
        %s339 = scalar_lea.sflag [#allocation5], %s338
        %s340 = sand.u32 %s174, 1
        %s341 = smul.addr %s340, 256
        %s342 = scalar_lea.vmem [#allocation9], %s341
        %s343 = smul.u32 32, %s26
        %s344 = ssub.s32 72, %s343
        %p345 = scmp.lt.s32.totalorder %s344, 32
        %s346 = scalar_select %p345, %s344, 32
        %s347 = smul.u32 4, %s346
        %s348 = sadd.s32 %s26, 1
        %s349 = smul.u32 %s348, 4
        %s350 = smul.u32 8, %s349
        %s351 = smul.u32 32, %s26
        %v352 = vld [vmem:[%s3] sm:$0x1]
        %v353 = vld [vmem:[%s4] sm:$0x1]
        %v354 = vld [vmem:[%s5] sm:$0x1]
        %v355 = vlaneseq
        %v356 = vand.u32 %v355, 127
        %vm357 = vcmp.lt.s32.totalorder %v356, 32
        %v358 = vld [vmem:[%s293 + $0x40] sm:$0xf]
        %v359 = vld [vmem:[%s293 + $0x44] sm:$0xf]
        %v360 = vld [vmem:[%s293 + $0x48] sm:$0xf]
        %v361 = vld [vmem:[%s293 + $0x4c] sm:$0xf]
        %v362 = vld [vmem:[%s293 + $0x50] sm:$0xf]
        %v363 = vld [vmem:[%s293 + $0x54] sm:$0xf]
        %v364 = vld [vmem:[%s293 + $0x58] sm:$0xf]
        %v365 = vld [vmem:[%s293 + $0x5c] sm:$0xf]
        %v366 = vld [vmem:[%s293 + $0x60] sm:$0xf]
        %v367 = vld [vmem:[%s293 + $0x64] sm:$0xf]
        %v368 = vld [vmem:[%s293 + $0x68] sm:$0xf]
        %v369 = vld [vmem:[%s293 + $0x6c] sm:$0xf]
        %v370 = vld [vmem:[%s293 + $0x70] sm:$0xf]
        %v371 = vld [vmem:[%s293 + $0x74] sm:$0xf]
        %v372 = vld [vmem:[%s293 + $0x78] sm:$0xf]
        %v373 = vld [vmem:[%s293 + $0x7c] sm:$0xf]
        %374 = vst [vmem:[#allocation2] sm:$0xf] %v358
        %375 = vst [vmem:[#allocation2 + $0x4] sm:$0xf] %v359
        %376 = vst [vmem:[#allocation2 + $0x8] sm:$0xf] %v360
        %377 = vst [vmem:[#allocation2 + $0xc] sm:$0xf] %v361
        %378 = vst [vmem:[#allocation2 + $0x10] sm:$0xf] %v362
        %379 = vst [vmem:[#allocation2 + $0x14] sm:$0xf] %v363
        %380 = vst [vmem:[#allocation2 + $0x18] sm:$0xf] %v364
        %381 = vst [vmem:[#allocation2 + $0x1c] sm:$0xf] %v365
        %382 = vst [vmem:[#allocation2 + $0x20] sm:$0xf] %v366
        %383 = vst [vmem:[#allocation2 + $0x24] sm:$0xf] %v367
        %384 = vst [vmem:[#allocation2 + $0x28] sm:$0xf] %v368
        %385 = vst [vmem:[#allocation2 + $0x2c] sm:$0xf] %v369
        %386 = vst [vmem:[#allocation2 + $0x30] sm:$0xf] %v370
        %387 = vst [vmem:[#allocation2 + $0x34] sm:$0xf] %v371
        %388 = vst [vmem:[#allocation2 + $0x38] sm:$0xf] %v372
        %389 = vst [vmem:[#allocation2 + $0x3c] sm:$0xf] %v373
        %v390 = vld [vmem:[%s303] sm:$0xf]
        %v391 = vld [vmem:[%s303 + $0x4] sm:$0xf]
        %v392 = vld [vmem:[%s303 + $0x8] sm:$0xf]
        %v393 = vld [vmem:[%s303 + $0xc] sm:$0xf]
        %v394 = vld [vmem:[%s303 + $0x10] sm:$0xf]
        %v395 = vld [vmem:[%s303 + $0x14] sm:$0xf]
        %v396 = vld [vmem:[%s303 + $0x18] sm:$0xf]
        %v397 = vld [vmem:[%s303 + $0x1c] sm:$0xf]
        %398 = vst [vmem:[#allocation2 + $0x40] sm:$0xf] %v390
        %399 = vst [vmem:[#allocation2 + $0x44] sm:$0xf] %v391
        %400 = vst [vmem:[#allocation2 + $0x48] sm:$0xf] %v392
        %401 = vst [vmem:[#allocation2 + $0x4c] sm:$0xf] %v393
        %402 = vst [vmem:[#allocation2 + $0x50] sm:$0xf] %v394
        %403 = vst [vmem:[#allocation2 + $0x54] sm:$0xf] %v395
        %404 = vst [vmem:[#allocation2 + $0x58] sm:$0xf] %v396
        %405 = vst [vmem:[#allocation2 + $0x5c] sm:$0xf] %v397
        %v406 = vld [vmem:[%s293] sm:$0xf]
        %v407 = vld [vmem:[%s293 + $0x4] sm:$0xf]
        %v408 = vld [vmem:[%s293 + $0x8] sm:$0xf]
        %v409 = vld [vmem:[%s293 + $0xc] sm:$0xf]
        %v410 = vld [vmem:[%s293 + $0x10] sm:$0xf]
        %v411 = vld [vmem:[%s293 + $0x14] sm:$0xf]
        %v412 = vld [vmem:[%s293 + $0x18] sm:$0xf]
        %v413 = vld [vmem:[%s293 + $0x1c] sm:$0xf]
        %v414 = vld [vmem:[%s293 + $0x20] sm:$0xf]
        %v415 = vld [vmem:[%s293 + $0x24] sm:$0xf]
        %v416 = vld [vmem:[%s293 + $0x28] sm:$0xf]
        %v417 = vld [vmem:[%s293 + $0x2c] sm:$0xf]
        %v418 = vld [vmem:[%s293 + $0x30] sm:$0xf]
        %v419 = vld [vmem:[%s293 + $0x34] sm:$0xf]
        %v420 = vld [vmem:[%s293 + $0x38] sm:$0xf]
        %v421 = vld [vmem:[%s293 + $0x3c] sm:$0xf]
        %v422 = vld [vmem:[#allocation8] sm:$0xf]
        %v423 = vld [vmem:[#allocation8 + $0x4] sm:$0xf]
        %v424 = vld [vmem:[#allocation8 + $0x8] sm:$0xf]
        %v425 = vld [vmem:[#allocation8 + $0xc] sm:$0xf]
        %v426 = vld [vmem:[#allocation8 + $0x10] sm:$0xf]
        %v427 = vld [vmem:[#allocation8 + $0x14] sm:$0xf]
        %v428 = vld [vmem:[#allocation8 + $0x18] sm:$0xf]
        %v429 = vld [vmem:[#allocation8 + $0x1c] sm:$0xf]
        %v430 = vld [vmem:[#allocation8 + $0x20] sm:$0xf]
        %v431 = vld [vmem:[#allocation8 + $0x24] sm:$0xf]
        %v432 = vld [vmem:[#allocation8 + $0x28] sm:$0xf]
        %v433 = vld [vmem:[#allocation8 + $0x2c] sm:$0xf]
        %v434 = vld [vmem:[#allocation8 + $0x30] sm:$0xf]
        %v435 = vld [vmem:[#allocation8 + $0x34] sm:$0xf]
        %v436 = vld [vmem:[#allocation8 + $0x38] sm:$0xf]
        %v437 = vld [vmem:[#allocation8 + $0x3c] sm:$0xf]
        %v438 = vld [vmem:[%s293 + $0x40] sm:$0xf]
        %v439 = vld [vmem:[%s293 + $0x44] sm:$0xf]
        %s440 = scalar_lea.vmem [#allocation8], 64
        %v441 = vld [vmem:[%s440] sm:$0xf]
        %v442 = vld [vmem:[%s440 + $0x4] sm:$0xf]
        %v443 = vld [vmem:[%s440 + $0x8] sm:$0xf]
        %v444 = vld [vmem:[%s440 + $0xc] sm:$0xf]
        %v445 = vld [vmem:[%s440 + $0x10] sm:$0xf]
        %v446 = vld [vmem:[%s440 + $0x14] sm:$0xf]
        %v447 = vld [vmem:[%s440 + $0x18] sm:$0xf]
        %v448 = vld [vmem:[%s440 + $0x1c] sm:$0xf]
        %v449 = vld [vmem:[%s440 + $0x20] sm:$0xf]
        %v450 = vld [vmem:[%s440 + $0x24] sm:$0xf]
        %v451 = vld [vmem:[%s440 + $0x28] sm:$0xf]
        %v452 = vld [vmem:[%s440 + $0x2c] sm:$0xf]
        %v453 = vld [vmem:[%s440 + $0x30] sm:$0xf]
        %v454 = vld [vmem:[%s440 + $0x34] sm:$0xf]
        %v455 = vld [vmem:[%s440 + $0x38] sm:$0xf]
        %v456 = vld [vmem:[%s440 + $0x3c] sm:$0xf]
        %v473 = vunpack.c.l.b16 %v408
        %v474 = vunpack.c.l.b16 %v409
        %v475 = vunpack.c.l.b16 %v410
        %v476 = vunpack.c.l.b16 %v411
        %v477 = vunpack.c.l.b16 %v412
        %v478 = vunpack.c.l.b16 %v413
        %v479 = vunpack.c.l.b16 %v414
        %v480 = vunpack.c.l.b16 %v415
        %v481 = vunpack.c.l.b16 %v416
        %v482 = vunpack.c.l.b16 %v417
        %v483 = vunpack.c.l.b16 %v418
        %v484 = vunpack.c.l.b16 %v419
        %v485 = vunpack.c.l.b16 %v420
        %v486 = vunpack.c.l.b16 %v421
        %v487 = vunpack.c.l.b16 %v438
        %v488 = vunpack.c.l.b16 %v439
        %v489 = vpack.c.b16 %v474, %v473
        %v490 = vpack.c.b16 %v476, %v475
        %v491 = vpack.c.b16 %v478, %v477
        %v492 = vpack.c.b16 %v480, %v479
        %v493 = vpack.c.b16 %v482, %v481
        %v494 = vpack.c.b16 %v484, %v483
        %v495 = vpack.c.b16 %v486, %v485
        %v496 = vpack.c.b16 %v488, %v487
        %v521 = vunpack.c.l.b16 %v441
        %v522 = vunpack.c.l.b16 %v442
        %v523 = vunpack.c.l.b16 %v443
        %v524 = vunpack.c.l.b16 %v444
        %v525 = vunpack.c.l.b16 %v445
        %v526 = vunpack.c.l.b16 %v446
        %v527 = vunpack.c.l.b16 %v447
        %v528 = vunpack.c.l.b16 %v448
        %v529 = vunpack.c.l.b16 %v449
        %v530 = vunpack.c.l.b16 %v450
        %v531 = vunpack.c.l.b16 %v451
        %v532 = vunpack.c.l.b16 %v452
        %v533 = vunpack.c.l.b16 %v453
        %v534 = vunpack.c.l.b16 %v454
        %v535 = vunpack.c.l.b16 %v455
        %v536 = vunpack.c.l.b16 %v456
        %v537 = vpack.c.b16 %v522, %v521
        %v538 = vpack.c.b16 %v524, %v523
        %v539 = vpack.c.b16 %v526, %v525
        %v540 = vpack.c.b16 %v528, %v527
        %v541 = vpack.c.b16 %v530, %v529
        %v542 = vpack.c.b16 %v532, %v531
        %v543 = vpack.c.b16 %v534, %v533
        %v544 = vpack.c.b16 %v536, %v535
        %553 = vmatpush.bf16.msra.mxu0 %v544
        %554 = vmatpush.bf16.msra.mxu0 %v543
        %555 = vmatpush.bf16.msra.mxu0 %v542
        %556 = vmatpush.bf16.msra.mxu0 %v541
        %557 = vmatpush.bf16.msra.mxu0 %v540
        %558 = vmatpush.bf16.msra.mxu0 %v539
        %559 = vmatpush.bf16.msra.mxu0 %v538
        %560 = vmatpush.bf16.msra.mxu0 %v537
        %561 = vmatmul.bf16.gmra.mxu0 %v489
        %v562 = vpop.f32.mrf.mxu0
        %v563 = vadd.f32 0.0, %v562
        %v564 = vpop.f32.mrf.mxu0
        %v565 = vadd.f32 0.0, %v564
        %566 = vmatmul.bf16.gmra.mxu0 %v490
        %v567 = vpop.f32.mrf.mxu0
        %v568 = vadd.f32 0.0, %v567
        %v569 = vpop.f32.mrf.mxu0
        %v570 = vadd.f32 0.0, %v569
        %571 = vmatmul.bf16.gmra.mxu0 %v491
        %v572 = vpop.f32.mrf.mxu0
        %v573 = vadd.f32 0.0, %v572
        %v574 = vpop.f32.mrf.mxu0
        %v575 = vadd.f32 0.0, %v574
        %576 = vmatmul.bf16.gmra.mxu0 %v492
        %v577 = vpop.f32.mrf.mxu0
        %v578 = vadd.f32 0.0, %v577
        %v579 = vpop.f32.mrf.mxu0
        %v580 = vadd.f32 0.0, %v579
        %581 = vmatmul.bf16.gmra.mxu0 %v493
        %v582 = vpop.f32.mrf.mxu0
        %v583 = vadd.f32 0.0, %v582
        %v584 = vpop.f32.mrf.mxu0
        %v585 = vadd.f32 0.0, %v584
        %586 = vmatmul.bf16.gmra.mxu0 %v494
        %v587 = vpop.f32.mrf.mxu0
        %v588 = vadd.f32 0.0, %v587
        %v589 = vpop.f32.mrf.mxu0
        %v590 = vadd.f32 0.0, %v589
        %591 = vmatmul.bf16.gmra.mxu0 %v495
        %v592 = vpop.f32.mrf.mxu0
        %v593 = vadd.f32 0.0, %v592
        %v594 = vpop.f32.mrf.mxu0
        %v595 = vadd.f32 0.0, %v594
        %596 = vmatmul.bf16.gmra.mxu0 %v496
        %v597 = vpop.f32.mrf.mxu0
        %v598 = vadd.f32 0.0, %v597
        %v599 = vpop.f32.mrf.mxu0
        %v600 = vadd.f32 0.0, %v599
        %601 = vdwg.mxu0
        %v604 = vunpack.c.l.b16 %v406
        %v605 = vunpack.c.l.b16 %v407
        %v606 = vpack.c.b16 %v605, %v604
        %v624 = vunpack.c.l.b16 %v422
        %v625 = vunpack.c.l.b16 %v423
        %v626 = vunpack.c.l.b16 %v424
        %v627 = vunpack.c.l.b16 %v425
        %v628 = vunpack.c.l.b16 %v426
        %v629 = vunpack.c.l.b16 %v427
        %v630 = vunpack.c.l.b16 %v428
        %v631 = vunpack.c.l.b16 %v429
        %v632 = vunpack.c.l.b16 %v430
        %v633 = vunpack.c.l.b16 %v431
        %v634 = vunpack.c.l.b16 %v432
        %v635 = vunpack.c.l.b16 %v433
        %v636 = vunpack.c.l.b16 %v434
        %v637 = vunpack.c.l.b16 %v435
        %v638 = vunpack.c.l.b16 %v436
        %v639 = vunpack.c.l.b16 %v437
        %v640 = vpack.c.b16 %v625, %v624
        %v641 = vpack.c.b16 %v627, %v626
        %v642 = vpack.c.b16 %v629, %v628
        %v643 = vpack.c.b16 %v631, %v630
        %v644 = vpack.c.b16 %v633, %v632
        %v645 = vpack.c.b16 %v635, %v634
        %v646 = vpack.c.b16 %v637, %v636
        %v647 = vpack.c.b16 %v639, %v638
        %656 = vmatpush.bf16.msra.mxu0 %v647
        %657 = vmatpush.bf16.msra.mxu0 %v646
        %658 = vmatpush.bf16.msra.mxu0 %v645
        %659 = vmatpush.bf16.msra.mxu0 %v644
        %660 = vmatpush.bf16.msra.mxu0 %v643
        %661 = vmatpush.bf16.msra.mxu0 %v642
        %662 = vmatpush.bf16.msra.mxu0 %v641
        %663 = vmatpush.bf16.msra.mxu0 %v640
        %664 = vmatmul.bf16.gmra.mxu0 %v606
        %v665 = vpop.f32.mrf.mxu0
        %v666 = vadd.f32 %v563, %v665
        %v667 = vpop.f32.mrf.mxu0
        %v668 = vadd.f32 %v565, %v667
        %669 = vmatmul.bf16.gmra.mxu0 %v489
        %v670 = vpop.f32.mrf.mxu0
        %v671 = vadd.f32 %v568, %v670
        %v672 = vpop.f32.mrf.mxu0
        %v673 = vadd.f32 %v570, %v672
        %674 = vmatmul.bf16.gmra.mxu0 %v490
        %v675 = vpop.f32.mrf.mxu0
        %v676 = vadd.f32 %v573, %v675
        %v677 = vpop.f32.mrf.mxu0
        %v678 = vadd.f32 %v575, %v677
        %679 = vmatmul.bf16.gmra.mxu0 %v491
        %v680 = vpop.f32.mrf.mxu0
        %v681 = vadd.f32 %v578, %v680
        %v682 = vpop.f32.mrf.mxu0
        %v683 = vadd.f32 %v580, %v682
        %684 = vmatmul.bf16.gmra.mxu0 %v492
        %v685 = vpop.f32.mrf.mxu0
        %v686 = vadd.f32 %v583, %v685
        %v687 = vpop.f32.mrf.mxu0
        %v688 = vadd.f32 %v585, %v687
        %689 = vmatmul.bf16.gmra.mxu0 %v493
        %v690 = vpop.f32.mrf.mxu0
        %v691 = vadd.f32 %v588, %v690
        %v692 = vpop.f32.mrf.mxu0
        %v693 = vadd.f32 %v590, %v692
        %694 = vmatmul.bf16.gmra.mxu0 %v494
        %v695 = vpop.f32.mrf.mxu0
        %v696 = vadd.f32 %v593, %v695
        %v697 = vpop.f32.mrf.mxu0
        %v698 = vadd.f32 %v595, %v697
        %699 = vmatmul.bf16.gmra.mxu0 %v495
        %v700 = vpop.f32.mrf.mxu0
        %v701 = vadd.f32 %v598, %v700
        %v702 = vpop.f32.mrf.mxu0
        %v703 = vadd.f32 %v600, %v702
        %704 = vdwg.mxu0
        %v705 = vld [vmem:[%s293 + $0x10] sm:$0xf]
        %v706 = vld [vmem:[%s293 + $0x14] sm:$0xf]
        %v707 = vld [vmem:[%s293 + $0x18] sm:$0xf]
        %v708 = vld [vmem:[%s293 + $0x1c] sm:$0xf]
        %v709 = vld [vmem:[%s293 + $0x20] sm:$0xf]
        %v710 = vld [vmem:[%s293 + $0x24] sm:$0xf]
        %v711 = vld [vmem:[%s293 + $0x28] sm:$0xf]
        %v712 = vld [vmem:[%s293 + $0x2c] sm:$0xf]
        %v713 = vld [vmem:[%s293 + $0x30] sm:$0xf]
        %v714 = vld [vmem:[%s293 + $0x34] sm:$0xf]
        %v715 = vld [vmem:[%s293 + $0x38] sm:$0xf]
        %v716 = vld [vmem:[%s293 + $0x3c] sm:$0xf]
        %v717 = vld [vmem:[%s293 + $0x40] sm:$0xf]
        %v718 = vld [vmem:[%s293 + $0x44] sm:$0xf]
        %v719 = vld [vmem:[%s293 + $0x48] sm:$0xf]
        %v720 = vld [vmem:[%s293 + $0x4c] sm:$0xf]
        %s721 = scalar_lea.vmem [#allocation8], 128
        %v722 = vld [vmem:[%s721] sm:$0xf]
        %v723 = vld [vmem:[%s721 + $0x4] sm:$0xf]
        %v724 = vld [vmem:[%s721 + $0x8] sm:$0xf]
        %v725 = vld [vmem:[%s721 + $0xc] sm:$0xf]
        %v726 = vld [vmem:[%s721 + $0x10] sm:$0xf]
        %v727 = vld [vmem:[%s721 + $0x14] sm:$0xf]
        %v728 = vld [vmem:[%s721 + $0x18] sm:$0xf]
        %v729 = vld [vmem:[%s721 + $0x1c] sm:$0xf]
        %v730 = vld [vmem:[%s721 + $0x20] sm:$0xf]
        %v731 = vld [vmem:[%s721 + $0x24] sm:$0xf]
        %v732 = vld [vmem:[%s721 + $0x28] sm:$0xf]
        %v733 = vld [vmem:[%s721 + $0x2c] sm:$0xf]
        %v734 = vld [vmem:[%s721 + $0x30] sm:$0xf]
        %v735 = vld [vmem:[%s721 + $0x34] sm:$0xf]
        %v736 = vld [vmem:[%s721 + $0x38] sm:$0xf]
        %v737 = vld [vmem:[%s721 + $0x3c] sm:$0xf]
        %v754 = vunpack.c.l.b16 %v705
        %v755 = vunpack.c.l.b16 %v706
        %v756 = vunpack.c.l.b16 %v707
        %v757 = vunpack.c.l.b16 %v708
        %v758 = vunpack.c.l.b16 %v709
        %v759 = vunpack.c.l.b16 %v710
        %v760 = vunpack.c.l.b16 %v711
        %v761 = vunpack.c.l.b16 %v712
        %v762 = vunpack.c.l.b16 %v713
        %v763 = vunpack.c.l.b16 %v714
        %v764 = vunpack.c.l.b16 %v715
        %v765 = vunpack.c.l.b16 %v716
        %v766 = vunpack.c.l.b16 %v717
        %v767 = vunpack.c.l.b16 %v718
        %v768 = vunpack.c.l.b16 %v719
        %v769 = vunpack.c.l.b16 %v720
        %v770 = vpack.c.b16 %v755, %v754
        %v771 = vpack.c.b16 %v757, %v756
        %v772 = vpack.c.b16 %v759, %v758
        %v773 = vpack.c.b16 %v761, %v760
        %v774 = vpack.c.b16 %v763, %v762
        %v775 = vpack.c.b16 %v765, %v764
        %v776 = vpack.c.b16 %v767, %v766
        %v777 = vpack.c.b16 %v769, %v768
        %v802 = vunpack.c.l.b16 %v722
        %v803 = vunpack.c.l.b16 %v723
        %v804 = vunpack.c.l.b16 %v724
        %v805 = vunpack.c.l.b16 %v725
        %v806 = vunpack.c.l.b16 %v726
        %v807 = vunpack.c.l.b16 %v727
        %v808 = vunpack.c.l.b16 %v728
        %v809 = vunpack.c.l.b16 %v729
        %v810 = vunpack.c.l.b16 %v730
        %v811 = vunpack.c.l.b16 %v731
        %v812 = vunpack.c.l.b16 %v732
        %v813 = vunpack.c.l.b16 %v733
        %v814 = vunpack.c.l.b16 %v734
        %v815 = vunpack.c.l.b16 %v735
        %v816 = vunpack.c.l.b16 %v736
        %v817 = vunpack.c.l.b16 %v737
        %v818 = vpack.c.b16 %v803, %v802
        %v819 = vpack.c.b16 %v805, %v804
        %v820 = vpack.c.b16 %v807, %v806
        %v821 = vpack.c.b16 %v809, %v808
        %v822 = vpack.c.b16 %v811, %v810
        %v823 = vpack.c.b16 %v813, %v812
        %v824 = vpack.c.b16 %v815, %v814
        %v825 = vpack.c.b16 %v817, %v816
        %834 = vmatpush.bf16.msra.mxu0 %v825
        %835 = vmatpush.bf16.msra.mxu0 %v824
        %836 = vmatpush.bf16.msra.mxu0 %v823
        %837 = vmatpush.bf16.msra.mxu0 %v822
        %838 = vmatpush.bf16.msra.mxu0 %v821
        %839 = vmatpush.bf16.msra.mxu0 %v820
        %840 = vmatpush.bf16.msra.mxu0 %v819
        %841 = vmatpush.bf16.msra.mxu0 %v818
        %842 = vmatmul.bf16.gmra.mxu0 %v770
        %v843 = vpop.f32.mrf.mxu0
        %v844 = vadd.f32 0.0, %v843
        %v845 = vpop.f32.mrf.mxu0
        %v846 = vadd.f32 0.0, %v845
        %847 = vmatmul.bf16.gmra.mxu0 %v771
        %v848 = vpop.f32.mrf.mxu0
        %v849 = vadd.f32 0.0, %v848
        %v850 = vpop.f32.mrf.mxu0
        %v851 = vadd.f32 0.0, %v850
        %852 = vmatmul.bf16.gmra.mxu0 %v772
        %v853 = vpop.f32.mrf.mxu0
        %v854 = vadd.f32 0.0, %v853
        %v855 = vpop.f32.mrf.mxu0
        %v856 = vadd.f32 0.0, %v855
        %857 = vmatmul.bf16.gmra.mxu0 %v773
        %v858 = vpop.f32.mrf.mxu0
        %v859 = vadd.f32 0.0, %v858
        %v860 = vpop.f32.mrf.mxu0
        %v861 = vadd.f32 0.0, %v860
        %862 = vmatmul.bf16.gmra.mxu0 %v774
        %v863 = vpop.f32.mrf.mxu0
        %v864 = vadd.f32 0.0, %v863
        %v865 = vpop.f32.mrf.mxu0
        %v866 = vadd.f32 0.0, %v865
        %867 = vmatmul.bf16.gmra.mxu0 %v775
        %v868 = vpop.f32.mrf.mxu0
        %v869 = vadd.f32 0.0, %v868
        %v870 = vpop.f32.mrf.mxu0
        %v871 = vadd.f32 0.0, %v870
        %872 = vmatmul.bf16.gmra.mxu0 %v776
        %v873 = vpop.f32.mrf.mxu0
        %v874 = vadd.f32 0.0, %v873
        %v875 = vpop.f32.mrf.mxu0
        %v876 = vadd.f32 0.0, %v875
        %877 = vmatmul.bf16.gmra.mxu0 %v777
        %v878 = vpop.f32.mrf.mxu0
        %v879 = vadd.f32 0.0, %v878
        %v880 = vpop.f32.mrf.mxu0
        %v881 = vadd.f32 0.0, %v880
        %882 = vdwg.mxu0
        %v883 = vadd.f32 %v666, %v844
        %v884 = vadd.f32 %v668, %v846
        %v885 = vadd.f32 %v671, %v849
        %v886 = vadd.f32 %v673, %v851
        %v887 = vadd.f32 %v676, %v854
        %v888 = vadd.f32 %v678, %v856
        %v889 = vadd.f32 %v681, %v859
        %v890 = vadd.f32 %v683, %v861
        %v891 = vadd.f32 %v686, %v864
        %v892 = vadd.f32 %v688, %v866
        %v893 = vadd.f32 %v691, %v869
        %v894 = vadd.f32 %v693, %v871
        %v895 = vadd.f32 %v696, %v874
        %v896 = vadd.f32 %v698, %v876
        %v897 = vadd.f32 %v701, %v879
        %v898 = vadd.f32 %v703, %v881
        %v899 = vld [vmem:[%s293 + $0x18] sm:$0xf]
        %v900 = vld [vmem:[%s293 + $0x1c] sm:$0xf]
        %v901 = vld [vmem:[%s293 + $0x20] sm:$0xf]
        %v902 = vld [vmem:[%s293 + $0x24] sm:$0xf]
        %v903 = vld [vmem:[%s293 + $0x28] sm:$0xf]
        %v904 = vld [vmem:[%s293 + $0x2c] sm:$0xf]
        %v905 = vld [vmem:[%s293 + $0x30] sm:$0xf]
        %v906 = vld [vmem:[%s293 + $0x34] sm:$0xf]
        %v907 = vld [vmem:[%s293 + $0x38] sm:$0xf]
        %v908 = vld [vmem:[%s293 + $0x3c] sm:$0xf]
        %v909 = vld [vmem:[%s293 + $0x40] sm:$0xf]
        %v910 = vld [vmem:[%s293 + $0x44] sm:$0xf]
        %v911 = vld [vmem:[%s293 + $0x48] sm:$0xf]
        %v912 = vld [vmem:[%s293 + $0x4c] sm:$0xf]
        %v913 = vld [vmem:[%s293 + $0x50] sm:$0xf]
        %v914 = vld [vmem:[%s293 + $0x54] sm:$0xf]
        %s915 = scalar_lea.vmem [#allocation8], 192
        %v916 = vld [vmem:[%s915] sm:$0xf]
        %v917 = vld [vmem:[%s915 + $0x4] sm:$0xf]
        %v918 = vld [vmem:[%s915 + $0x8] sm:$0xf]
        %v919 = vld [vmem:[%s915 + $0xc] sm:$0xf]
        %v920 = vld [vmem:[%s915 + $0x10] sm:$0xf]
        %v921 = vld [vmem:[%s915 + $0x14] sm:$0xf]
        %v922 = vld [vmem:[%s915 + $0x18] sm:$0xf]
        %v923 = vld [vmem:[%s915 + $0x1c] sm:$0xf]
        %v924 = vld [vmem:[%s915 + $0x20] sm:$0xf]
        %v925 = vld [vmem:[%s915 + $0x24] sm:$0xf]
        %v926 = vld [vmem:[%s915 + $0x28] sm:$0xf]
        %v927 = vld [vmem:[%s915 + $0x2c] sm:$0xf]
        %v928 = vld [vmem:[%s915 + $0x30] sm:$0xf]
        %v929 = vld [vmem:[%s915 + $0x34] sm:$0xf]
        %v930 = vld [vmem:[%s915 + $0x38] sm:$0xf]
        %v931 = vld [vmem:[%s915 + $0x3c] sm:$0xf]
        %v948 = vunpack.c.l.b16 %v899
        %v949 = vunpack.c.l.b16 %v900
        %v950 = vunpack.c.l.b16 %v901
        %v951 = vunpack.c.l.b16 %v902
        %v952 = vunpack.c.l.b16 %v903
        %v953 = vunpack.c.l.b16 %v904
        %v954 = vunpack.c.l.b16 %v905
        %v955 = vunpack.c.l.b16 %v906
        %v956 = vunpack.c.l.b16 %v907
        %v957 = vunpack.c.l.b16 %v908
        %v958 = vunpack.c.l.b16 %v909
        %v959 = vunpack.c.l.b16 %v910
        %v960 = vunpack.c.l.b16 %v911
        %v961 = vunpack.c.l.b16 %v912
        %v962 = vunpack.c.l.b16 %v913
        %v963 = vunpack.c.l.b16 %v914
        %v964 = vpack.c.b16 %v949, %v948
        %v965 = vpack.c.b16 %v951, %v950
        %v966 = vpack.c.b16 %v953, %v952
        %v967 = vpack.c.b16 %v955, %v954
        %v968 = vpack.c.b16 %v957, %v956
        %v969 = vpack.c.b16 %v959, %v958
        %v970 = vpack.c.b16 %v961, %v960
        %v971 = vpack.c.b16 %v963, %v962
        %v996 = vunpack.c.l.b16 %v916
        %v997 = vunpack.c.l.b16 %v917
        %v998 = vunpack.c.l.b16 %v918
        %v999 = vunpack.c.l.b16 %v919
        %v1000 = vunpack.c.l.b16 %v920
        %v1001 = vunpack.c.l.b16 %v921
        %v1002 = vunpack.c.l.b16 %v922
        %v1003 = vunpack.c.l.b16 %v923
        %v1004 = vunpack.c.l.b16 %v924
        %v1005 = vunpack.c.l.b16 %v925
        %v1006 = vunpack.c.l.b16 %v926
        %v1007 = vunpack.c.l.b16 %v927
        %v1008 = vunpack.c.l.b16 %v928
        %v1009 = vunpack.c.l.b16 %v929
        %v1010 = vunpack.c.l.b16 %v930
        %v1011 = vunpack.c.l.b16 %v931
        %v1012 = vpack.c.b16 %v997, %v996
        %v1013 = vpack.c.b16 %v999, %v998
        %v1014 = vpack.c.b16 %v1001, %v1000
        %v1015 = vpack.c.b16 %v1003, %v1002
        %v1016 = vpack.c.b16 %v1005, %v1004
        %v1017 = vpack.c.b16 %v1007, %v1006
        %v1018 = vpack.c.b16 %v1009, %v1008
        %v1019 = vpack.c.b16 %v1011, %v1010
        %1028 = vmatpush.bf16.msra.mxu0 %v1019
        %1029 = vmatpush.bf16.msra.mxu0 %v1018
        %1030 = vmatpush.bf16.msra.mxu0 %v1017
        %1031 = vmatpush.bf16.msra.mxu0 %v1016
        %1032 = vmatpush.bf16.msra.mxu0 %v1015
        %1033 = vmatpush.bf16.msra.mxu0 %v1014
        %1034 = vmatpush.bf16.msra.mxu0 %v1013
        %1035 = vmatpush.bf16.msra.mxu0 %v1012
        %1036 = vmatmul.bf16.gmra.mxu0 %v964
        %v1037 = vpop.f32.mrf.mxu0
        %v1038 = vadd.f32 0.0, %v1037
        %v1039 = vpop.f32.mrf.mxu0
        %v1040 = vadd.f32 0.0, %v1039
        %1041 = vmatmul.bf16.gmra.mxu0 %v965
        %v1042 = vpop.f32.mrf.mxu0
        %v1043 = vadd.f32 0.0, %v1042
        %v1044 = vpop.f32.mrf.mxu0
        %v1045 = vadd.f32 0.0, %v1044
        %1046 = vmatmul.bf16.gmra.mxu0 %v966
        %v1047 = vpop.f32.mrf.mxu0
        %v1048 = vadd.f32 0.0, %v1047
        %v1049 = vpop.f32.mrf.mxu0
        %v1050 = vadd.f32 0.0, %v1049
        %1051 = vmatmul.bf16.gmra.mxu0 %v967
        %v1052 = vpop.f32.mrf.mxu0
        %v1053 = vadd.f32 0.0, %v1052
        %v1054 = vpop.f32.mrf.mxu0
        %v1055 = vadd.f32 0.0, %v1054
        %1056 = vmatmul.bf16.gmra.mxu0 %v968
        %v1057 = vpop.f32.mrf.mxu0
        %v1058 = vadd.f32 0.0, %v1057
        %v1059 = vpop.f32.mrf.mxu0
        %v1060 = vadd.f32 0.0, %v1059
        %1061 = vmatmul.bf16.gmra.mxu0 %v969
        %v1062 = vpop.f32.mrf.mxu0
        %v1063 = vadd.f32 0.0, %v1062
        %v1064 = vpop.f32.mrf.mxu0
        %v1065 = vadd.f32 0.0, %v1064
        %1066 = vmatmul.bf16.gmra.mxu0 %v970
        %v1067 = vpop.f32.mrf.mxu0
        %v1068 = vadd.f32 0.0, %v1067
        %v1069 = vpop.f32.mrf.mxu0
        %v1070 = vadd.f32 0.0, %v1069
        %1071 = vmatmul.bf16.gmra.mxu0 %v971
        %v1072 = vpop.f32.mrf.mxu0
        %v1073 = vadd.f32 0.0, %v1072
        %v1074 = vpop.f32.mrf.mxu0
        %v1075 = vadd.f32 0.0, %v1074
        %1076 = vdwg.mxu0
        %v1077 = vadd.f32 %v883, %v1038
        %v1078 = vadd.f32 %v884, %v1040
        %v1079 = vadd.f32 %v885, %v1043
        %v1080 = vadd.f32 %v886, %v1045
        %v1081 = vadd.f32 %v887, %v1048
        %v1082 = vadd.f32 %v888, %v1050
        %v1083 = vadd.f32 %v889, %v1053
        %v1084 = vadd.f32 %v890, %v1055
        %v1085 = vadd.f32 %v891, %v1058
        %v1086 = vadd.f32 %v892, %v1060
        %v1087 = vadd.f32 %v893, %v1063
        %v1088 = vadd.f32 %v894, %v1065
        %v1089 = vadd.f32 %v895, %v1068
        %v1090 = vadd.f32 %v896, %v1070
        %v1091 = vadd.f32 %v897, %v1073
        %v1092 = vadd.f32 %v898, %v1075
        %v1093 = vld [vmem:[%s293 + $0x20] sm:$0xf]
        %v1094 = vld [vmem:[%s293 + $0x24] sm:$0xf]
        %v1095 = vld [vmem:[%s293 + $0x28] sm:$0xf]
        %v1096 = vld [vmem:[%s293 + $0x2c] sm:$0xf]
        %v1097 = vld [vmem:[%s293 + $0x30] sm:$0xf]
        %v1098 = vld [vmem:[%s293 + $0x34] sm:$0xf]
        %v1099 = vld [vmem:[%s293 + $0x38] sm:$0xf]
        %v1100 = vld [vmem:[%s293 + $0x3c] sm:$0xf]
        %v1101 = vld [vmem:[%s293 + $0x40] sm:$0xf]
        %v1102 = vld [vmem:[%s293 + $0x44] sm:$0xf]
        %v1103 = vld [vmem:[%s293 + $0x48] sm:$0xf]
        %v1104 = vld [vmem:[%s293 + $0x4c] sm:$0xf]
        %v1105 = vld [vmem:[%s293 + $0x50] sm:$0xf]
        %v1106 = vld [vmem:[%s293 + $0x54] sm:$0xf]
        %v1107 = vld [vmem:[%s293 + $0x58] sm:$0xf]
        %v1108 = vld [vmem:[%s293 + $0x5c] sm:$0xf]
        %s1109 = scalar_lea.vmem [#allocation8], 256
        %v1110 = vld [vmem:[%s1109] sm:$0xf]
        %v1111 = vld [vmem:[%s1109 + $0x4] sm:$0xf]
        %v1112 = vld [vmem:[%s1109 + $0x8] sm:$0xf]
        %v1113 = vld [vmem:[%s1109 + $0xc] sm:$0xf]
        %v1114 = vld [vmem:[%s1109 + $0x10] sm:$0xf]
        %v1115 = vld [vmem:[%s1109 + $0x14] sm:$0xf]
        %v1116 = vld [vmem:[%s1109 + $0x18] sm:$0xf]
        %v1117 = vld [vmem:[%s1109 + $0x1c] sm:$0xf]
        %v1118 = vld [vmem:[%s1109 + $0x20] sm:$0xf]
        %v1119 = vld [vmem:[%s1109 + $0x24] sm:$0xf]
        %v1120 = vld [vmem:[%s1109 + $0x28] sm:$0xf]
        %v1121 = vld [vmem:[%s1109 + $0x2c] sm:$0xf]
        %v1122 = vld [vmem:[%s1109 + $0x30] sm:$0xf]
        %v1123 = vld [vmem:[%s1109 + $0x34] sm:$0xf]
        %v1124 = vld [vmem:[%s1109 + $0x38] sm:$0xf]
        %v1125 = vld [vmem:[%s1109 + $0x3c] sm:$0xf]
        %v1142 = vunpack.c.l.b16 %v1093
        %v1143 = vunpack.c.l.b16 %v1094
        %v1144 = vunpack.c.l.b16 %v1095
        %v1145 = vunpack.c.l.b16 %v1096
        %v1146 = vunpack.c.l.b16 %v1097
        %v1147 = vunpack.c.l.b16 %v1098
        %v1148 = vunpack.c.l.b16 %v1099
        %v1149 = vunpack.c.l.b16 %v1100
        %v1150 = vunpack.c.l.b16 %v1101
        %v1151 = vunpack.c.l.b16 %v1102
        %v1152 = vunpack.c.l.b16 %v1103
        %v1153 = vunpack.c.l.b16 %v1104
        %v1154 = vunpack.c.l.b16 %v1105
        %v1155 = vunpack.c.l.b16 %v1106
        %v1156 = vunpack.c.l.b16 %v1107
        %v1157 = vunpack.c.l.b16 %v1108
        %v1158 = vpack.c.b16 %v1143, %v1142
        %v1159 = vpack.c.b16 %v1145, %v1144
        %v1160 = vpack.c.b16 %v1147, %v1146
        %v1161 = vpack.c.b16 %v1149, %v1148
        %v1162 = vpack.c.b16 %v1151, %v1150
        %v1163 = vpack.c.b16 %v1153, %v1152
        %v1164 = vpack.c.b16 %v1155, %v1154
        %v1165 = vpack.c.b16 %v1157, %v1156
        %v1190 = vunpack.c.l.b16 %v1110
        %v1191 = vunpack.c.l.b16 %v1111
        %v1192 = vunpack.c.l.b16 %v1112
        %v1193 = vunpack.c.l.b16 %v1113
        %v1194 = vunpack.c.l.b16 %v1114
        %v1195 = vunpack.c.l.b16 %v1115
        %v1196 = vunpack.c.l.b16 %v1116
        %v1197 = vunpack.c.l.b16 %v1117
        %v1198 = vunpack.c.l.b16 %v1118
        %v1199 = vunpack.c.l.b16 %v1119
        %v1200 = vunpack.c.l.b16 %v1120
        %v1201 = vunpack.c.l.b16 %v1121
        %v1202 = vunpack.c.l.b16 %v1122
        %v1203 = vunpack.c.l.b16 %v1123
        %v1204 = vunpack.c.l.b16 %v1124
        %v1205 = vunpack.c.l.b16 %v1125
        %v1206 = vpack.c.b16 %v1191, %v1190
        %v1207 = vpack.c.b16 %v1193, %v1192
        %v1208 = vpack.c.b16 %v1195, %v1194
        %v1209 = vpack.c.b16 %v1197, %v1196
        %v1210 = vpack.c.b16 %v1199, %v1198
        %v1211 = vpack.c.b16 %v1201, %v1200
        %v1212 = vpack.c.b16 %v1203, %v1202
        %v1213 = vpack.c.b16 %v1205, %v1204
        %1222 = vmatpush.bf16.msra.mxu0 %v1213
        %1223 = vmatpush.bf16.msra.mxu0 %v1212
        %1224 = vmatpush.bf16.msra.mxu0 %v1211
        %1225 = vmatpush.bf16.msra.mxu0 %v1210
        %1226 = vmatpush.bf16.msra.mxu0 %v1209
        %1227 = vmatpush.bf16.msra.mxu0 %v1208
        %1228 = vmatpush.bf16.msra.mxu0 %v1207
        %1229 = vmatpush.bf16.msra.mxu0 %v1206
        %1230 = vmatmul.bf16.gmra.mxu0 %v1158
        %v1231 = vpop.f32.mrf.mxu0
        %v1232 = vadd.f32 0.0, %v1231
        %v1233 = vpop.f32.mrf.mxu0
        %v1234 = vadd.f32 0.0, %v1233
        %1235 = vmatmul.bf16.gmra.mxu0 %v1159
        %v1236 = vpop.f32.mrf.mxu0
        %v1237 = vadd.f32 0.0, %v1236
        %v1238 = vpop.f32.mrf.mxu0
        %v1239 = vadd.f32 0.0, %v1238
        %1240 = vmatmul.bf16.gmra.mxu0 %v1160
        %v1241 = vpop.f32.mrf.mxu0
        %v1242 = vadd.f32 0.0, %v1241
        %v1243 = vpop.f32.mrf.mxu0
        %v1244 = vadd.f32 0.0, %v1243
        %1245 = vmatmul.bf16.gmra.mxu0 %v1161
        %v1246 = vpop.f32.mrf.mxu0
        %v1247 = vadd.f32 0.0, %v1246
        %v1248 = vpop.f32.mrf.mxu0
        %v1249 = vadd.f32 0.0, %v1248
        %1250 = vmatmul.bf16.gmra.mxu0 %v1162
        %v1251 = vpop.f32.mrf.mxu0
        %v1252 = vadd.f32 0.0, %v1251
        %v1253 = vpop.f32.mrf.mxu0
        %v1254 = vadd.f32 0.0, %v1253
        %1255 = vmatmul.bf16.gmra.mxu0 %v1163
        %v1256 = vpop.f32.mrf.mxu0
        %v1257 = vadd.f32 0.0, %v1256
        %v1258 = vpop.f32.mrf.mxu0
        %v1259 = vadd.f32 0.0, %v1258
        %1260 = vmatmul.bf16.gmra.mxu0 %v1164
        %v1261 = vpop.f32.mrf.mxu0
        %v1262 = vadd.f32 0.0, %v1261
        %v1263 = vpop.f32.mrf.mxu0
        %v1264 = vadd.f32 0.0, %v1263
        %1265 = vmatmul.bf16.gmra.mxu0 %v1165
        %v1266 = vpop.f32.mrf.mxu0
        %v1267 = vadd.f32 0.0, %v1266
        %v1268 = vpop.f32.mrf.mxu0
        %v1269 = vadd.f32 0.0, %v1268
        %1270 = vdwg.mxu0
        %v1271 = vadd.f32 %v1077, %v1232
        %v1272 = vadd.f32 %v1078, %v1234
        %v1273 = vadd.f32 %v1079, %v1237
        %v1274 = vadd.f32 %v1080, %v1239
        %v1275 = vadd.f32 %v1081, %v1242
        %v1276 = vadd.f32 %v1082, %v1244
        %v1277 = vadd.f32 %v1083, %v1247
        %v1278 = vadd.f32 %v1084, %v1249
        %v1279 = vadd.f32 %v1085, %v1252
        %v1280 = vadd.f32 %v1086, %v1254
        %v1281 = vadd.f32 %v1087, %v1257
        %v1282 = vadd.f32 %v1088, %v1259
        %v1283 = vadd.f32 %v1089, %v1262
        %v1284 = vadd.f32 %v1090, %v1264
        %v1285 = vadd.f32 %v1091, %v1267
        %v1286 = vadd.f32 %v1092, %v1269
        %v1288 = vperm.slane %v352, 0
        %v1290 = vadd.f32 %v1271, %v1288
        %v1291 = vadd.f32 %v1272, %v1288
        %v1292 = vadd.f32 %v1273, %v1288
        %v1293 = vadd.f32 %v1274, %v1288
        %v1294 = vadd.f32 %v1275, %v1288
        %v1295 = vadd.f32 %v1276, %v1288
        %v1296 = vadd.f32 %v1277, %v1288
        %v1297 = vadd.f32 %v1278, %v1288
        %v1298 = vadd.f32 %v1279, %v1288
        %v1299 = vadd.f32 %v1280, %v1288
        %v1300 = vadd.f32 %v1281, %v1288
        %v1301 = vadd.f32 %v1282, %v1288
        %v1302 = vadd.f32 %v1283, %v1288
        %v1303 = vadd.f32 %v1284, %v1288
        %v1304 = vadd.f32 %v1285, %v1288
        %v1305 = vadd.f32 %v1286, %v1288
        %v1306 = vmax.f32 %v1290, 0.0
        %v1307 = vmax.f32 %v1291, 0.0
        %v1308 = vmax.f32 %v1292, 0.0
        %v1309 = vmax.f32 %v1293, 0.0
        %v1310 = vmax.f32 %v1294, 0.0
        %v1311 = vmax.f32 %v1295, 0.0
        %v1312 = vmax.f32 %v1296, 0.0
        %v1313 = vmax.f32 %v1297, 0.0
        %v1314 = vmax.f32 %v1298, 0.0
        %v1315 = vmax.f32 %v1299, 0.0
        %v1316 = vmax.f32 %v1300, 0.0
        %v1317 = vmax.f32 %v1301, 0.0
        %v1318 = vmax.f32 %v1302, 0.0
        %v1319 = vmax.f32 %v1303, 0.0
        %v1320 = vmax.f32 %v1304, 0.0
        %v1321 = vmax.f32 %v1305, 0.0
        %v1322 = vunpack.c.l.bf16 %v1093
        %v1323 = vunpack.c.l.bf16 %v1094
        %v1324 = vunpack.c.l.bf16 %v1095
        %v1325 = vunpack.c.l.bf16 %v1096
        %v1326 = vunpack.c.l.bf16 %v1097
        %v1327 = vunpack.c.l.bf16 %v1098
        %v1328 = vunpack.c.l.bf16 %v1099
        %v1329 = vunpack.c.l.bf16 %v1100
        %v1330 = vunpack.c.l.bf16 %v1101
        %v1331 = vunpack.c.l.bf16 %v1102
        %v1332 = vunpack.c.l.bf16 %v1103
        %v1333 = vunpack.c.l.bf16 %v1104
        %v1334 = vunpack.c.l.bf16 %v1105
        %v1335 = vunpack.c.l.bf16 %v1106
        %v1336 = vunpack.c.l.bf16 %v1107
        %v1337 = vunpack.c.l.bf16 %v1108
        %v1338 = vadd.f32 %v1306, %v1322
        %v1339 = vadd.f32 %v1307, %v1323
        %v1340 = vadd.f32 %v1308, %v1324
        %v1341 = vadd.f32 %v1309, %v1325
        %v1342 = vadd.f32 %v1310, %v1326
        %v1343 = vadd.f32 %v1311, %v1327
        %v1344 = vadd.f32 %v1312, %v1328
        %v1345 = vadd.f32 %v1313, %v1329
        %v1346 = vadd.f32 %v1314, %v1330
        %v1347 = vadd.f32 %v1315, %v1331
        %v1348 = vadd.f32 %v1316, %v1332
        %v1349 = vadd.f32 %v1317, %v1333
        %v1350 = vadd.f32 %v1318, %v1334
        %v1351 = vadd.f32 %v1319, %v1335
        %v1352 = vadd.f32 %v1320, %v1336
        %v1353 = vadd.f32 %v1321, %v1337
        %v1354 = vsel %vm357, %v1338, 0.0
        %v1355 = vsel %vm357, %v1339, 0.0
        %v1356 = vsel %vm357, %v1340, 0.0
        %v1357 = vsel %vm357, %v1341, 0.0
        %v1358 = vsel %vm357, %v1342, 0.0
        %v1359 = vsel %vm357, %v1343, 0.0
        %v1360 = vsel %vm357, %v1344, 0.0
        %v1361 = vsel %vm357, %v1345, 0.0
        %v1362 = vsel %vm357, %v1346, 0.0
        %v1363 = vsel %vm357, %v1347, 0.0
        %v1364 = vsel %vm357, %v1348, 0.0
        %v1365 = vsel %vm357, %v1349, 0.0
        %v1366 = vsel %vm357, %v1350, 0.0
        %v1367 = vsel %vm357, %v1351, 0.0
        %v1368 = vsel %vm357, %v1352, 0.0
        %v1369 = vsel %vm357, %v1353, 0.0
        %1370 = vadd.xlane.f32.xlu0 %v1354
        %v1371 = vpop.xlane.xlu0 %1370
        %1372 = vadd.xlane.f32.xlu0 %v1355
        %v1373 = vpop.xlane.xlu0 %1372
        %1374 = vadd.xlane.f32.xlu0 %v1356
        %v1375 = vpop.xlane.xlu0 %1374
        %1376 = vadd.xlane.f32.xlu0 %v1357
        %v1377 = vpop.xlane.xlu0 %1376
        %1378 = vadd.xlane.f32.xlu0 %v1358
        %v1379 = vpop.xlane.xlu0 %1378
        %1380 = vadd.xlane.f32.xlu0 %v1359
        %v1381 = vpop.xlane.xlu0 %1380
        %1382 = vadd.xlane.f32.xlu0 %v1360
        %v1383 = vpop.xlane.xlu0 %1382
        %1384 = vadd.xlane.f32.xlu0 %v1361
        %v1385 = vpop.xlane.xlu0 %1384
        %1386 = vadd.xlane.f32.xlu0 %v1362
        %v1387 = vpop.xlane.xlu0 %1386
        %1388 = vadd.xlane.f32.xlu0 %v1363
        %v1389 = vpop.xlane.xlu0 %1388
        %1390 = vadd.xlane.f32.xlu0 %v1364
        %v1391 = vpop.xlane.xlu0 %1390
        %1392 = vadd.xlane.f32.xlu0 %v1365
        %v1393 = vpop.xlane.xlu0 %1392
        %1394 = vadd.xlane.f32.xlu0 %v1366
        %v1395 = vpop.xlane.xlu0 %1394
        %1396 = vadd.xlane.f32.xlu0 %v1367
        %v1397 = vpop.xlane.xlu0 %1396
        %1398 = vadd.xlane.f32.xlu0 %v1368
        %v1399 = vpop.xlane.xlu0 %1398
        %1400 = vadd.xlane.f32.xlu0 %v1369
        %v1401 = vpop.xlane.xlu0 %1400
        %v1402 = vmul.f32 %v1371, 0.03125
        %v1403 = vmul.f32 %v1373, 0.03125
        %v1404 = vmul.f32 %v1375, 0.03125
        %v1405 = vmul.f32 %v1377, 0.03125
        %v1406 = vmul.f32 %v1379, 0.03125
        %v1407 = vmul.f32 %v1381, 0.03125
        %v1408 = vmul.f32 %v1383, 0.03125
        %v1409 = vmul.f32 %v1385, 0.03125
        %v1410 = vmul.f32 %v1387, 0.03125
        %v1411 = vmul.f32 %v1389, 0.03125
        %v1412 = vmul.f32 %v1391, 0.03125
        %v1413 = vmul.f32 %v1393, 0.03125
        %v1414 = vmul.f32 %v1395, 0.03125
        %v1415 = vmul.f32 %v1397, 0.03125
        %v1416 = vmul.f32 %v1399, 0.03125
        %v1417 = vmul.f32 %v1401, 0.03125
        %v1418 = vsub.f32 %v1354, %v1402
        %v1419 = vsub.f32 %v1355, %v1403
        %v1420 = vsub.f32 %v1356, %v1404
        %v1421 = vsub.f32 %v1357, %v1405
        %v1422 = vsub.f32 %v1358, %v1406
        %v1423 = vsub.f32 %v1359, %v1407
        %v1424 = vsub.f32 %v1360, %v1408
        %v1425 = vsub.f32 %v1361, %v1409
        %v1426 = vsub.f32 %v1362, %v1410
        %v1427 = vsub.f32 %v1363, %v1411
        %v1428 = vsub.f32 %v1364, %v1412
        %v1429 = vsub.f32 %v1365, %v1413
        %v1430 = vsub.f32 %v1366, %v1414
        %v1431 = vsub.f32 %v1367, %v1415
        %v1432 = vsub.f32 %v1368, %v1416
        %v1433 = vsub.f32 %v1369, %v1417
        %v1434 = vsel %vm357, %v1418, 0.0
        %v1435 = vsel %vm357, %v1419, 0.0
        %v1436 = vsel %vm357, %v1420, 0.0
        %v1437 = vsel %vm357, %v1421, 0.0
        %v1438 = vsel %vm357, %v1422, 0.0
        %v1439 = vsel %vm357, %v1423, 0.0
        %v1440 = vsel %vm357, %v1424, 0.0
        %v1441 = vsel %vm357, %v1425, 0.0
        %v1442 = vsel %vm357, %v1426, 0.0
        %v1443 = vsel %vm357, %v1427, 0.0
        %v1444 = vsel %vm357, %v1428, 0.0
        %v1445 = vsel %vm357, %v1429, 0.0
        %v1446 = vsel %vm357, %v1430, 0.0
        %v1447 = vsel %vm357, %v1431, 0.0
        %v1448 = vsel %vm357, %v1432, 0.0
        %v1449 = vsel %vm357, %v1433, 0.0
        %v1450 = vmul.f32 %v1434, %v1434
        %v1451 = vmul.f32 %v1435, %v1435
        %v1452 = vmul.f32 %v1436, %v1436
        %v1453 = vmul.f32 %v1437, %v1437
        %v1454 = vmul.f32 %v1438, %v1438
        %v1455 = vmul.f32 %v1439, %v1439
        %v1456 = vmul.f32 %v1440, %v1440
        %v1457 = vmul.f32 %v1441, %v1441
        %v1458 = vmul.f32 %v1442, %v1442
        %v1459 = vmul.f32 %v1443, %v1443
        %v1460 = vmul.f32 %v1444, %v1444
        %v1461 = vmul.f32 %v1445, %v1445
        %v1462 = vmul.f32 %v1446, %v1446
        %v1463 = vmul.f32 %v1447, %v1447
        %v1464 = vmul.f32 %v1448, %v1448
        %v1465 = vmul.f32 %v1449, %v1449
        %1466 = vadd.xlane.f32.xlu0 %v1450
        %v1467 = vpop.xlane.xlu0 %1466
        %1468 = vadd.xlane.f32.xlu0 %v1451
        %v1469 = vpop.xlane.xlu0 %1468
        %1470 = vadd.xlane.f32.xlu0 %v1452
        %v1471 = vpop.xlane.xlu0 %1470
        %1472 = vadd.xlane.f32.xlu0 %v1453
        %v1473 = vpop.xlane.xlu0 %1472
        %1474 = vadd.xlane.f32.xlu0 %v1454
        %v1475 = vpop.xlane.xlu0 %1474
        %1476 = vadd.xlane.f32.xlu0 %v1455
        %v1477 = vpop.xlane.xlu0 %1476
        %1478 = vadd.xlane.f32.xlu0 %v1456
        %v1479 = vpop.xlane.xlu0 %1478
        %1480 = vadd.xlane.f32.xlu0 %v1457
        %v1481 = vpop.xlane.xlu0 %1480
        %1482 = vadd.xlane.f32.xlu0 %v1458
        %v1483 = vpop.xlane.xlu0 %1482
        %1484 = vadd.xlane.f32.xlu0 %v1459
        %v1485 = vpop.xlane.xlu0 %1484
        %1486 = vadd.xlane.f32.xlu0 %v1460
        %v1487 = vpop.xlane.xlu0 %1486
        %1488 = vadd.xlane.f32.xlu0 %v1461
        %v1489 = vpop.xlane.xlu0 %1488
        %1490 = vadd.xlane.f32.xlu0 %v1462
        %v1491 = vpop.xlane.xlu0 %1490
        %1492 = vadd.xlane.f32.xlu0 %v1463
        %v1493 = vpop.xlane.xlu0 %1492
        %1494 = vadd.xlane.f32.xlu0 %v1464
        %v1495 = vpop.xlane.xlu0 %1494
        %1496 = vadd.xlane.f32.xlu0 %v1465
        %v1497 = vpop.xlane.xlu0 %1496
        %v1498 = vmul.f32 %v1467, 0.03125
        %v1499 = vmul.f32 %v1469, 0.03125
        %v1500 = vmul.f32 %v1471, 0.03125
        %v1501 = vmul.f32 %v1473, 0.03125
        %v1502 = vmul.f32 %v1475, 0.03125
        %v1503 = vmul.f32 %v1477, 0.03125
        %v1504 = vmul.f32 %v1479, 0.03125
        %v1505 = vmul.f32 %v1481, 0.03125
        %v1506 = vmul.f32 %v1483, 0.03125
        %v1507 = vmul.f32 %v1485, 0.03125
        %v1508 = vmul.f32 %v1487, 0.03125
        %v1509 = vmul.f32 %v1489, 0.03125
        %v1510 = vmul.f32 %v1491, 0.03125
        %v1511 = vmul.f32 %v1493, 0.03125
        %v1512 = vmul.f32 %v1495, 0.03125
        %v1513 = vmul.f32 %v1497, 0.03125
        %v1514 = vadd.f32 %v1498, 1e-05
        %v1515 = vadd.f32 %v1499, 1e-05
        %v1516 = vadd.f32 %v1500, 1e-05
        %v1517 = vadd.f32 %v1501, 1e-05
        %v1518 = vadd.f32 %v1502, 1e-05
        %v1519 = vadd.f32 %v1503, 1e-05
        %v1520 = vadd.f32 %v1504, 1e-05
        %v1521 = vadd.f32 %v1505, 1e-05
        %v1522 = vadd.f32 %v1506, 1e-05
        %v1523 = vadd.f32 %v1507, 1e-05
        %v1524 = vadd.f32 %v1508, 1e-05
        %v1525 = vadd.f32 %v1509, 1e-05
        %v1526 = vadd.f32 %v1510, 1e-05
        %v1527 = vadd.f32 %v1511, 1e-05
        %v1528 = vadd.f32 %v1512, 1e-05
        %v1529 = vadd.f32 %v1513, 1e-05
        %v1530 = vrsqrt.pop %v1514
        %v1531 = vmul.f32 %v1530, %v1514
        %v1532 = vmul.f32 %v1531, %v1530
        %v1533 = vmul.f32 0.5, %v1532
        %v1534 = vsub.f32 1.5, %v1533
        %v1535 = vmul.f32 %v1530, %v1534
        %vm1536 = vweird.f32 %v1514
        %vm1537 = vweird.f32 %v1530
        %vm1538 = vmor %vm1536, %vm1537
        %v1539 = vsel %vm1538, %v1530, %v1535
        %v1540 = vrsqrt.pop %v1515
        %v1541 = vmul.f32 %v1540, %v1515
        %v1542 = vmul.f32 %v1541, %v1540
        %v1543 = vmul.f32 0.5, %v1542
        %v1544 = vsub.f32 1.5, %v1543
        %v1545 = vmul.f32 %v1540, %v1544
        %vm1546 = vweird.f32 %v1515
        %vm1547 = vweird.f32 %v1540
        %vm1548 = vmor %vm1546, %vm1547
        %v1549 = vsel %vm1548, %v1540, %v1545
        %v1550 = vrsqrt.pop %v1516
        %v1551 = vmul.f32 %v1550, %v1516
        %v1552 = vmul.f32 %v1551, %v1550
        %v1553 = vmul.f32 0.5, %v1552
        %v1554 = vsub.f32 1.5, %v1553
        %v1555 = vmul.f32 %v1550, %v1554
        %vm1556 = vweird.f32 %v1516
        %vm1557 = vweird.f32 %v1550
        %vm1558 = vmor %vm1556, %vm1557
        %v1559 = vsel %vm1558, %v1550, %v1555
        %v1560 = vrsqrt.pop %v1517
        %v1561 = vmul.f32 %v1560, %v1517
        %v1562 = vmul.f32 %v1561, %v1560
        %v1563 = vmul.f32 0.5, %v1562
        %v1564 = vsub.f32 1.5, %v1563
        %v1565 = vmul.f32 %v1560, %v1564
        %vm1566 = vweird.f32 %v1517
        %vm1567 = vweird.f32 %v1560
        %vm1568 = vmor %vm1566, %vm1567
        %v1569 = vsel %vm1568, %v1560, %v1565
        %v1570 = vrsqrt.pop %v1518
        %v1571 = vmul.f32 %v1570, %v1518
        %v1572 = vmul.f32 %v1571, %v1570
        %v1573 = vmul.f32 0.5, %v1572
        %v1574 = vsub.f32 1.5, %v1573
        %v1575 = vmul.f32 %v1570, %v1574
        %vm1576 = vweird.f32 %v1518
        %vm1577 = vweird.f32 %v1570
        %vm1578 = vmor %vm1576, %vm1577
        %v1579 = vsel %vm1578, %v1570, %v1575
        %v1580 = vrsqrt.pop %v1519
        %v1581 = vmul.f32 %v1580, %v1519
        %v1582 = vmul.f32 %v1581, %v1580
        %v1583 = vmul.f32 0.5, %v1582
        %v1584 = vsub.f32 1.5, %v1583
        %v1585 = vmul.f32 %v1580, %v1584
        %vm1586 = vweird.f32 %v1519
        %vm1587 = vweird.f32 %v1580
        %vm1588 = vmor %vm1586, %vm1587
        %v1589 = vsel %vm1588, %v1580, %v1585
        %v1590 = vrsqrt.pop %v1520
        %v1591 = vmul.f32 %v1590, %v1520
        %v1592 = vmul.f32 %v1591, %v1590
        %v1593 = vmul.f32 0.5, %v1592
        %v1594 = vsub.f32 1.5, %v1593
        %v1595 = vmul.f32 %v1590, %v1594
        %vm1596 = vweird.f32 %v1520
        %vm1597 = vweird.f32 %v1590
        %vm1598 = vmor %vm1596, %vm1597
        %v1599 = vsel %vm1598, %v1590, %v1595
        %v1600 = vrsqrt.pop %v1521
        %v1601 = vmul.f32 %v1600, %v1521
        %v1602 = vmul.f32 %v1601, %v1600
        %v1603 = vmul.f32 0.5, %v1602
        %v1604 = vsub.f32 1.5, %v1603
        %v1605 = vmul.f32 %v1600, %v1604
        %vm1606 = vweird.f32 %v1521
        %vm1607 = vweird.f32 %v1600
        %vm1608 = vmor %vm1606, %vm1607
        %v1609 = vsel %vm1608, %v1600, %v1605
        %v1610 = vrsqrt.pop %v1522
        %v1611 = vmul.f32 %v1610, %v1522
        %v1612 = vmul.f32 %v1611, %v1610
        %v1613 = vmul.f32 0.5, %v1612
        %v1614 = vsub.f32 1.5, %v1613
        %v1615 = vmul.f32 %v1610, %v1614
        %vm1616 = vweird.f32 %v1522
        %vm1617 = vweird.f32 %v1610
        %vm1618 = vmor %vm1616, %vm1617
        %v1619 = vsel %vm1618, %v1610, %v1615
        %v1620 = vrsqrt.pop %v1523
        %v1621 = vmul.f32 %v1620, %v1523
        %v1622 = vmul.f32 %v1621, %v1620
        %v1623 = vmul.f32 0.5, %v1622
        %v1624 = vsub.f32 1.5, %v1623
        %v1625 = vmul.f32 %v1620, %v1624
        %vm1626 = vweird.f32 %v1523
        %vm1627 = vweird.f32 %v1620
        %vm1628 = vmor %vm1626, %vm1627
        %v1629 = vsel %vm1628, %v1620, %v1625
        %v1630 = vrsqrt.pop %v1524
        %v1631 = vmul.f32 %v1630, %v1524
        %v1632 = vmul.f32 %v1631, %v1630
        %v1633 = vmul.f32 0.5, %v1632
        %v1634 = vsub.f32 1.5, %v1633
        %v1635 = vmul.f32 %v1630, %v1634
        %vm1636 = vweird.f32 %v1524
        %vm1637 = vweird.f32 %v1630
        %vm1638 = vmor %vm1636, %vm1637
        %v1639 = vsel %vm1638, %v1630, %v1635
        %v1640 = vrsqrt.pop %v1525
        %v1641 = vmul.f32 %v1640, %v1525
        %v1642 = vmul.f32 %v1641, %v1640
        %v1643 = vmul.f32 0.5, %v1642
        %v1644 = vsub.f32 1.5, %v1643
        %v1645 = vmul.f32 %v1640, %v1644
        %vm1646 = vweird.f32 %v1525
        %vm1647 = vweird.f32 %v1640
        %vm1648 = vmor %vm1646, %vm1647
        %v1649 = vsel %vm1648, %v1640, %v1645
        %v1650 = vrsqrt.pop %v1526
        %v1651 = vmul.f32 %v1650, %v1526
        %v1652 = vmul.f32 %v1651, %v1650
        %v1653 = vmul.f32 0.5, %v1652
        %v1654 = vsub.f32 1.5, %v1653
        %v1655 = vmul.f32 %v1650, %v1654
        %vm1656 = vweird.f32 %v1526
        %vm1657 = vweird.f32 %v1650
        %vm1658 = vmor %vm1656, %vm1657
        %v1659 = vsel %vm1658, %v1650, %v1655
        %v1660 = vrsqrt.pop %v1527
        %v1661 = vmul.f32 %v1660, %v1527
        %v1662 = vmul.f32 %v1661, %v1660
        %v1663 = vmul.f32 0.5, %v1662
        %v1664 = vsub.f32 1.5, %v1663
        %v1665 = vmul.f32 %v1660, %v1664
        %vm1666 = vweird.f32 %v1527
        %vm1667 = vweird.f32 %v1660
        %vm1668 = vmor %vm1666, %vm1667
        %v1669 = vsel %vm1668, %v1660, %v1665
        %v1670 = vrsqrt.pop %v1528
        %v1671 = vmul.f32 %v1670, %v1528
        %v1672 = vmul.f32 %v1671, %v1670
        %v1673 = vmul.f32 0.5, %v1672
        %v1674 = vsub.f32 1.5, %v1673
        %v1675 = vmul.f32 %v1670, %v1674
        %vm1676 = vweird.f32 %v1528
        %vm1677 = vweird.f32 %v1670
        %vm1678 = vmor %vm1676, %vm1677
        %v1679 = vsel %vm1678, %v1670, %v1675
        %v1680 = vrsqrt.pop %v1529
        %v1681 = vmul.f32 %v1680, %v1529
        %v1682 = vmul.f32 %v1681, %v1680
        %v1683 = vmul.f32 0.5, %v1682
        %v1684 = vsub.f32 1.5, %v1683
        %v1685 = vmul.f32 %v1680, %v1684
        %vm1686 = vweird.f32 %v1529
        %vm1687 = vweird.f32 %v1680
        %vm1688 = vmor %vm1686, %vm1687
        %v1689 = vsel %vm1688, %v1680, %v1685
        %v1690 = vmul.f32 %v1434, %v1539
        %v1691 = vmul.f32 %v1435, %v1549
        %v1692 = vmul.f32 %v1436, %v1559
        %v1693 = vmul.f32 %v1437, %v1569
        %v1694 = vmul.f32 %v1438, %v1579
        %v1695 = vmul.f32 %v1439, %v1589
        %v1696 = vmul.f32 %v1440, %v1599
        %v1697 = vmul.f32 %v1441, %v1609
        %v1698 = vmul.f32 %v1442, %v1619
        %v1699 = vmul.f32 %v1443, %v1629
        %v1700 = vmul.f32 %v1444, %v1639
        %v1701 = vmul.f32 %v1445, %v1649
        %v1702 = vmul.f32 %v1446, %v1659
        %v1703 = vmul.f32 %v1447, %v1669
        %v1704 = vmul.f32 %v1448, %v1679
        %v1705 = vmul.f32 %v1449, %v1689
        %v1707 = vperm.slane %v353, 0
        %v1709 = vmul.f32 %v1690, %v1707
        %v1710 = vmul.f32 %v1691, %v1707
        %v1711 = vmul.f32 %v1692, %v1707
        %v1712 = vmul.f32 %v1693, %v1707
        %v1713 = vmul.f32 %v1694, %v1707
        %v1714 = vmul.f32 %v1695, %v1707
        %v1715 = vmul.f32 %v1696, %v1707
        %v1716 = vmul.f32 %v1697, %v1707
        %v1717 = vmul.f32 %v1698, %v1707
        %v1718 = vmul.f32 %v1699, %v1707
        %v1719 = vmul.f32 %v1700, %v1707
        %v1720 = vmul.f32 %v1701, %v1707
        %v1721 = vmul.f32 %v1702, %v1707
        %v1722 = vmul.f32 %v1703, %v1707
        %v1723 = vmul.f32 %v1704, %v1707
        %v1724 = vmul.f32 %v1705, %v1707
        %v1726 = vperm.slane %v354, 0
        %v1728 = vadd.f32 %v1709, %v1726
        %v1729 = vadd.f32 %v1710, %v1726
        %v1730 = vadd.f32 %v1711, %v1726
        %v1731 = vadd.f32 %v1712, %v1726
        %v1732 = vadd.f32 %v1713, %v1726
        %v1733 = vadd.f32 %v1714, %v1726
        %v1734 = vadd.f32 %v1715, %v1726
        %v1735 = vadd.f32 %v1716, %v1726
        %v1736 = vadd.f32 %v1717, %v1726
        %v1737 = vadd.f32 %v1718, %v1726
        %v1738 = vadd.f32 %v1719, %v1726
        %v1739 = vadd.f32 %v1720, %v1726
        %v1740 = vadd.f32 %v1721, %v1726
        %v1741 = vadd.f32 %v1722, %v1726
        %v1742 = vadd.f32 %v1723, %v1726
        %v1743 = vadd.f32 %v1724, %v1726
        %1744 = vst [vmem:[%s342] sm:$0xff] %v1728
        %1745 = vst [vmem:[%s342 + $0x8] sm:$0xff] %v1729
        %1746 = vst [vmem:[%s342 + $0x10] sm:$0xff] %v1730
        %1747 = vst [vmem:[%s342 + $0x18] sm:$0xff] %v1731
        %1748 = vst [vmem:[%s342 + $0x20] sm:$0xff] %v1732
        %1749 = vst [vmem:[%s342 + $0x28] sm:$0xff] %v1733
        %1750 = vst [vmem:[%s342 + $0x30] sm:$0xff] %v1734
        %1751 = vst [vmem:[%s342 + $0x38] sm:$0xff] %v1735
        %1752 = vst [vmem:[%s342 + $0x40] sm:$0xff] %v1736
        %1753 = vst [vmem:[%s342 + $0x48] sm:$0xff] %v1737
        %1754 = vst [vmem:[%s342 + $0x50] sm:$0xff] %v1738
        %1755 = vst [vmem:[%s342 + $0x58] sm:$0xff] %v1739
        %1756 = vst [vmem:[%s342 + $0x60] sm:$0xff] %v1740
        %1757 = vst [vmem:[%s342 + $0x68] sm:$0xff] %v1741
        %1758 = vst [vmem:[%s342 + $0x70] sm:$0xff] %v1742
        %1759 = vst [vmem:[%s342 + $0x78] sm:$0xff] %v1743
        %v1760 = vld [vmem:[#allocation2] sm:$0xf]
        %v1761 = vld [vmem:[#allocation2 + $0x4] sm:$0xf]
        %v1762 = vld [vmem:[#allocation2 + $0x8] sm:$0xf]
        %v1763 = vld [vmem:[#allocation2 + $0xc] sm:$0xf]
        %v1764 = vld [vmem:[#allocation2 + $0x10] sm:$0xf]
        %v1765 = vld [vmem:[#allocation2 + $0x14] sm:$0xf]
        %v1766 = vld [vmem:[#allocation2 + $0x18] sm:$0xf]
        %v1767 = vld [vmem:[#allocation2 + $0x1c] sm:$0xf]
        %v1768 = vld [vmem:[#allocation2 + $0x20] sm:$0xf]
        %v1769 = vld [vmem:[#allocation2 + $0x24] sm:$0xf]
        %v1770 = vld [vmem:[#allocation2 + $0x28] sm:$0xf]
        %v1771 = vld [vmem:[#allocation2 + $0x2c] sm:$0xf]
        %v1772 = vld [vmem:[#allocation2 + $0x30] sm:$0xf]
        %v1773 = vld [vmem:[#allocation2 + $0x34] sm:$0xf]
        %v1774 = vld [vmem:[#allocation2 + $0x38] sm:$0xf]
        %v1775 = vld [vmem:[#allocation2 + $0x3c] sm:$0xf]
        %v1776 = vld [vmem:[#allocation8] sm:$0xf]
        %v1777 = vld [vmem:[#allocation8 + $0x4] sm:$0xf]
        %v1778 = vld [vmem:[#allocation8 + $0x8] sm:$0xf]
        %v1779 = vld [vmem:[#allocation8 + $0xc] sm:$0xf]
        %v1780 = vld [vmem:[#allocation8 + $0x10] sm:$0xf]
        %v1781 = vld [vmem:[#allocation8 + $0x14] sm:$0xf]
        %v1782 = vld [vmem:[#allocation8 + $0x18] sm:$0xf]
        %v1783 = vld [vmem:[#allocation8 + $0x1c] sm:$0xf]
        %v1784 = vld [vmem:[#allocation8 + $0x20] sm:$0xf]
        %v1785 = vld [vmem:[#allocation8 + $0x24] sm:$0xf]
        %v1786 = vld [vmem:[#allocation8 + $0x28] sm:$0xf]
        %v1787 = vld [vmem:[#allocation8 + $0x2c] sm:$0xf]
        %v1788 = vld [vmem:[#allocation8 + $0x30] sm:$0xf]
        %v1789 = vld [vmem:[#allocation8 + $0x34] sm:$0xf]
        %v1790 = vld [vmem:[#allocation8 + $0x38] sm:$0xf]
        %v1791 = vld [vmem:[#allocation8 + $0x3c] sm:$0xf]
        %v1792 = vld [vmem:[#allocation2 + $0x40] sm:$0xf]
        %v1793 = vld [vmem:[#allocation2 + $0x44] sm:$0xf]
        %v1794 = vld [vmem:[%s440] sm:$0xf]
        %v1795 = vld [vmem:[%s440 + $0x4] sm:$0xf]
        %v1796 = vld [vmem:[%s440 + $0x8] sm:$0xf]
        %v1797 = vld [vmem:[%s440 + $0xc] sm:$0xf]
        %v1798 = vld [vmem:[%s440 + $0x10] sm:$0xf]
        %v1799 = vld [vmem:[%s440 + $0x14] sm:$0xf]
        %v1800 = vld [vmem:[%s440 + $0x18] sm:$0xf]
        %v1801 = vld [vmem:[%s440 + $0x1c] sm:$0xf]
        %v1802 = vld [vmem:[%s440 + $0x20] sm:$0xf]
        %v1803 = vld [vmem:[%s440 + $0x24] sm:$0xf]
        %v1804 = vld [vmem:[%s440 + $0x28] sm:$0xf]
        %v1805 = vld [vmem:[%s440 + $0x2c] sm:$0xf]
        %v1806 = vld [vmem:[%s440 + $0x30] sm:$0xf]
        %v1807 = vld [vmem:[%s440 + $0x34] sm:$0xf]
        %v1808 = vld [vmem:[%s440 + $0x38] sm:$0xf]
        %v1809 = vld [vmem:[%s440 + $0x3c] sm:$0xf]
        %v1826 = vunpack.c.l.b16 %v1762
        %v1827 = vunpack.c.l.b16 %v1763
        %v1828 = vunpack.c.l.b16 %v1764
        %v1829 = vunpack.c.l.b16 %v1765
        %v1830 = vunpack.c.l.b16 %v1766
        %v1831 = vunpack.c.l.b16 %v1767
        %v1832 = vunpack.c.l.b16 %v1768
        %v1833 = vunpack.c.l.b16 %v1769
        %v1834 = vunpack.c.l.b16 %v1770
        %v1835 = vunpack.c.l.b16 %v1771
        %v1836 = vunpack.c.l.b16 %v1772
        %v1837 = vunpack.c.l.b16 %v1773
        %v1838 = vunpack.c.l.b16 %v1774
        %v1839 = vunpack.c.l.b16 %v1775
        %v1840 = vunpack.c.l.b16 %v1792
        %v1841 = vunpack.c.l.b16 %v1793
        %v1842 = vpack.c.b16 %v1827, %v1826
        %v1843 = vpack.c.b16 %v1829, %v1828
        %v1844 = vpack.c.b16 %v1831, %v1830
        %v1845 = vpack.c.b16 %v1833, %v1832
        %v1846 = vpack.c.b16 %v1835, %v1834
        %v1847 = vpack.c.b16 %v1837, %v1836
        %v1848 = vpack.c.b16 %v1839, %v1838
        %v1849 = vpack.c.b16 %v1841, %v1840
        %v1874 = vunpack.c.l.b16 %v1794
        %v1875 = vunpack.c.l.b16 %v1795
        %v1876 = vunpack.c.l.b16 %v1796
        %v1877 = vunpack.c.l.b16 %v1797
        %v1878 = vunpack.c.l.b16 %v1798
        %v1879 = vunpack.c.l.b16 %v1799
        %v1880 = vunpack.c.l.b16 %v1800
        %v1881 = vunpack.c.l.b16 %v1801
        %v1882 = vunpack.c.l.b16 %v1802
        %v1883 = vunpack.c.l.b16 %v1803
        %v1884 = vunpack.c.l.b16 %v1804
        %v1885 = vunpack.c.l.b16 %v1805
        %v1886 = vunpack.c.l.b16 %v1806
        %v1887 = vunpack.c.l.b16 %v1807
        %v1888 = vunpack.c.l.b16 %v1808
        %v1889 = vunpack.c.l.b16 %v1809
        %v1890 = vpack.c.b16 %v1875, %v1874
        %v1891 = vpack.c.b16 %v1877, %v1876
        %v1892 = vpack.c.b16 %v1879, %v1878
        %v1893 = vpack.c.b16 %v1881, %v1880
        %v1894 = vpack.c.b16 %v1883, %v1882
        %v1895 = vpack.c.b16 %v1885, %v1884
        %v1896 = vpack.c.b16 %v1887, %v1886
        %v1897 = vpack.c.b16 %v1889, %v1888
        %1906 = vmatpush.bf16.msra.mxu0 %v1897
        %1907 = vmatpush.bf16.msra.mxu0 %v1896
        %1908 = vmatpush.bf16.msra.mxu0 %v1895
        %1909 = vmatpush.bf16.msra.mxu0 %v1894
        %1910 = vmatpush.bf16.msra.mxu0 %v1893
        %1911 = vmatpush.bf16.msra.mxu0 %v1892
        %1912 = vmatpush.bf16.msra.mxu0 %v1891
        %1913 = vmatpush.bf16.msra.mxu0 %v1890
        %1914 = vmatmul.bf16.gmra.mxu0 %v1842
        %v1915 = vpop.f32.mrf.mxu0
        %v1916 = vadd.f32 0.0, %v1915
        %v1917 = vpop.f32.mrf.mxu0
        %v1918 = vadd.f32 0.0, %v1917
        %1919 = vmatmul.bf16.gmra.mxu0 %v1843
        %v1920 = vpop.f32.mrf.mxu0
        %v1921 = vadd.f32 0.0, %v1920
        %v1922 = vpop.f32.mrf.mxu0
        %v1923 = vadd.f32 0.0, %v1922
        %1924 = vmatmul.bf16.gmra.mxu0 %v1844
        %v1925 = vpop.f32.mrf.mxu0
        %v1926 = vadd.f32 0.0, %v1925
        %v1927 = vpop.f32.mrf.mxu0
        %v1928 = vadd.f32 0.0, %v1927
        %1929 = vmatmul.bf16.gmra.mxu0 %v1845
        %v1930 = vpop.f32.mrf.mxu0
        %v1931 = vadd.f32 0.0, %v1930
        %v1932 = vpop.f32.mrf.mxu0
        %v1933 = vadd.f32 0.0, %v1932
        %1934 = vmatmul.bf16.gmra.mxu0 %v1846
        %v1935 = vpop.f32.mrf.mxu0
        %v1936 = vadd.f32 0.0, %v1935
        %v1937 = vpop.f32.mrf.mxu0
        %v1938 = vadd.f32 0.0, %v1937
        %1939 = vmatmul.bf16.gmra.mxu0 %v1847
        %v1940 = vpop.f32.mrf.mxu0
        %v1941 = vadd.f32 0.0, %v1940
        %v1942 = vpop.f32.mrf.mxu0
        %v1943 = vadd.f32 0.0, %v1942
        %1944 = vmatmul.bf16.gmra.mxu0 %v1848
        %v1945 = vpop.f32.mrf.mxu0
        %v1946 = vadd.f32 0.0, %v1945
        %v1947 = vpop.f32.mrf.mxu0
        %v1948 = vadd.f32 0.0, %v1947
        %1949 = vmatmul.bf16.gmra.mxu0 %v1849
        %v1950 = vpop.f32.mrf.mxu0
        %v1951 = vadd.f32 0.0, %v1950
        %v1952 = vpop.f32.mrf.mxu0
        %v1953 = vadd.f32 0.0, %v1952
        %1954 = vdwg.mxu0
        %v1957 = vunpack.c.l.b16 %v1760
        %v1958 = vunpack.c.l.b16 %v1761
        %v1959 = vpack.c.b16 %v1958, %v1957
        %v1977 = vunpack.c.l.b16 %v1776
        %v1978 = vunpack.c.l.b16 %v1777
        %v1979 = vunpack.c.l.b16 %v1778
        %v1980 = vunpack.c.l.b16 %v1779
        %v1981 = vunpack.c.l.b16 %v1780
        %v1982 = vunpack.c.l.b16 %v1781
        %v1983 = vunpack.c.l.b16 %v1782
        %v1984 = vunpack.c.l.b16 %v1783
        %v1985 = vunpack.c.l.b16 %v1784
        %v1986 = vunpack.c.l.b16 %v1785
        %v1987 = vunpack.c.l.b16 %v1786
        %v1988 = vunpack.c.l.b16 %v1787
        %v1989 = vunpack.c.l.b16 %v1788
        %v1990 = vunpack.c.l.b16 %v1789
        %v1991 = vunpack.c.l.b16 %v1790
        %v1992 = vunpack.c.l.b16 %v1791
        %v1993 = vpack.c.b16 %v1978, %v1977
        %v1994 = vpack.c.b16 %v1980, %v1979
        %v1995 = vpack.c.b16 %v1982, %v1981
        %v1996 = vpack.c.b16 %v1984, %v1983
        %v1997 = vpack.c.b16 %v1986, %v1985
        %v1998 = vpack.c.b16 %v1988, %v1987
        %v1999 = vpack.c.b16 %v1990, %v1989
        %v2000 = vpack.c.b16 %v1992, %v1991
        %2009 = vmatpush.bf16.msra.mxu0 %v2000
        %2010 = vmatpush.bf16.msra.mxu0 %v1999
        %2011 = vmatpush.bf16.msra.mxu0 %v1998
        %2012 = vmatpush.bf16.msra.mxu0 %v1997
        %2013 = vmatpush.bf16.msra.mxu0 %v1996
        %2014 = vmatpush.bf16.msra.mxu0 %v1995
        %2015 = vmatpush.bf16.msra.mxu0 %v1994
        %2016 = vmatpush.bf16.msra.mxu0 %v1993
        %2017 = vmatmul.bf16.gmra.mxu0 %v1959
        %v2018 = vpop.f32.mrf.mxu0
        %v2019 = vadd.f32 %v1916, %v2018
        %v2020 = vpop.f32.mrf.mxu0
        %v2021 = vadd.f32 %v1918, %v2020
        %2022 = vmatmul.bf16.gmra.mxu0 %v1842
        %v2023 = vpop.f32.mrf.mxu0
        %v2024 = vadd.f32 %v1921, %v2023
        %v2025 = vpop.f32.mrf.mxu0
        %v2026 = vadd.f32 %v1923, %v2025
        %2027 = vmatmul.bf16.gmra.mxu0 %v1843
        %v2028 = vpop.f32.mrf.mxu0
        %v2029 = vadd.f32 %v1926, %v2028
        %v2030 = vpop.f32.mrf.mxu0
        %v2031 = vadd.f32 %v1928, %v2030
        %2032 = vmatmul.bf16.gmra.mxu0 %v1844
        %v2033 = vpop.f32.mrf.mxu0
        %v2034 = vadd.f32 %v1931, %v2033
        %v2035 = vpop.f32.mrf.mxu0
        %v2036 = vadd.f32 %v1933, %v2035
        %2037 = vmatmul.bf16.gmra.mxu0 %v1845
        %v2038 = vpop.f32.mrf.mxu0
        %v2039 = vadd.f32 %v1936, %v2038
        %v2040 = vpop.f32.mrf.mxu0
        %v2041 = vadd.f32 %v1938, %v2040
        %2042 = vmatmul.bf16.gmra.mxu0 %v1846
        %v2043 = vpop.f32.mrf.mxu0
        %v2044 = vadd.f32 %v1941, %v2043
        %v2045 = vpop.f32.mrf.mxu0
        %v2046 = vadd.f32 %v1943, %v2045
        %2047 = vmatmul.bf16.gmra.mxu0 %v1847
        %v2048 = vpop.f32.mrf.mxu0
        %v2049 = vadd.f32 %v1946, %v2048
        %v2050 = vpop.f32.mrf.mxu0
        %v2051 = vadd.f32 %v1948, %v2050
        %2052 = vmatmul.bf16.gmra.mxu0 %v1848
        %v2053 = vpop.f32.mrf.mxu0
        %v2054 = vadd.f32 %v1951, %v2053
        %v2055 = vpop.f32.mrf.mxu0
        %v2056 = vadd.f32 %v1953, %v2055
        %2057 = vdwg.mxu0
        %v2058 = vld [vmem:[#allocation2 + $0x10] sm:$0xf]
        %v2059 = vld [vmem:[#allocation2 + $0x14] sm:$0xf]
        %v2060 = vld [vmem:[#allocation2 + $0x18] sm:$0xf]
        %v2061 = vld [vmem:[#allocation2 + $0x1c] sm:$0xf]
        %v2062 = vld [vmem:[#allocation2 + $0x20] sm:$0xf]
        %v2063 = vld [vmem:[#allocation2 + $0x24] sm:$0xf]
        %v2064 = vld [vmem:[#allocation2 + $0x28] sm:$0xf]
        %v2065 = vld [vmem:[#allocation2 + $0x2c] sm:$0xf]
        %v2066 = vld [vmem:[#allocation2 + $0x30] sm:$0xf]
        %v2067 = vld [vmem:[#allocation2 + $0x34] sm:$0xf]
        %v2068 = vld [vmem:[#allocation2 + $0x38] sm:$0xf]
        %v2069 = vld [vmem:[#allocation2 + $0x3c] sm:$0xf]
        %v2070 = vld [vmem:[#allocation2 + $0x40] sm:$0xf]
        %v2071 = vld [vmem:[#allocation2 + $0x44] sm:$0xf]
        %v2072 = vld [vmem:[#allocation2 + $0x48] sm:$0xf]
        %v2073 = vld [vmem:[#allocation2 + $0x4c] sm:$0xf]
        %v2074 = vld [vmem:[%s721] sm:$0xf]
        %v2075 = vld [vmem:[%s721 + $0x4] sm:$0xf]
        %v2076 = vld [vmem:[%s721 + $0x8] sm:$0xf]
        %v2077 = vld [vmem:[%s721 + $0xc] sm:$0xf]
        %v2078 = vld [vmem:[%s721 + $0x10] sm:$0xf]
        %v2079 = vld [vmem:[%s721 + $0x14] sm:$0xf]
        %v2080 = vld [vmem:[%s721 + $0x18] sm:$0xf]
        %v2081 = vld [vmem:[%s721 + $0x1c] sm:$0xf]
        %v2082 = vld [vmem:[%s721 + $0x20] sm:$0xf]
        %v2083 = vld [vmem:[%s721 + $0x24] sm:$0xf]
        %v2084 = vld [vmem:[%s721 + $0x28] sm:$0xf]
        %v2085 = vld [vmem:[%s721 + $0x2c] sm:$0xf]
        %v2086 = vld [vmem:[%s721 + $0x30] sm:$0xf]
        %v2087 = vld [vmem:[%s721 + $0x34] sm:$0xf]
        %v2088 = vld [vmem:[%s721 + $0x38] sm:$0xf]
        %v2089 = vld [vmem:[%s721 + $0x3c] sm:$0xf]
        %v2106 = vunpack.c.l.b16 %v2058
        %v2107 = vunpack.c.l.b16 %v2059
        %v2108 = vunpack.c.l.b16 %v2060
        %v2109 = vunpack.c.l.b16 %v2061
        %v2110 = vunpack.c.l.b16 %v2062
        %v2111 = vunpack.c.l.b16 %v2063
        %v2112 = vunpack.c.l.b16 %v2064
        %v2113 = vunpack.c.l.b16 %v2065
        %v2114 = vunpack.c.l.b16 %v2066
        %v2115 = vunpack.c.l.b16 %v2067
        %v2116 = vunpack.c.l.b16 %v2068
        %v2117 = vunpack.c.l.b16 %v2069
        %v2118 = vunpack.c.l.b16 %v2070
        %v2119 = vunpack.c.l.b16 %v2071
        %v2120 = vunpack.c.l.b16 %v2072
        %v2121 = vunpack.c.l.b16 %v2073
        %v2122 = vpack.c.b16 %v2107, %v2106
        %v2123 = vpack.c.b16 %v2109, %v2108
        %v2124 = vpack.c.b16 %v2111, %v2110
        %v2125 = vpack.c.b16 %v2113, %v2112
        %v2126 = vpack.c.b16 %v2115, %v2114
        %v2127 = vpack.c.b16 %v2117, %v2116
        %v2128 = vpack.c.b16 %v2119, %v2118
        %v2129 = vpack.c.b16 %v2121, %v2120
        %v2154 = vunpack.c.l.b16 %v2074
        %v2155 = vunpack.c.l.b16 %v2075
        %v2156 = vunpack.c.l.b16 %v2076
        %v2157 = vunpack.c.l.b16 %v2077
        %v2158 = vunpack.c.l.b16 %v2078
        %v2159 = vunpack.c.l.b16 %v2079
        %v2160 = vunpack.c.l.b16 %v2080
        %v2161 = vunpack.c.l.b16 %v2081
        %v2162 = vunpack.c.l.b16 %v2082
        %v2163 = vunpack.c.l.b16 %v2083
        %v2164 = vunpack.c.l.b16 %v2084
        %v2165 = vunpack.c.l.b16 %v2085
        %v2166 = vunpack.c.l.b16 %v2086
        %v2167 = vunpack.c.l.b16 %v2087
        %v2168 = vunpack.c.l.b16 %v2088
        %v2169 = vunpack.c.l.b16 %v2089
        %v2170 = vpack.c.b16 %v2155, %v2154
        %v2171 = vpack.c.b16 %v2157, %v2156
        %v2172 = vpack.c.b16 %v2159, %v2158
        %v2173 = vpack.c.b16 %v2161, %v2160
        %v2174 = vpack.c.b16 %v2163, %v2162
        %v2175 = vpack.c.b16 %v2165, %v2164
        %v2176 = vpack.c.b16 %v2167, %v2166
        %v2177 = vpack.c.b16 %v2169, %v2168
        %2186 = vmatpush.bf16.msra.mxu0 %v2177
        %2187 = vmatpush.bf16.msra.mxu0 %v2176
        %2188 = vmatpush.bf16.msra.mxu0 %v2175
        %2189 = vmatpush.bf16.msra.mxu0 %v2174
        %2190 = vmatpush.bf16.msra.mxu0 %v2173
        %2191 = vmatpush.bf16.msra.mxu0 %v2172
        %2192 = vmatpush.bf16.msra.mxu0 %v2171
        %2193 = vmatpush.bf16.msra.mxu0 %v2170
        %2194 = vmatmul.bf16.gmra.mxu0 %v2122
        %v2195 = vpop.f32.mrf.mxu0
        %v2196 = vadd.f32 0.0, %v2195
        %v2197 = vpop.f32.mrf.mxu0
        %v2198 = vadd.f32 0.0, %v2197
        %2199 = vmatmul.bf16.gmra.mxu0 %v2123
        %v2200 = vpop.f32.mrf.mxu0
        %v2201 = vadd.f32 0.0, %v2200
        %v2202 = vpop.f32.mrf.mxu0
        %v2203 = vadd.f32 0.0, %v2202
        %2204 = vmatmul.bf16.gmra.mxu0 %v2124
        %v2205 = vpop.f32.mrf.mxu0
        %v2206 = vadd.f32 0.0, %v2205
        %v2207 = vpop.f32.mrf.mxu0
        %v2208 = vadd.f32 0.0, %v2207
        %2209 = vmatmul.bf16.gmra.mxu0 %v2125
        %v2210 = vpop.f32.mrf.mxu0
        %v2211 = vadd.f32 0.0, %v2210
        %v2212 = vpop.f32.mrf.mxu0
        %v2213 = vadd.f32 0.0, %v2212
        %2214 = vmatmul.bf16.gmra.mxu0 %v2126
        %v2215 = vpop.f32.mrf.mxu0
        %v2216 = vadd.f32 0.0, %v2215
        %v2217 = vpop.f32.mrf.mxu0
        %v2218 = vadd.f32 0.0, %v2217
        %2219 = vmatmul.bf16.gmra.mxu0 %v2127
        %v2220 = vpop.f32.mrf.mxu0
        %v2221 = vadd.f32 0.0, %v2220
        %v2222 = vpop.f32.mrf.mxu0
        %v2223 = vadd.f32 0.0, %v2222
        %2224 = vmatmul.bf16.gmra.mxu0 %v2128
        %v2225 = vpop.f32.mrf.mxu0
        %v2226 = vadd.f32 0.0, %v2225
        %v2227 = vpop.f32.mrf.mxu0
        %v2228 = vadd.f32 0.0, %v2227
        %2229 = vmatmul.bf16.gmra.mxu0 %v2129
        %v2230 = vpop.f32.mrf.mxu0
        %v2231 = vadd.f32 0.0, %v2230
        %v2232 = vpop.f32.mrf.mxu0
        %v2233 = vadd.f32 0.0, %v2232
        %2234 = vdwg.mxu0
        %v2235 = vadd.f32 %v2019, %v2196
        %v2236 = vadd.f32 %v2021, %v2198
        %v2237 = vadd.f32 %v2024, %v2201
        %v2238 = vadd.f32 %v2026, %v2203
        %v2239 = vadd.f32 %v2029, %v2206
        %v2240 = vadd.f32 %v2031, %v2208
        %v2241 = vadd.f32 %v2034, %v2211
        %v2242 = vadd.f32 %v2036, %v2213
        %v2243 = vadd.f32 %v2039, %v2216
        %v2244 = vadd.f32 %v2041, %v2218
        %v2245 = vadd.f32 %v2044, %v2221
        %v2246 = vadd.f32 %v2046, %v2223
        %v2247 = vadd.f32 %v2049, %v2226
        %v2248 = vadd.f32 %v2051, %v2228
        %v2249 = vadd.f32 %v2054, %v2231
        %v2250 = vadd.f32 %v2056, %v2233
        %v2251 = vld [vmem:[#allocation2 + $0x18] sm:$0xf]
        %v2252 = vld [vmem:[#allocation2 + $0x1c] sm:$0xf]
        %v2253 = vld [vmem:[#allocation2 + $0x20] sm:$0xf]
        %v2254 = vld [vmem:[#allocation2 + $0x24] sm:$0xf]
        %v2255 = vld [vmem:[#allocation2 + $0x28] sm:$0xf]
        %v2256 = vld [vmem:[#allocation2 + $0x2c] sm:$0xf]
        %v2257 = vld [vmem:[#allocation2 + $0x30] sm:$0xf]
        %v2258 = vld [vmem:[#allocation2 + $0x34] sm:$0xf]
        %v2259 = vld [vmem:[#allocation2 + $0x38] sm:$0xf]
        %v2260 = vld [vmem:[#allocation2 + $0x3c] sm:$0xf]
        %v2261 = vld [vmem:[#allocation2 + $0x40] sm:$0xf]
        %v2262 = vld [vmem:[#allocation2 + $0x44] sm:$0xf]
        %v2263 = vld [vmem:[#allocation2 + $0x48] sm:$0xf]
        %v2264 = vld [vmem:[#allocation2 + $0x4c] sm:$0xf]
        %v2265 = vld [vmem:[#allocation2 + $0x50] sm:$0xf]
        %v2266 = vld [vmem:[#allocation2 + $0x54] sm:$0xf]
        %v2267 = vld [vmem:[%s915] sm:$0xf]
        %v2268 = vld [vmem:[%s915 + $0x4] sm:$0xf]
        %v2269 = vld [vmem:[%s915 + $0x8] sm:$0xf]
        %v2270 = vld [vmem:[%s915 + $0xc] sm:$0xf]
        %v2271 = vld [vmem:[%s915 + $0x10] sm:$0xf]
        %v2272 = vld [vmem:[%s915 + $0x14] sm:$0xf]
        %v2273 = vld [vmem:[%s915 + $0x18] sm:$0xf]
        %v2274 = vld [vmem:[%s915 + $0x1c] sm:$0xf]
        %v2275 = vld [vmem:[%s915 + $0x20] sm:$0xf]
        %v2276 = vld [vmem:[%s915 + $0x24] sm:$0xf]
        %v2277 = vld [vmem:[%s915 + $0x28] sm:$0xf]
        %v2278 = vld [vmem:[%s915 + $0x2c] sm:$0xf]
        %v2279 = vld [vmem:[%s915 + $0x30] sm:$0xf]
        %v2280 = vld [vmem:[%s915 + $0x34] sm:$0xf]
        %v2281 = vld [vmem:[%s915 + $0x38] sm:$0xf]
        %v2282 = vld [vmem:[%s915 + $0x3c] sm:$0xf]
        %v2299 = vunpack.c.l.b16 %v2251
        %v2300 = vunpack.c.l.b16 %v2252
        %v2301 = vunpack.c.l.b16 %v2253
        %v2302 = vunpack.c.l.b16 %v2254
        %v2303 = vunpack.c.l.b16 %v2255
        %v2304 = vunpack.c.l.b16 %v2256
        %v2305 = vunpack.c.l.b16 %v2257
        %v2306 = vunpack.c.l.b16 %v2258
        %v2307 = vunpack.c.l.b16 %v2259
        %v2308 = vunpack.c.l.b16 %v2260
        %v2309 = vunpack.c.l.b16 %v2261
        %v2310 = vunpack.c.l.b16 %v2262
        %v2311 = vunpack.c.l.b16 %v2263
        %v2312 = vunpack.c.l.b16 %v2264
        %v2313 = vunpack.c.l.b16 %v2265
        %v2314 = vunpack.c.l.b16 %v2266
        %v2315 = vpack.c.b16 %v2300, %v2299
        %v2316 = vpack.c.b16 %v2302, %v2301
        %v2317 = vpack.c.b16 %v2304, %v2303
        %v2318 = vpack.c.b16 %v2306, %v2305
        %v2319 = vpack.c.b16 %v2308, %v2307
        %v2320 = vpack.c.b16 %v2310, %v2309
        %v2321 = vpack.c.b16 %v2312, %v2311
        %v2322 = vpack.c.b16 %v2314, %v2313
        %v2347 = vunpack.c.l.b16 %v2267
        %v2348 = vunpack.c.l.b16 %v2268
        %v2349 = vunpack.c.l.b16 %v2269
        %v2350 = vunpack.c.l.b16 %v2270
        %v2351 = vunpack.c.l.b16 %v2271
        %v2352 = vunpack.c.l.b16 %v2272
        %v2353 = vunpack.c.l.b16 %v2273
        %v2354 = vunpack.c.l.b16 %v2274
        %v2355 = vunpack.c.l.b16 %v2275
        %v2356 = vunpack.c.l.b16 %v2276
        %v2357 = vunpack.c.l.b16 %v2277
        %v2358 = vunpack.c.l.b16 %v2278
        %v2359 = vunpack.c.l.b16 %v2279
        %v2360 = vunpack.c.l.b16 %v2280
        %v2361 = vunpack.c.l.b16 %v2281
        %v2362 = vunpack.c.l.b16 %v2282
        %v2363 = vpack.c.b16 %v2348, %v2347
        %v2364 = vpack.c.b16 %v2350, %v2349
        %v2365 = vpack.c.b16 %v2352, %v2351
        %v2366 = vpack.c.b16 %v2354, %v2353
        %v2367 = vpack.c.b16 %v2356, %v2355
        %v2368 = vpack.c.b16 %v2358, %v2357
        %v2369 = vpack.c.b16 %v2360, %v2359
        %v2370 = vpack.c.b16 %v2362, %v2361
        %2379 = vmatpush.bf16.msra.mxu0 %v2370
        %2380 = vmatpush.bf16.msra.mxu0 %v2369
        %2381 = vmatpush.bf16.msra.mxu0 %v2368
        %2382 = vmatpush.bf16.msra.mxu0 %v2367
        %2383 = vmatpush.bf16.msra.mxu0 %v2366
        %2384 = vmatpush.bf16.msra.mxu0 %v2365
        %2385 = vmatpush.bf16.msra.mxu0 %v2364
        %2386 = vmatpush.bf16.msra.mxu0 %v2363
        %2387 = vmatmul.bf16.gmra.mxu0 %v2315
        %v2388 = vpop.f32.mrf.mxu0
        %v2389 = vadd.f32 0.0, %v2388
        %v2390 = vpop.f32.mrf.mxu0
        %v2391 = vadd.f32 0.0, %v2390
        %2392 = vmatmul.bf16.gmra.mxu0 %v2316
        %v2393 = vpop.f32.mrf.mxu0
        %v2394 = vadd.f32 0.0, %v2393
        %v2395 = vpop.f32.mrf.mxu0
        %v2396 = vadd.f32 0.0, %v2395
        %2397 = vmatmul.bf16.gmra.mxu0 %v2317
        %v2398 = vpop.f32.mrf.mxu0
        %v2399 = vadd.f32 0.0, %v2398
        %v2400 = vpop.f32.mrf.mxu0
        %v2401 = vadd.f32 0.0, %v2400
        %2402 = vmatmul.bf16.gmra.mxu0 %v2318
        %v2403 = vpop.f32.mrf.mxu0
        %v2404 = vadd.f32 0.0, %v2403
        %v2405 = vpop.f32.mrf.mxu0
        %v2406 = vadd.f32 0.0, %v2405
        %2407 = vmatmul.bf16.gmra.mxu0 %v2319
        %v2408 = vpop.f32.mrf.mxu0
        %v2409 = vadd.f32 0.0, %v2408
        %v2410 = vpop.f32.mrf.mxu0
        %v2411 = vadd.f32 0.0, %v2410
        %2412 = vmatmul.bf16.gmra.mxu0 %v2320
        %v2413 = vpop.f32.mrf.mxu0
        %v2414 = vadd.f32 0.0, %v2413
        %v2415 = vpop.f32.mrf.mxu0
        %v2416 = vadd.f32 0.0, %v2415
        %2417 = vmatmul.bf16.gmra.mxu0 %v2321
        %v2418 = vpop.f32.mrf.mxu0
        %v2419 = vadd.f32 0.0, %v2418
        %v2420 = vpop.f32.mrf.mxu0
        %v2421 = vadd.f32 0.0, %v2420
        %2422 = vmatmul.bf16.gmra.mxu0 %v2322
        %v2423 = vpop.f32.mrf.mxu0
        %v2424 = vadd.f32 0.0, %v2423
        %v2425 = vpop.f32.mrf.mxu0
        %v2426 = vadd.f32 0.0, %v2425
        %2427 = vdwg.mxu0
        %v2428 = vadd.f32 %v2235, %v2389
        %v2429 = vadd.f32 %v2236, %v2391
        %v2430 = vadd.f32 %v2237, %v2394
        %v2431 = vadd.f32 %v2238, %v2396
        %v2432 = vadd.f32 %v2239, %v2399
        %v2433 = vadd.f32 %v2240, %v2401
        %v2434 = vadd.f32 %v2241, %v2404
        %v2435 = vadd.f32 %v2242, %v2406
        %v2436 = vadd.f32 %v2243, %v2409
        %v2437 = vadd.f32 %v2244, %v2411
        %v2438 = vadd.f32 %v2245, %v2414
        %v2439 = vadd.f32 %v2246, %v2416
        %v2440 = vadd.f32 %v2247, %v2419
        %v2441 = vadd.f32 %v2248, %v2421
        %v2442 = vadd.f32 %v2249, %v2424
        %v2443 = vadd.f32 %v2250, %v2426
        %v2444 = vld [vmem:[#allocation2 + $0x20] sm:$0xf]
        %v2445 = vld [vmem:[#allocation2 + $0x24] sm:$0xf]
        %v2446 = vld [vmem:[#allocation2 + $0x28] sm:$0xf]
        %v2447 = vld [vmem:[#allocation2 + $0x2c] sm:$0xf]
        %v2448 = vld [vmem:[#allocation2 + $0x30] sm:$0xf]
        %v2449 = vld [vmem:[#allocation2 + $0x34] sm:$0xf]
        %v2450 = vld [vmem:[#allocation2 + $0x38] sm:$0xf]
        %v2451 = vld [vmem:[#allocation2 + $0x3c] sm:$0xf]
        %v2452 = vld [vmem:[#allocation2 + $0x40] sm:$0xf]
        %v2453 = vld [vmem:[#allocation2 + $0x44] sm:$0xf]
        %v2454 = vld [vmem:[#allocation2 + $0x48] sm:$0xf]
        %v2455 = vld [vmem:[#allocation2 + $0x4c] sm:$0xf]
        %v2456 = vld [vmem:[#allocation2 + $0x50] sm:$0xf]
        %v2457 = vld [vmem:[#allocation2 + $0x54] sm:$0xf]
        %v2458 = vld [vmem:[#allocation2 + $0x58] sm:$0xf]
        %v2459 = vld [vmem:[#allocation2 + $0x5c] sm:$0xf]
        %v2460 = vld [vmem:[%s1109] sm:$0xf]
        %v2461 = vld [vmem:[%s1109 + $0x4] sm:$0xf]
        %v2462 = vld [vmem:[%s1109 + $0x8] sm:$0xf]
        %v2463 = vld [vmem:[%s1109 + $0xc] sm:$0xf]
        %v2464 = vld [vmem:[%s1109 + $0x10] sm:$0xf]
        %v2465 = vld [vmem:[%s1109 + $0x14] sm:$0xf]
        %v2466 = vld [vmem:[%s1109 + $0x18] sm:$0xf]
        %v2467 = vld [vmem:[%s1109 + $0x1c] sm:$0xf]
        %v2468 = vld [vmem:[%s1109 + $0x20] sm:$0xf]
        %v2469 = vld [vmem:[%s1109 + $0x24] sm:$0xf]
        %v2470 = vld [vmem:[%s1109 + $0x28] sm:$0xf]
        %v2471 = vld [vmem:[%s1109 + $0x2c] sm:$0xf]
        %v2472 = vld [vmem:[%s1109 + $0x30] sm:$0xf]
        %v2473 = vld [vmem:[%s1109 + $0x34] sm:$0xf]
        %v2474 = vld [vmem:[%s1109 + $0x38] sm:$0xf]
        %v2475 = vld [vmem:[%s1109 + $0x3c] sm:$0xf]
        %v2492 = vunpack.c.l.b16 %v2444
        %v2493 = vunpack.c.l.b16 %v2445
        %v2494 = vunpack.c.l.b16 %v2446
        %v2495 = vunpack.c.l.b16 %v2447
        %v2496 = vunpack.c.l.b16 %v2448
        %v2497 = vunpack.c.l.b16 %v2449
        %v2498 = vunpack.c.l.b16 %v2450
        %v2499 = vunpack.c.l.b16 %v2451
        %v2500 = vunpack.c.l.b16 %v2452
        %v2501 = vunpack.c.l.b16 %v2453
        %v2502 = vunpack.c.l.b16 %v2454
        %v2503 = vunpack.c.l.b16 %v2455
        %v2504 = vunpack.c.l.b16 %v2456
        %v2505 = vunpack.c.l.b16 %v2457
        %v2506 = vunpack.c.l.b16 %v2458
        %v2507 = vunpack.c.l.b16 %v2459
        %v2508 = vpack.c.b16 %v2493, %v2492
        %v2509 = vpack.c.b16 %v2495, %v2494
        %v2510 = vpack.c.b16 %v2497, %v2496
        %v2511 = vpack.c.b16 %v2499, %v2498
        %v2512 = vpack.c.b16 %v2501, %v2500
        %v2513 = vpack.c.b16 %v2503, %v2502
        %v2514 = vpack.c.b16 %v2505, %v2504
        %v2515 = vpack.c.b16 %v2507, %v2506
        %v2540 = vunpack.c.l.b16 %v2460
        %v2541 = vunpack.c.l.b16 %v2461
        %v2542 = vunpack.c.l.b16 %v2462
        %v2543 = vunpack.c.l.b16 %v2463
        %v2544 = vunpack.c.l.b16 %v2464
        %v2545 = vunpack.c.l.b16 %v2465
        %v2546 = vunpack.c.l.b16 %v2466
        %v2547 = vunpack.c.l.b16 %v2467
        %v2548 = vunpack.c.l.b16 %v2468
        %v2549 = vunpack.c.l.b16 %v2469
        %v2550 = vunpack.c.l.b16 %v2470
        %v2551 = vunpack.c.l.b16 %v2471
        %v2552 = vunpack.c.l.b16 %v2472
        %v2553 = vunpack.c.l.b16 %v2473
        %v2554 = vunpack.c.l.b16 %v2474
        %v2555 = vunpack.c.l.b16 %v2475
        %v2556 = vpack.c.b16 %v2541, %v2540
        %v2557 = vpack.c.b16 %v2543, %v2542
        %v2558 = vpack.c.b16 %v2545, %v2544
        %v2559 = vpack.c.b16 %v2547, %v2546
        %v2560 = vpack.c.b16 %v2549, %v2548
        %v2561 = vpack.c.b16 %v2551, %v2550
        %v2562 = vpack.c.b16 %v2553, %v2552
        %v2563 = vpack.c.b16 %v2555, %v2554
        %2572 = vmatpush.bf16.msra.mxu0 %v2563
        %2573 = vmatpush.bf16.msra.mxu0 %v2562
        %2574 = vmatpush.bf16.msra.mxu0 %v2561
        %2575 = vmatpush.bf16.msra.mxu0 %v2560
        %2576 = vmatpush.bf16.msra.mxu0 %v2559
        %2577 = vmatpush.bf16.msra.mxu0 %v2558
        %2578 = vmatpush.bf16.msra.mxu0 %v2557
        %2579 = vmatpush.bf16.msra.mxu0 %v2556
        %2580 = vmatmul.bf16.gmra.mxu0 %v2508
        %v2581 = vpop.f32.mrf.mxu0
        %v2582 = vadd.f32 0.0, %v2581
        %v2583 = vpop.f32.mrf.mxu0
        %v2584 = vadd.f32 0.0, %v2583
        %2585 = vmatmul.bf16.gmra.mxu0 %v2509
        %v2586 = vpop.f32.mrf.mxu0
        %v2587 = vadd.f32 0.0, %v2586
        %v2588 = vpop.f32.mrf.mxu0
        %v2589 = vadd.f32 0.0, %v2588
        %2590 = vmatmul.bf16.gmra.mxu0 %v2510
        %v2591 = vpop.f32.mrf.mxu0
        %v2592 = vadd.f32 0.0, %v2591
        %v2593 = vpop.f32.mrf.mxu0
        %v2594 = vadd.f32 0.0, %v2593
        %2595 = vmatmul.bf16.gmra.mxu0 %v2511
        %v2596 = vpop.f32.mrf.mxu0
        %v2597 = vadd.f32 0.0, %v2596
        %v2598 = vpop.f32.mrf.mxu0
        %v2599 = vadd.f32 0.0, %v2598
        %2600 = vmatmul.bf16.gmra.mxu0 %v2512
        %v2601 = vpop.f32.mrf.mxu0
        %v2602 = vadd.f32 0.0, %v2601
        %v2603 = vpop.f32.mrf.mxu0
        %v2604 = vadd.f32 0.0, %v2603
        %2605 = vmatmul.bf16.gmra.mxu0 %v2513
        %v2606 = vpop.f32.mrf.mxu0
        %v2607 = vadd.f32 0.0, %v2606
        %v2608 = vpop.f32.mrf.mxu0
        %v2609 = vadd.f32 0.0, %v2608
        %2610 = vmatmul.bf16.gmra.mxu0 %v2514
        %v2611 = vpop.f32.mrf.mxu0
        %v2612 = vadd.f32 0.0, %v2611
        %v2613 = vpop.f32.mrf.mxu0
        %v2614 = vadd.f32 0.0, %v2613
        %2615 = vmatmul.bf16.gmra.mxu0 %v2515
        %v2616 = vpop.f32.mrf.mxu0
        %v2617 = vadd.f32 0.0, %v2616
        %v2618 = vpop.f32.mrf.mxu0
        %v2619 = vadd.f32 0.0, %v2618
        %2620 = vdwg.mxu0
        %v2621 = vadd.f32 %v2428, %v2582
        %v2622 = vadd.f32 %v2429, %v2584
        %v2623 = vadd.f32 %v2430, %v2587
        %v2624 = vadd.f32 %v2431, %v2589
        %v2625 = vadd.f32 %v2432, %v2592
        %v2626 = vadd.f32 %v2433, %v2594
        %v2627 = vadd.f32 %v2434, %v2597
        %v2628 = vadd.f32 %v2435, %v2599
        %v2629 = vadd.f32 %v2436, %v2602
        %v2630 = vadd.f32 %v2437, %v2604
        %v2631 = vadd.f32 %v2438, %v2607
        %v2632 = vadd.f32 %v2439, %v2609
        %v2633 = vadd.f32 %v2440, %v2612
        %v2634 = vadd.f32 %v2441, %v2614
        %v2635 = vadd.f32 %v2442, %v2617
        %v2636 = vadd.f32 %v2443, %v2619
        %v2637 = vadd.f32 %v2621, %v1288
        %v2638 = vadd.f32 %v2622, %v1288
        %v2639 = vadd.f32 %v2623, %v1288
        %v2640 = vadd.f32 %v2624, %v1288
        %v2641 = vadd.f32 %v2625, %v1288
        %v2642 = vadd.f32 %v2626, %v1288
        %v2643 = vadd.f32 %v2627, %v1288
        %v2644 = vadd.f32 %v2628, %v1288
        %v2645 = vadd.f32 %v2629, %v1288
        %v2646 = vadd.f32 %v2630, %v1288
        %v2647 = vadd.f32 %v2631, %v1288
        %v2648 = vadd.f32 %v2632, %v1288
        %v2649 = vadd.f32 %v2633, %v1288
        %v2650 = vadd.f32 %v2634, %v1288
        %v2651 = vadd.f32 %v2635, %v1288
        %v2652 = vadd.f32 %v2636, %v1288
        %v2653 = vmax.f32 %v2637, 0.0
        %v2654 = vmax.f32 %v2638, 0.0
        %v2655 = vmax.f32 %v2639, 0.0
        %v2656 = vmax.f32 %v2640, 0.0
        %v2657 = vmax.f32 %v2641, 0.0
        %v2658 = vmax.f32 %v2642, 0.0
        %v2659 = vmax.f32 %v2643, 0.0
        %v2660 = vmax.f32 %v2644, 0.0
        %v2661 = vmax.f32 %v2645, 0.0
        %v2662 = vmax.f32 %v2646, 0.0
        %v2663 = vmax.f32 %v2647, 0.0
        %v2664 = vmax.f32 %v2648, 0.0
        %v2665 = vmax.f32 %v2649, 0.0
        %v2666 = vmax.f32 %v2650, 0.0
        %v2667 = vmax.f32 %v2651, 0.0
        %v2668 = vmax.f32 %v2652, 0.0
        %v2669 = vunpack.c.l.bf16 %v2444
        %v2670 = vunpack.c.l.bf16 %v2445
        %v2671 = vunpack.c.l.bf16 %v2446
        %v2672 = vunpack.c.l.bf16 %v2447
        %v2673 = vunpack.c.l.bf16 %v2448
        %v2674 = vunpack.c.l.bf16 %v2449
        %v2675 = vunpack.c.l.bf16 %v2450
        %v2676 = vunpack.c.l.bf16 %v2451
        %v2677 = vunpack.c.l.bf16 %v2452
        %v2678 = vunpack.c.l.bf16 %v2453
        %v2679 = vunpack.c.l.bf16 %v2454
        %v2680 = vunpack.c.l.bf16 %v2455
        %v2681 = vunpack.c.l.bf16 %v2456
        %v2682 = vunpack.c.l.bf16 %v2457
        %v2683 = vunpack.c.l.bf16 %v2458
        %v2684 = vunpack.c.l.bf16 %v2459
        %v2685 = vadd.f32 %v2653, %v2669
        %v2686 = vadd.f32 %v2654, %v2670
        %v2687 = vadd.f32 %v2655, %v2671
        %v2688 = vadd.f32 %v2656, %v2672
        %v2689 = vadd.f32 %v2657, %v2673
        %v2690 = vadd.f32 %v2658, %v2674
        %v2691 = vadd.f32 %v2659, %v2675
        %v2692 = vadd.f32 %v2660, %v2676
        %v2693 = vadd.f32 %v2661, %v2677
        %v2694 = vadd.f32 %v2662, %v2678
        %v2695 = vadd.f32 %v2663, %v2679
        %v2696 = vadd.f32 %v2664, %v2680
        %v2697 = vadd.f32 %v2665, %v2681
        %v2698 = vadd.f32 %v2666, %v2682
        %v2699 = vadd.f32 %v2667, %v2683
        %v2700 = vadd.f32 %v2668, %v2684
        %v2701 = vsel %vm357, %v2685, 0.0
        %v2702 = vsel %vm357, %v2686, 0.0
        %v2703 = vsel %vm357, %v2687, 0.0
        %v2704 = vsel %vm357, %v2688, 0.0
        %v2705 = vsel %vm357, %v2689, 0.0
        %v2706 = vsel %vm357, %v2690, 0.0
        %v2707 = vsel %vm357, %v2691, 0.0
        %v2708 = vsel %vm357, %v2692, 0.0
        %v2709 = vsel %vm357, %v2693, 0.0
        %v2710 = vsel %vm357, %v2694, 0.0
        %v2711 = vsel %vm357, %v2695, 0.0
        %v2712 = vsel %vm357, %v2696, 0.0
        %v2713 = vsel %vm357, %v2697, 0.0
        %v2714 = vsel %vm357, %v2698, 0.0
        %v2715 = vsel %vm357, %v2699, 0.0
        %v2716 = vsel %vm357, %v2700, 0.0
        %2717 = vadd.xlane.f32.xlu0 %v2701
        %v2718 = vpop.xlane.xlu0 %2717
        %2719 = vadd.xlane.f32.xlu0 %v2702
        %v2720 = vpop.xlane.xlu0 %2719
        %2721 = vadd.xlane.f32.xlu0 %v2703
        %v2722 = vpop.xlane.xlu0 %2721
        %2723 = vadd.xlane.f32.xlu0 %v2704
        %v2724 = vpop.xlane.xlu0 %2723
        %2725 = vadd.xlane.f32.xlu0 %v2705
        %v2726 = vpop.xlane.xlu0 %2725
        %2727 = vadd.xlane.f32.xlu0 %v2706
        %v2728 = vpop.xlane.xlu0 %2727
        %2729 = vadd.xlane.f32.xlu0 %v2707
        %v2730 = vpop.xlane.xlu0 %2729
        %2731 = vadd.xlane.f32.xlu0 %v2708
        %v2732 = vpop.xlane.xlu0 %2731
        %2733 = vadd.xlane.f32.xlu0 %v2709
        %v2734 = vpop.xlane.xlu0 %2733
        %2735 = vadd.xlane.f32.xlu0 %v2710
        %v2736 = vpop.xlane.xlu0 %2735
        %2737 = vadd.xlane.f32.xlu0 %v2711
        %v2738 = vpop.xlane.xlu0 %2737
        %2739 = vadd.xlane.f32.xlu0 %v2712
        %v2740 = vpop.xlane.xlu0 %2739
        %2741 = vadd.xlane.f32.xlu0 %v2713
        %v2742 = vpop.xlane.xlu0 %2741
        %2743 = vadd.xlane.f32.xlu0 %v2714
        %v2744 = vpop.xlane.xlu0 %2743
        %2745 = vadd.xlane.f32.xlu0 %v2715
        %v2746 = vpop.xlane.xlu0 %2745
        %2747 = vadd.xlane.f32.xlu0 %v2716
        %v2748 = vpop.xlane.xlu0 %2747
        %v2749 = vmul.f32 %v2718, 0.03125
        %v2750 = vmul.f32 %v2720, 0.03125
        %v2751 = vmul.f32 %v2722, 0.03125
        %v2752 = vmul.f32 %v2724, 0.03125
        %v2753 = vmul.f32 %v2726, 0.03125
        %v2754 = vmul.f32 %v2728, 0.03125
        %v2755 = vmul.f32 %v2730, 0.03125
        %v2756 = vmul.f32 %v2732, 0.03125
        %v2757 = vmul.f32 %v2734, 0.03125
        %v2758 = vmul.f32 %v2736, 0.03125
        %v2759 = vmul.f32 %v2738, 0.03125
        %v2760 = vmul.f32 %v2740, 0.03125
        %v2761 = vmul.f32 %v2742, 0.03125
        %v2762 = vmul.f32 %v2744, 0.03125
        %v2763 = vmul.f32 %v2746, 0.03125
        %v2764 = vmul.f32 %v2748, 0.03125
        %v2765 = vsub.f32 %v2701, %v2749
        %v2766 = vsub.f32 %v2702, %v2750
        %v2767 = vsub.f32 %v2703, %v2751
        %v2768 = vsub.f32 %v2704, %v2752
        %v2769 = vsub.f32 %v2705, %v2753
        %v2770 = vsub.f32 %v2706, %v2754
        %v2771 = vsub.f32 %v2707, %v2755
        %v2772 = vsub.f32 %v2708, %v2756
        %v2773 = vsub.f32 %v2709, %v2757
        %v2774 = vsub.f32 %v2710, %v2758
        %v2775 = vsub.f32 %v2711, %v2759
        %v2776 = vsub.f32 %v2712, %v2760
        %v2777 = vsub.f32 %v2713, %v2761
        %v2778 = vsub.f32 %v2714, %v2762
        %v2779 = vsub.f32 %v2715, %v2763
        %v2780 = vsub.f32 %v2716, %v2764
        %v2781 = vsel %vm357, %v2765, 0.0
        %v2782 = vsel %vm357, %v2766, 0.0
        %v2783 = vsel %vm357, %v2767, 0.0
        %v2784 = vsel %vm357, %v2768, 0.0
        %v2785 = vsel %vm357, %v2769, 0.0
        %v2786 = vsel %vm357, %v2770, 0.0
        %v2787 = vsel %vm357, %v2771, 0.0
        %v2788 = vsel %vm357, %v2772, 0.0
        %v2789 = vsel %vm357, %v2773, 0.0
        %v2790 = vsel %vm357, %v2774, 0.0
        %v2791 = vsel %vm357, %v2775, 0.0
        %v2792 = vsel %vm357, %v2776, 0.0
        %v2793 = vsel %vm357, %v2777, 0.0
        %v2794 = vsel %vm357, %v2778, 0.0
        %v2795 = vsel %vm357, %v2779, 0.0
        %v2796 = vsel %vm357, %v2780, 0.0
        %v2797 = vmul.f32 %v2781, %v2781
        %v2798 = vmul.f32 %v2782, %v2782
        %v2799 = vmul.f32 %v2783, %v2783
        %v2800 = vmul.f32 %v2784, %v2784
        %v2801 = vmul.f32 %v2785, %v2785
        %v2802 = vmul.f32 %v2786, %v2786
        %v2803 = vmul.f32 %v2787, %v2787
        %v2804 = vmul.f32 %v2788, %v2788
        %v2805 = vmul.f32 %v2789, %v2789
        %v2806 = vmul.f32 %v2790, %v2790
        %v2807 = vmul.f32 %v2791, %v2791
        %v2808 = vmul.f32 %v2792, %v2792
        %v2809 = vmul.f32 %v2793, %v2793
        %v2810 = vmul.f32 %v2794, %v2794
        %v2811 = vmul.f32 %v2795, %v2795
        %v2812 = vmul.f32 %v2796, %v2796
        %2813 = vadd.xlane.f32.xlu0 %v2797
        %v2814 = vpop.xlane.xlu0 %2813
        %2815 = vadd.xlane.f32.xlu0 %v2798
        %v2816 = vpop.xlane.xlu0 %2815
        %2817 = vadd.xlane.f32.xlu0 %v2799
        %v2818 = vpop.xlane.xlu0 %2817
        %2819 = vadd.xlane.f32.xlu0 %v2800
        %v2820 = vpop.xlane.xlu0 %2819
        %2821 = vadd.xlane.f32.xlu0 %v2801
        %v2822 = vpop.xlane.xlu0 %2821
        %2823 = vadd.xlane.f32.xlu0 %v2802
        %v2824 = vpop.xlane.xlu0 %2823
        %2825 = vadd.xlane.f32.xlu0 %v2803
        %v2826 = vpop.xlane.xlu0 %2825
        %2827 = vadd.xlane.f32.xlu0 %v2804
        %v2828 = vpop.xlane.xlu0 %2827
        %2829 = vadd.xlane.f32.xlu0 %v2805
        %v2830 = vpop.xlane.xlu0 %2829
        %2831 = vadd.xlane.f32.xlu0 %v2806
        %v2832 = vpop.xlane.xlu0 %2831
        %2833 = vadd.xlane.f32.xlu0 %v2807
        %v2834 = vpop.xlane.xlu0 %2833
        %2835 = vadd.xlane.f32.xlu0 %v2808
        %v2836 = vpop.xlane.xlu0 %2835
        %2837 = vadd.xlane.f32.xlu0 %v2809
        %v2838 = vpop.xlane.xlu0 %2837
        %2839 = vadd.xlane.f32.xlu0 %v2810
        %v2840 = vpop.xlane.xlu0 %2839
        %2841 = vadd.xlane.f32.xlu0 %v2811
        %v2842 = vpop.xlane.xlu0 %2841
        %2843 = vadd.xlane.f32.xlu0 %v2812
        %v2844 = vpop.xlane.xlu0 %2843
        %v2845 = vmul.f32 %v2814, 0.03125
        %v2846 = vmul.f32 %v2816, 0.03125
        %v2847 = vmul.f32 %v2818, 0.03125
        %v2848 = vmul.f32 %v2820, 0.03125
        %v2849 = vmul.f32 %v2822, 0.03125
        %v2850 = vmul.f32 %v2824, 0.03125
        %v2851 = vmul.f32 %v2826, 0.03125
        %v2852 = vmul.f32 %v2828, 0.03125
        %v2853 = vmul.f32 %v2830, 0.03125
        %v2854 = vmul.f32 %v2832, 0.03125
        %v2855 = vmul.f32 %v2834, 0.03125
        %v2856 = vmul.f32 %v2836, 0.03125
        %v2857 = vmul.f32 %v2838, 0.03125
        %v2858 = vmul.f32 %v2840, 0.03125
        %v2859 = vmul.f32 %v2842, 0.03125
        %v2860 = vmul.f32 %v2844, 0.03125
        %v2861 = vadd.f32 %v2845, 1e-05
        %v2862 = vadd.f32 %v2846, 1e-05
        %v2863 = vadd.f32 %v2847, 1e-05
        %v2864 = vadd.f32 %v2848, 1e-05
        %v2865 = vadd.f32 %v2849, 1e-05
        %v2866 = vadd.f32 %v2850, 1e-05
        %v2867 = vadd.f32 %v2851, 1e-05
        %v2868 = vadd.f32 %v2852, 1e-05
        %v2869 = vadd.f32 %v2853, 1e-05
        %v2870 = vadd.f32 %v2854, 1e-05
        %v2871 = vadd.f32 %v2855, 1e-05
        %v2872 = vadd.f32 %v2856, 1e-05
        %v2873 = vadd.f32 %v2857, 1e-05
        %v2874 = vadd.f32 %v2858, 1e-05
        %v2875 = vadd.f32 %v2859, 1e-05
        %v2876 = vadd.f32 %v2860, 1e-05
        %v2877 = vrsqrt.pop %v2861
        %v2878 = vmul.f32 %v2877, %v2861
        %v2879 = vmul.f32 %v2878, %v2877
        %v2880 = vmul.f32 0.5, %v2879
        %v2881 = vsub.f32 1.5, %v2880
        %v2882 = vmul.f32 %v2877, %v2881
        %vm2883 = vweird.f32 %v2861
        %vm2884 = vweird.f32 %v2877
        %vm2885 = vmor %vm2883, %vm2884
        %v2886 = vsel %vm2885, %v2877, %v2882
        %v2887 = vrsqrt.pop %v2862
        %v2888 = vmul.f32 %v2887, %v2862
        %v2889 = vmul.f32 %v2888, %v2887
        %v2890 = vmul.f32 0.5, %v2889
        %v2891 = vsub.f32 1.5, %v2890
        %v2892 = vmul.f32 %v2887, %v2891
        %vm2893 = vweird.f32 %v2862
        %vm2894 = vweird.f32 %v2887
        %vm2895 = vmor %vm2893, %vm2894
        %v2896 = vsel %vm2895, %v2887, %v2892
        %v2897 = vrsqrt.pop %v2863
        %v2898 = vmul.f32 %v2897, %v2863
        %v2899 = vmul.f32 %v2898, %v2897
        %v2900 = vmul.f32 0.5, %v2899
        %v2901 = vsub.f32 1.5, %v2900
        %v2902 = vmul.f32 %v2897, %v2901
        %vm2903 = vweird.f32 %v2863
        %vm2904 = vweird.f32 %v2897
        %vm2905 = vmor %vm2903, %vm2904
        %v2906 = vsel %vm2905, %v2897, %v2902
        %v2907 = vrsqrt.pop %v2864
        %v2908 = vmul.f32 %v2907, %v2864
        %v2909 = vmul.f32 %v2908, %v2907
        %v2910 = vmul.f32 0.5, %v2909
        %v2911 = vsub.f32 1.5, %v2910
        %v2912 = vmul.f32 %v2907, %v2911
        %vm2913 = vweird.f32 %v2864
        %vm2914 = vweird.f32 %v2907
        %vm2915 = vmor %vm2913, %vm2914
        %v2916 = vsel %vm2915, %v2907, %v2912
        %v2917 = vrsqrt.pop %v2865
        %v2918 = vmul.f32 %v2917, %v2865
        %v2919 = vmul.f32 %v2918, %v2917
        %v2920 = vmul.f32 0.5, %v2919
        %v2921 = vsub.f32 1.5, %v2920
        %v2922 = vmul.f32 %v2917, %v2921
        %vm2923 = vweird.f32 %v2865
        %vm2924 = vweird.f32 %v2917
        %vm2925 = vmor %vm2923, %vm2924
        %v2926 = vsel %vm2925, %v2917, %v2922
        %v2927 = vrsqrt.pop %v2866
        %v2928 = vmul.f32 %v2927, %v2866
        %v2929 = vmul.f32 %v2928, %v2927
        %v2930 = vmul.f32 0.5, %v2929
        %v2931 = vsub.f32 1.5, %v2930
        %v2932 = vmul.f32 %v2927, %v2931
        %vm2933 = vweird.f32 %v2866
        %vm2934 = vweird.f32 %v2927
        %vm2935 = vmor %vm2933, %vm2934
        %v2936 = vsel %vm2935, %v2927, %v2932
        %v2937 = vrsqrt.pop %v2867
        %v2938 = vmul.f32 %v2937, %v2867
        %v2939 = vmul.f32 %v2938, %v2937
        %v2940 = vmul.f32 0.5, %v2939
        %v2941 = vsub.f32 1.5, %v2940
        %v2942 = vmul.f32 %v2937, %v2941
        %vm2943 = vweird.f32 %v2867
        %vm2944 = vweird.f32 %v2937
        %vm2945 = vmor %vm2943, %vm2944
        %v2946 = vsel %vm2945, %v2937, %v2942
        %v2947 = vrsqrt.pop %v2868
        %v2948 = vmul.f32 %v2947, %v2868
        %v2949 = vmul.f32 %v2948, %v2947
        %v2950 = vmul.f32 0.5, %v2949
        %v2951 = vsub.f32 1.5, %v2950
        %v2952 = vmul.f32 %v2947, %v2951
        %vm2953 = vweird.f32 %v2868
        %vm2954 = vweird.f32 %v2947
        %vm2955 = vmor %vm2953, %vm2954
        %v2956 = vsel %vm2955, %v2947, %v2952
        %v2957 = vrsqrt.pop %v2869
        %v2958 = vmul.f32 %v2957, %v2869
        %v2959 = vmul.f32 %v2958, %v2957
        %v2960 = vmul.f32 0.5, %v2959
        %v2961 = vsub.f32 1.5, %v2960
        %v2962 = vmul.f32 %v2957, %v2961
        %vm2963 = vweird.f32 %v2869
        %vm2964 = vweird.f32 %v2957
        %vm2965 = vmor %vm2963, %vm2964
        %v2966 = vsel %vm2965, %v2957, %v2962
        %v2967 = vrsqrt.pop %v2870
        %v2968 = vmul.f32 %v2967, %v2870
        %v2969 = vmul.f32 %v2968, %v2967
        %v2970 = vmul.f32 0.5, %v2969
        %v2971 = vsub.f32 1.5, %v2970
        %v2972 = vmul.f32 %v2967, %v2971
        %vm2973 = vweird.f32 %v2870
        %vm2974 = vweird.f32 %v2967
        %vm2975 = vmor %vm2973, %vm2974
        %v2976 = vsel %vm2975, %v2967, %v2972
        %v2977 = vrsqrt.pop %v2871
        %v2978 = vmul.f32 %v2977, %v2871
        %v2979 = vmul.f32 %v2978, %v2977
        %v2980 = vmul.f32 0.5, %v2979
        %v2981 = vsub.f32 1.5, %v2980
        %v2982 = vmul.f32 %v2977, %v2981
        %vm2983 = vweird.f32 %v2871
        %vm2984 = vweird.f32 %v2977
        %vm2985 = vmor %vm2983, %vm2984
        %v2986 = vsel %vm2985, %v2977, %v2982
        %v2987 = vrsqrt.pop %v2872
        %v2988 = vmul.f32 %v2987, %v2872
        %v2989 = vmul.f32 %v2988, %v2987
        %v2990 = vmul.f32 0.5, %v2989
        %v2991 = vsub.f32 1.5, %v2990
        %v2992 = vmul.f32 %v2987, %v2991
        %vm2993 = vweird.f32 %v2872
        %vm2994 = vweird.f32 %v2987
        %vm2995 = vmor %vm2993, %vm2994
        %v2996 = vsel %vm2995, %v2987, %v2992
        %v2997 = vrsqrt.pop %v2873
        %v2998 = vmul.f32 %v2997, %v2873
        %v2999 = vmul.f32 %v2998, %v2997
        %v3000 = vmul.f32 0.5, %v2999
        %v3001 = vsub.f32 1.5, %v3000
        %v3002 = vmul.f32 %v2997, %v3001
        %vm3003 = vweird.f32 %v2873
        %vm3004 = vweird.f32 %v2997
        %vm3005 = vmor %vm3003, %vm3004
        %v3006 = vsel %vm3005, %v2997, %v3002
        %v3007 = vrsqrt.pop %v2874
        %v3008 = vmul.f32 %v3007, %v2874
        %v3009 = vmul.f32 %v3008, %v3007
        %v3010 = vmul.f32 0.5, %v3009
        %v3011 = vsub.f32 1.5, %v3010
        %v3012 = vmul.f32 %v3007, %v3011
        %vm3013 = vweird.f32 %v2874
        %vm3014 = vweird.f32 %v3007
        %vm3015 = vmor %vm3013, %vm3014
        %v3016 = vsel %vm3015, %v3007, %v3012
        %v3017 = vrsqrt.pop %v2875
        %v3018 = vmul.f32 %v3017, %v2875
        %v3019 = vmul.f32 %v3018, %v3017
        %v3020 = vmul.f32 0.5, %v3019
        %v3021 = vsub.f32 1.5, %v3020
        %v3022 = vmul.f32 %v3017, %v3021
        %vm3023 = vweird.f32 %v2875
        %vm3024 = vweird.f32 %v3017
        %vm3025 = vmor %vm3023, %vm3024
        %v3026 = vsel %vm3025, %v3017, %v3022
        %v3027 = vrsqrt.pop %v2876
        %v3028 = vmul.f32 %v3027, %v2876
        %v3029 = vmul.f32 %v3028, %v3027
        %v3030 = vmul.f32 0.5, %v3029
        %v3031 = vsub.f32 1.5, %v3030
        %v3032 = vmul.f32 %v3027, %v3031
        %vm3033 = vweird.f32 %v2876
        %vm3034 = vweird.f32 %v3027
        %vm3035 = vmor %vm3033, %vm3034
        %v3036 = vsel %vm3035, %v3027, %v3032
        %v3037 = vmul.f32 %v2781, %v2886
        %v3038 = vmul.f32 %v2782, %v2896
        %v3039 = vmul.f32 %v2783, %v2906
        %v3040 = vmul.f32 %v2784, %v2916
        %v3041 = vmul.f32 %v2785, %v2926
        %v3042 = vmul.f32 %v2786, %v2936
        %v3043 = vmul.f32 %v2787, %v2946
        %v3044 = vmul.f32 %v2788, %v2956
        %v3045 = vmul.f32 %v2789, %v2966
        %v3046 = vmul.f32 %v2790, %v2976
        %v3047 = vmul.f32 %v2791, %v2986
        %v3048 = vmul.f32 %v2792, %v2996
        %v3049 = vmul.f32 %v2793, %v3006
        %v3050 = vmul.f32 %v2794, %v3016
        %v3051 = vmul.f32 %v2795, %v3026
        %v3052 = vmul.f32 %v2796, %v3036
        %v3053 = vmul.f32 %v3037, %v1707
        %v3054 = vmul.f32 %v3038, %v1707
        %v3055 = vmul.f32 %v3039, %v1707
        %v3056 = vmul.f32 %v3040, %v1707
        %v3057 = vmul.f32 %v3041, %v1707
        %v3058 = vmul.f32 %v3042, %v1707
        %v3059 = vmul.f32 %v3043, %v1707
        %v3060 = vmul.f32 %v3044, %v1707
        %v3061 = vmul.f32 %v3045, %v1707
        %v3062 = vmul.f32 %v3046, %v1707
        %v3063 = vmul.f32 %v3047, %v1707
        %v3064 = vmul.f32 %v3048, %v1707
        %v3065 = vmul.f32 %v3049, %v1707
        %v3066 = vmul.f32 %v3050, %v1707
        %v3067 = vmul.f32 %v3051, %v1707
        %v3068 = vmul.f32 %v3052, %v1707
        %v3069 = vadd.f32 %v3053, %v1726
        %v3070 = vadd.f32 %v3054, %v1726
        %v3071 = vadd.f32 %v3055, %v1726
        %v3072 = vadd.f32 %v3056, %v1726
        %v3073 = vadd.f32 %v3057, %v1726
        %v3074 = vadd.f32 %v3058, %v1726
        %v3075 = vadd.f32 %v3059, %v1726
        %v3076 = vadd.f32 %v3060, %v1726
        %v3077 = vadd.f32 %v3061, %v1726
        %v3078 = vadd.f32 %v3062, %v1726
        %v3079 = vadd.f32 %v3063, %v1726
        %v3080 = vadd.f32 %v3064, %v1726
        %v3081 = vadd.f32 %v3065, %v1726
        %v3082 = vadd.f32 %v3066, %v1726
        %v3083 = vadd.f32 %v3067, %v1726
        %v3084 = vadd.f32 %v3068, %v1726
        %3085 = vst [vmem:[%s342 + $0x80] sm:$0xff] %v3069
        %3086 = vst [vmem:[%s342 + $0x88] sm:$0xff] %v3070
        %3087 = vst [vmem:[%s342 + $0x90] sm:$0xff] %v3071
        %3088 = vst [vmem:[%s342 + $0x98] sm:$0xff] %v3072
        %3089 = vst [vmem:[%s342 + $0xa0] sm:$0xff] %v3073
        %3090 = vst [vmem:[%s342 + $0xa8] sm:$0xff] %v3074
        %3091 = vst [vmem:[%s342 + $0xb0] sm:$0xff] %v3075
        %3092 = vst [vmem:[%s342 + $0xb8] sm:$0xff] %v3076
        %3093 = vst [vmem:[%s342 + $0xc0] sm:$0xff] %v3077
        %3094 = vst [vmem:[%s342 + $0xc8] sm:$0xff] %v3078
        %3095 = vst [vmem:[%s342 + $0xd0] sm:$0xff] %v3079
        %3096 = vst [vmem:[%s342 + $0xd8] sm:$0xff] %v3080
        %3097 = vst [vmem:[%s342 + $0xe0] sm:$0xff] %v3081
        %3098 = vst [vmem:[%s342 + $0xe8] sm:$0xff] %v3082
        %3099 = vst [vmem:[%s342 + $0xf0] sm:$0xff] %v3083
        %3100 = vst [vmem:[%s342 + $0xf8] sm:$0xff] %v3084
        %s3101 = sand.u32 %s174, 1
        %s3102 = scalar_lea.sflag [#allocation5], %s3101
        %s3103 = sand.u32 %s174, 1
        %s3104 = smul.addr %s3103, 256
        %s3105 = scalar_lea.vmem [#allocation9], %s3104
        // Predicated region
        $region57: #{tpu_custom_call.1} parent=43 // pred_check
          %p3106 = pneg %p184
        $region58: #{tpu_custom_call.1} parent=43 // pred_check_branch
          %3108 = sbr.rel (%p3106) target = $region60
        $region59: #{tpu_custom_call.1} parent=43 // pred_region
          %s3109 = smul.u32 32, %s26
          %3111 = vsyncadd %s3102, 0
          %s3112 = smul.addr %s3109, 8
          %s3113 = scalar_lea.hbm %s6, %s3112
          %s3114 = sshll.u32 %s3105, 4
          %s3115 = int_to_ptr.vmem [resolvable:$true] %s3114
          %s3116 = sshll.u32 %s3113, 4
          %s3117 = int_to_ptr.hbm [resolvable:$true] %s3116
          %3122 = dma.vmem_to_hbm [thread:$0]  %s3115, 4096, %s3117, %s3102, 128, 128, 8
        $region60: #{tpu_custom_call.1} parent=43 // pred_fallthru
          _
      $region44: #{tpu_custom_call.1} parent=5 // pred_fallthru
        _
      %p3123 = scmp.le.s32.totalorder 2, %s21
      // Predicated region
      $region61: #{tpu_custom_call.1} parent=5 // pred_check
        %p3124 = pneg %p3123
      $region62: #{tpu_custom_call.1} parent=5 // pred_check_branch
        %3126 = sbr.rel (%p3124) target = $region64
      $region63: #{tpu_custom_call.1} parent=5 // pred_region
        %s3127 = ssub.s32 %s21, 2
        // Predicated region
        $region65: #{tpu_custom_call.1} parent=63 // pred_check
          %p3128 = pneg %p190
        $region66: #{tpu_custom_call.1} parent=63 // pred_check_branch
          %3130 = sbr.rel (%p3128) target = $region68
        $region67: #{tpu_custom_call.1} parent=63 // pred_region
          %s3131 = sand.u32 %s175, 1
          %s3132 = scalar_lea.sflag [#allocation5], %s3131
          %s3133 = sand.u32 %s175, 1
          %s3134 = smul.addr %s3133, 256
          %s3135 = scalar_lea.vmem [#allocation9], %s3134
          %3137 = dma.done %s3132, 4096
        $region68: #{tpu_custom_call.1} parent=63 // pred_fallthru
          _
      $region64: #{tpu_custom_call.1} parent=5 // pred_fallthru
        _
    $region6: #{tpu_custom_call.1} parent=1 // loop_footer
      %s25 = sadd.s32 1, %s21
    $region7: #{tpu_custom_call.1} parent=1 // loop_footer_branch
      %20 = sbr.rel target = $region3
    $region8: #{tpu_custom_call.1} parent=1 // loop_exit
      _
    %3138 = vsyncpa [#allocation4], 1
    %s3139 = scalar_lea.sflag [#allocation4], 1
    %3140 = vsyncpa %s3139, 1
    %3141 = vsyncpa [#allocation7], 1
    %s3142 = scalar_lea.sflag [#allocation7], 1
    %3143 = vsyncpa %s3142, 1
    %3144 = vsyncpa [#allocation5], 1
    %s3145 = scalar_lea.sflag [#allocation5], 1
    %3146 = vsyncpa %s3145, 1

</llo_original>
